<compile_context>
chip_gen: v7x
topology: tpu7x:2x2x1
jax: 0.10.0
libtpu: 0.0.40
codegen_flags: <defaults>
</compile_context>

<pallas_src>
import numpy as np

import jax
import jax.numpy as jnp
from jax.experimental import pallas as pl
from jax.experimental.pallas import tpu as pltpu

BN_EPS = 1e-5
LANE = 128


# ----------------------- prepare-time constant helpers ----------------------
def _fold_conv(w_oihw, bn):
    """Fold eval-mode BatchNorm into a fused (Cout, kh*kw*Cin) weight + bias.

    Column ordering matches the in-kernel patch build: the kh*kw lane-shifted
    copies of the activation are stacked tap-major ((dy, dx) order) with Cin
    minor.
    """
    gamma, beta, mean, var = (np.asarray(a, np.float64) for a in bn)
    w = np.asarray(w_oihw, np.float64)                    # (Cout, Cin, kh, kw)
    scale = gamma / np.sqrt(var + BN_EPS)
    bias = beta - mean * scale
    cout, cin, kh, kw = w.shape
    wf = (w * scale[:, None, None, None]).transpose(0, 2, 3, 1)
    wf = wf.reshape(cout, kh * kw * cin)
    return wf.astype(np.float32), bias.astype(np.float32)


def _make_grid(h, w, row):
    """Padded spatial grid: the real (h, w) map is stored inside an
    (h+2, w+2) frame whose border is kept at exactly zero (doubles as the
    conv padding)."""
    hp, wp = h + 2, w + 2
    return dict(h=h, w=w, hp=hp, wp=wp, sp=hp * wp, row=row, guard=wp + 1)


def _border_mask(batch, g):
    m = np.zeros((batch, g["hp"], g["wp"]), np.float32)
    m[:, 1:1 + g["h"], 1:1 + g["w"]] = 1.0
    return m.reshape(batch * g["sp"])


def _downsample_matrix(batch, gin, gout):
    """0/1 matrix taking a full-resolution conv result on `gin` to the padded
    layout of `gout` by keeping every second row/column (stride-2 conv)."""
    r = np.zeros((batch * gin["sp"], batch * gout["sp"]), np.float32)
    for b in range(batch):
        for sy in range(gout["h"]):
            for sx in range(gout["w"]):
                src = b * gin["sp"] + (1 + 2 * sy) * gin["wp"] + (1 + 2 * sx)
                dst = b * gout["sp"] + (1 + sy) * gout["wp"] + (1 + sx)
                r[src, dst] = 1.0
    return r


# ------------------------------ fused kernel --------------------------------
def build_resnet_forward(params, in_shape):
    """Returns forward(x_nchw) -> (B, num_classes) running one fused kernel."""
    batch, in_ch, h_in, w_in = in_shape

    grids = {}

    def get_grid(h, w):
        if (h, w) not in grids:
            grids[(h, w)] = _make_grid(h, w, len(grids))
        return grids[(h, w)]

    convs = []                        # (meta, fused_weight, bias)
    woff = [0]

    def add_conv(w_oihw, bn, gin, is_3x3):
        wf, bias = _fold_conv(w_oihw, bn)
        cout, k = wf.shape
        if is_3x3:
            wp = gin["wp"]
            taps = tuple(dy * wp + dx for dy in (-1, 0, 1) for dx in (-1, 0, 1))
        else:
            taps = None
        meta = dict(cout=cout, k=k, woff=woff[0], bcol=len(convs),
                    taps=taps, gin=gin)
        woff[0] += ((k + LANE - 1) // LANE) * LANE        # lane-aligned packing
        convs.append((meta, wf, bias))
        return meta

    # stem: conv0 (1x1, pad 1) + bn0 + relu,  conv1 (3x3, pad 1) + bn1 + relu
    ga = get_grid(h_in + 2, w_in + 2)          # conv0 pad=1 grows the map by 2
    m_conv0 = add_conv(params["conv0"], params["bn0"], ga, is_3x3=False)
    m_conv1 = add_conv(params["conv1"], params["bn1"], ga, is_3x3=True)

    # BasicBlock stack
    blocks = []
    cur_grid = ga
    for lname, lstride in (("layer1", 1), ("layer2", 2), ("layer3", 2)):
        for bi, bp in enumerate(params[lname]):
            stride = lstride if bi == 0 else 1
            gin = cur_grid
            gout = get_grid(gin["h"] // 2, gin["w"] // 2) if stride == 2 else gin
            blk = dict(gin=gin, gout=gout, stride=stride, down=None)
            blk["c1"] = add_conv(bp["w1"], bp["bn1"], gin, True)
            blk["c2"] = add_conv(bp["w2"], bp["bn2"], gout, True)
            blk["sc"] = (add_conv(bp["sc_w"], bp["sc_bn"], gin, False)
                         if "sc_w" in bp else None)
            blocks.append(blk)
            cur_grid = gout

    n_conv = len(convs)

    # head: avg_pool2d(kernel = width) + NCHW flatten + Linear
    gC = cur_grid
    k_pool = gC["w"]                                      # torch: out.size()[3]
    hpool = (gC["h"] - k_pool) // k_pool + 1
    wpool = (gC["w"] - k_pool) // k_pool + 1
    n_pool = hpool * wpool
    c_final = blocks[-1]["c2"]["cout"]
    lin_w = np.asarray(params["lin_w"], np.float32)       # (num_classes, fc)
    lin_b = np.asarray(params["lin_b"], np.float32)
    num_classes = lin_w.shape[0]
    assert lin_w.shape[1] == c_final * n_pool, "fc_size mismatch with feature map"

    pool = np.zeros((n_pool, batch * gC["sp"], batch), np.float32)
    for b in range(batch):
        for py in range(hpool):
            for px in range(wpool):
                for dy in range(k_pool):
                    for dx in range(k_pool):
                        iy, ix = py * k_pool + dy, px * k_pool + dx
                        pool[py * wpool + px,
                             b * gC["sp"] + (1 + iy) * gC["wp"] + (1 + ix),
                             b] = 1.0 / (k_pool * k_pool)
    # flat NCHW feature index = channel * n_pool + pool_position
    gl = np.stack([lin_w[:, p::n_pool] for p in range(n_pool)], axis=0)

    # ---- pack constants (a few DMAs instead of ~30 tiny ones)
    rows = max(num_classes, max(m["cout"] for m, _, _ in convs))
    wpack = np.zeros((rows, woff[0]), np.float32)
    bpack = np.zeros((rows, n_conv + 1), np.float32)
    for m, wf, bias in convs:
        wpack[:m["cout"], m["woff"]:m["woff"] + m["k"]] = wf
        bpack[:m["cout"], m["bcol"]] = bias
    bpack[:num_classes, n_conv] = lin_b                   # linear bias

    grid_list = sorted(grids.values(), key=lambda g: g["row"])
    max_bsp = max(batch * g["sp"] for g in grid_list)
    mpack = np.zeros((len(grid_list), max_bsp), np.float32)
    for g in grid_list:
        mpack[g["row"], :batch * g["sp"]] = _border_mask(batch, g)

    rcol, rparts = 0, []
    for blk in blocks:
        if blk["stride"] == 2:
            r = _downsample_matrix(batch, blk["gin"], blk["gout"])
            blk["down"] = dict(rows=r.shape[0], c0=rcol, cols=r.shape[1])
            rparts.append((blk["down"], r))
            rcol += r.shape[1]
    if rparts:
        rpack = np.zeros((max(d["rows"] for d, _ in rparts), rcol), np.float32)
        for d, r in rparts:
            rpack[:d["rows"], d["c0"]:d["c0"] + d["cols"]] = r
    else:
        rpack = np.zeros((8, 128), np.float32)

    const_vals = (
        jnp.asarray(wpack, jnp.bfloat16),     # fused BN+conv weights
        jnp.asarray(bpack, jnp.float32),      # conv biases + linear bias
        jnp.asarray(mpack, jnp.float32),      # per-grid border masks
        jnp.asarray(rpack, jnp.bfloat16),     # stride-2 subsample matrices
        jnp.asarray(pool, jnp.bfloat16),      # avg-pool selection
        jnp.asarray(gl, jnp.bfloat16),        # linear weight, pool-sliced
    )

    # ---- advisory cost estimate (2 * MACs)
    flops = 0
    for m, _, _ in convs:
        flops += 2 * m["cout"] * m["k"] * batch * m["gin"]["sp"]
    for blk in blocks:
        if blk["down"] is not None:
            csum = blk["c1"]["cout"] + (blk["sc"]["cout"] if blk["sc"]
                                        else blk["c1"]["cout"])
            flops += 2 * csum * blk["down"]["rows"] * blk["down"]["cols"]
    flops += 2 * n_pool * (c_final * batch * gC["sp"] * batch
                           + num_classes * c_final * batch)
    bytes_accessed = (in_ch * batch * ga["sp"] * 2
                      + sum(int(a.size) * a.dtype.itemsize for a in const_vals)
                      + num_classes * batch * 4)

    bf16, f32 = jnp.bfloat16, jnp.float32

    # ------------------------------ the kernel ------------------------------
    def kernel(x_ref, w_ref, b_ref, m_ref, r_ref, pp_ref, gl_ref, o_ref):

        def weight(cv):
            return w_ref[0:cv["cout"], cv["woff"]:cv["woff"] + cv["k"]]

        def bias(cv):
            return b_ref[0:cv["cout"], cv["bcol"]:cv["bcol"] + 1]

        def border(g):
            return m_ref[g["row"]:g["row"] + 1, 0:batch * g["sp"]]

        def conv(x, cv):
            """x: (Cin, B*Sp) bf16 on grid cv['gin'] -> (Cout, B*Sp) f32."""
            if cv["taps"] is None:                        # 1x1 conv
                patch = x
            else:                                         # 3x3: shift + stack
                g = cv["gin"]
                gd, bsp = g["guard"], batch * g["sp"]
                guard = jnp.zeros((x.shape[0], gd), bf16)
                xg = jnp.concatenate([guard, x, guard], axis=1)
                patch = jnp.concatenate(
                    [xg[:, gd + d:gd + d + bsp] for d in cv["taps"]], axis=0)
            return jnp.dot(weight(cv), patch, preferred_element_type=f32)

        def down(y, d):
            """Keep every 2nd row/col of a full-res conv result (0/1 dot);
            the border of the output grid comes out exactly zero."""
            r = r_ref[0:d["rows"], d["c0"]:d["c0"] + d["cols"]]
            return jnp.dot(y.astype(bf16), r, preferred_element_type=f32)

        # ---- stem
        a = conv(x_ref[...], m_conv0) + bias(m_conv0)
        a = jnp.maximum(a, 0.0) * border(ga)
        a = conv(a.astype(bf16), m_conv1) + bias(m_conv1)
        a = jnp.maximum(a, 0.0) * border(ga)

        # ---- BasicBlocks
        for blk in blocks:
            xin = a
            xin_b = xin.astype(bf16)
            y = jnp.maximum(conv(xin_b, blk["c1"]) + bias(blk["c1"]), 0.0)
            y = (down(y, blk["down"]) if blk["down"] is not None
                 else y * border(blk["gout"]))
            y = conv(y.astype(bf16), blk["c2"]) + bias(blk["c2"])
            if blk["sc"] is None:
                s = xin                                   # identity shortcut
            else:
                s = conv(xin_b, blk["sc"])
                if blk["down"] is not None:
                    s = down(s, blk["down"])
                s = s + bias(blk["sc"])
            a = jnp.maximum(y + s, 0.0) * border(blk["gout"])

        # ---- head: avg_pool + NCHW flatten + Linear   -> (num_classes, B)
        feats = a.astype(bf16)
        acc = None
        for p in range(n_pool):
            pooled = jnp.dot(feats, pp_ref[p], preferred_element_type=f32)
            part = jnp.dot(gl_ref[p], pooled.astype(bf16),
                           preferred_element_type=f32)
            acc = part if acc is None else acc + part
        o_ref[...] = acc + b_ref[0:num_classes, n_conv:n_conv + 1]

    vmem = pl.BlockSpec(memory_space=pltpu.MemorySpace.VMEM)
    fused = pl.pallas_call(
        kernel,
        out_shape=jax.ShapeDtypeStruct((num_classes, batch), jnp.float32),
        in_specs=[vmem] * 7,
        out_specs=vmem,
        compiler_params=pltpu.CompilerParams(
            vmem_limit_bytes=32 * 1024 * 1024),
        cost_estimate=pl.CostEstimate(flops=int(flops), transcendentals=0,
                                      bytes_accessed=int(bytes_accessed)),
    )
    # For larger batches: add a batch grid axis + dimension_semantics=
    # ("parallel",) so both v7x TensorCores are used; at B=2 one program wins.

    sp_a = ga["sp"]

    @jax.jit
    def forward(x_nchw, cvals):
        x = x_nchw.astype(jnp.float32)                    # torch: x.float()
        # conv0 is 1x1 with padding=1: realize that pad here and embed the
        # input at offset (2, 2) of the zero-bordered grid-A frame, then go to
        # the lane-dense (C, B*Hp*Wp) layout the kernel uses throughout.
        xp = jnp.pad(x, ((0, 0), (0, 0), (2, 2), (2, 2)))
        xc = jnp.transpose(xp, (1, 0, 2, 3)).reshape(in_ch, batch * sp_a)
        return fused(xc.astype(jnp.bfloat16), *cvals).T   # (B, num_classes)

    return lambda x: forward(x, const_vals)


# --------------------------- parameter creation -----------------------------
def init_params(key):
    keys = iter(jax.random.split(key, 64))

    def conv_w(cout, cin, kh, kw):
        return 0.1 * jax.random.normal(next(keys), (cout, cin, kh, kw), jnp.float32)

    def bn(c):
        gamma = 1.0 + 0.1 * jax.random.normal(next(keys), (c,), jnp.float32)
        beta = 0.1 * jax.random.normal(next(keys), (c,), jnp.float32)
        mean = 0.1 * jax.random.normal(next(keys), (c,), jnp.float32)
        var = 0.5 + jax.random.uniform(next(keys), (c,), jnp.float32)
        return (gamma, beta, mean, var)

    def block_params(cin, cout, stride):
        p = {"w1": conv_w(cout, cin, 3, 3), "bn1": bn(cout),
             "w2": conv_w(cout, cout, 3, 3), "bn2": bn(cout)}
        if stride != 1 or cin != cout:
            p["sc_w"] = conv_w(cout, cin, 1, 1)
            p["sc_bn"] = bn(cout)
        return p

    return {
        "conv0": conv_w(4, 4, 1, 1), "bn0": bn(4),
        "conv1": conv_w(16, 4, 3, 3), "bn1": bn(16),
        "layer1": [block_params(16, 16, 1)],              # num_blocks = [1,1,1]
        "layer2": [block_params(16, 32, 2)],
        "layer3": [block_params(32, 64, 2)],
        "lin_w": 0.1 * jax.random.normal(next(keys), (10, 128), jnp.float32),
        "lin_b": 0.1 * jax.random.normal(next(keys), (10,), jnp.float32),
    }


if __name__ == "__main__":
    key = jax.random.PRNGKey(0)
    pkey, xkey = jax.random.split(key)
    params = init_params(pkey)
    # (B=2, C=4, H=14, W=6): conv0 (1x1, pad 1) -> 16x8 spatial; stride-2
    # layers -> (B, 64, 4, 2); avg_pool(k = W = 2) -> (B, 64, 2, 1);
    # flatten -> 128 = fc_size; linear -> 10 classes.
    x = jax.random.normal(xkey, (2, 4, 14, 6), jnp.float32)
    forward = build_resnet_forward(params, x.shape)
    logits = forward(x)
    jax.block_until_ready(logits)
    assert logits.shape == (2, 10)
    assert bool(jnp.all(jnp.isfinite(logits)))
    print("KERNEL_OK")
</pallas_src>

<mosaic_0001>
module attributes {stable_mosaic.version = 11 : i64} {
  func.func @kernel(%arg0: memref<4x360xbf16, #tpu.memory_space<vmem>>, %arg1: memref<64x2688xbf16, #tpu.memory_space<vmem>>, %arg2: memref<64x11xf32, #tpu.memory_space<vmem>>, %arg3: memref<3x360xf32, #tpu.memory_space<vmem>>, %arg4: memref<360x168xbf16, #tpu.memory_space<vmem>>, %arg5: memref<2x48x2xbf16, #tpu.memory_space<vmem>>, %arg6: memref<2x10x64xbf16, #tpu.memory_space<vmem>>, %arg7: memref<10x2xf32, #tpu.memory_space<vmem>>) attributes {dimension_semantics = [], scalar_prefetch = 0 : i64, scratch_operands = 0 : i64, tpu.core_type = #tpu.core_type<tc>} {
    %c0 = arith.constant 0 : index
    %c0_0 = arith.constant 0 : index
    %0 = vector.load %arg0[%c0, %c0_0] : memref<4x360xbf16, #tpu.memory_space<vmem>>, vector<4x360xbf16>
    %c0_1 = arith.constant 0 : index
    %c0_2 = arith.constant 0 : index
    %1 = vector.load %arg1[%c0_1, %c0_2] : memref<64x2688xbf16, #tpu.memory_space<vmem>>, vector<4x4xbf16>
    %cst = arith.constant dense<0.000000e+00> : vector<4x360xf32>
    %2 = tpu.matmul %1, %0, %cst {dimension_numbers = #tpu.dot_dimension_numbers<[1], [0], [0], [1], [0, 0, 1, 1], [], []>} : vector<4x4xbf16>, vector<4x360xbf16>, vector<4x360xf32> -> vector<4x360xf32>
    %c0_3 = arith.constant 0 : index
    %c0_4 = arith.constant 0 : index
    %3 = vector.load %arg2[%c0_3, %c0_4] : memref<64x11xf32, #tpu.memory_space<vmem>>, vector<4x1xf32>
    %4 = vector.broadcast %3 : vector<4x1xf32> to vector<4x360xf32>
    %5 = arith.addf %2, %4 : vector<4x360xf32>
    %cst_5 = arith.constant 0.000000e+00 : f32
    %6 = vector.broadcast %cst_5 : f32 to vector<4x360xf32>
    %7 = arith.maximumf %5, %6 : vector<4x360xf32>
    %c0_6 = arith.constant 0 : index
    %c0_7 = arith.constant 0 : index
    %8 = vector.load %arg3[%c0_6, %c0_7] : memref<3x360xf32, #tpu.memory_space<vmem>>, vector<1x360xf32>
    %9 = vector.broadcast %8 : vector<1x360xf32> to vector<4x360xf32>
    %10 = arith.mulf %7, %9 : vector<4x360xf32>
    %11 = arith.truncf %10 : vector<4x360xf32> to vector<4x360xbf16>
    %cst_8 = arith.constant 0.000000e+00 : bf16
    %12 = vector.broadcast %cst_8 : bf16 to vector<4x11xbf16>
    %13 = tpu.concatenate %12, %11, %12 in 1 : vector<4x11xbf16>, vector<4x360xbf16>, vector<4x11xbf16> -> vector<4x382xbf16>
    %14 = vector.extract_strided_slice %13 {offsets = [0, 0], sizes = [4, 360], strides = [1, 1]} : vector<4x382xbf16> to vector<4x360xbf16>
    %15 = vector.extract_strided_slice %13 {offsets = [0, 1], sizes = [4, 360], strides = [1, 1]} : vector<4x382xbf16> to vector<4x360xbf16>
    %16 = vector.extract_strided_slice %13 {offsets = [0, 2], sizes = [4, 360], strides = [1, 1]} : vector<4x382xbf16> to vector<4x360xbf16>
    %17 = vector.extract_strided_slice %13 {offsets = [0, 10], sizes = [4, 360], strides = [1, 1]} : vector<4x382xbf16> to vector<4x360xbf16>
    %18 = vector.extract_strided_slice %13 {offsets = [0, 11], sizes = [4, 360], strides = [1, 1]} : vector<4x382xbf16> to vector<4x360xbf16>
    %19 = vector.extract_strided_slice %13 {offsets = [0, 12], sizes = [4, 360], strides = [1, 1]} : vector<4x382xbf16> to vector<4x360xbf16>
    %20 = vector.extract_strided_slice %13 {offsets = [0, 20], sizes = [4, 360], strides = [1, 1]} : vector<4x382xbf16> to vector<4x360xbf16>
    %21 = vector.extract_strided_slice %13 {offsets = [0, 21], sizes = [4, 360], strides = [1, 1]} : vector<4x382xbf16> to vector<4x360xbf16>
    %22 = vector.extract_strided_slice %13 {offsets = [0, 22], sizes = [4, 360], strides = [1, 1]} : vector<4x382xbf16> to vector<4x360xbf16>
    %23 = tpu.concatenate %14, %15, %16, %17, %18, %19, %20, %21, %22 in 0 : vector<4x360xbf16>, vector<4x360xbf16>, vector<4x360xbf16>, vector<4x360xbf16>, vector<4x360xbf16>, vector<4x360xbf16>, vector<4x360xbf16>, vector<4x360xbf16>, vector<4x360xbf16> -> vector<36x360xbf16>
    %c0_9 = arith.constant 0 : index
    %c128 = arith.constant 128 : index
    %24 = vector.load %arg1[%c0_9, %c128] : memref<64x2688xbf16, #tpu.memory_space<vmem>>, vector<16x36xbf16>
    %cst_10 = arith.constant dense<0.000000e+00> : vector<16x360xf32>
    %25 = tpu.matmul %24, %23, %cst_10 {dimension_numbers = #tpu.dot_dimension_numbers<[1], [0], [0], [1], [0, 0, 1, 1], [], []>} : vector<16x36xbf16>, vector<36x360xbf16>, vector<16x360xf32> -> vector<16x360xf32>
    %c0_11 = arith.constant 0 : index
    %c1 = arith.constant 1 : index
    %26 = vector.load %arg2[%c0_11, %c1] : memref<64x11xf32, #tpu.memory_space<vmem>>, vector<16x1xf32>
    %27 = vector.broadcast %26 : vector<16x1xf32> to vector<16x360xf32>
    %28 = arith.addf %25, %27 : vector<16x360xf32>
    %cst_12 = arith.constant 0.000000e+00 : f32
    %29 = vector.broadcast %cst_12 : f32 to vector<16x360xf32>
    %30 = arith.maximumf %28, %29 : vector<16x360xf32>
    %c0_13 = arith.constant 0 : index
    %c0_14 = arith.constant 0 : index
    %31 = vector.load %arg3[%c0_13, %c0_14] : memref<3x360xf32, #tpu.memory_space<vmem>>, vector<1x360xf32>
    %32 = vector.broadcast %31 : vector<1x360xf32> to vector<16x360xf32>
    %33 = arith.mulf %30, %32 : vector<16x360xf32>
    %34 = arith.truncf %33 : vector<16x360xf32> to vector<16x360xbf16>
    %cst_15 = arith.constant 0.000000e+00 : bf16
    %35 = vector.broadcast %cst_15 : bf16 to vector<16x11xbf16>
    %36 = tpu.concatenate %35, %34, %35 in 1 : vector<16x11xbf16>, vector<16x360xbf16>, vector<16x11xbf16> -> vector<16x382xbf16>
    %37 = vector.extract_strided_slice %36 {offsets = [0, 0], sizes = [16, 360], strides = [1, 1]} : vector<16x382xbf16> to vector<16x360xbf16>
    %38 = vector.extract_strided_slice %36 {offsets = [0, 1], sizes = [16, 360], strides = [1, 1]} : vector<16x382xbf16> to vector<16x360xbf16>
    %39 = vector.extract_strided_slice %36 {offsets = [0, 2], sizes = [16, 360], strides = [1, 1]} : vector<16x382xbf16> to vector<16x360xbf16>
    %40 = vector.extract_strided_slice %36 {offsets = [0, 10], sizes = [16, 360], strides = [1, 1]} : vector<16x382xbf16> to vector<16x360xbf16>
    %41 = vector.extract_strided_slice %36 {offsets = [0, 11], sizes = [16, 360], strides = [1, 1]} : vector<16x382xbf16> to vector<16x360xbf16>
    %42 = vector.extract_strided_slice %36 {offsets = [0, 12], sizes = [16, 360], strides = [1, 1]} : vector<16x382xbf16> to vector<16x360xbf16>
    %43 = vector.extract_strided_slice %36 {offsets = [0, 20], sizes = [16, 360], strides = [1, 1]} : vector<16x382xbf16> to vector<16x360xbf16>
    %44 = vector.extract_strided_slice %36 {offsets = [0, 21], sizes = [16, 360], strides = [1, 1]} : vector<16x382xbf16> to vector<16x360xbf16>
    %45 = vector.extract_strided_slice %36 {offsets = [0, 22], sizes = [16, 360], strides = [1, 1]} : vector<16x382xbf16> to vector<16x360xbf16>
    %46 = tpu.concatenate %37, %38, %39, %40, %41, %42, %43, %44, %45 in 0 : vector<16x360xbf16>, vector<16x360xbf16>, vector<16x360xbf16>, vector<16x360xbf16>, vector<16x360xbf16>, vector<16x360xbf16>, vector<16x360xbf16>, vector<16x360xbf16>, vector<16x360xbf16> -> vector<144x360xbf16>
    %c0_16 = arith.constant 0 : index
    %c256 = arith.constant 256 : index
    %47 = vector.load %arg1[%c0_16, %c256] : memref<64x2688xbf16, #tpu.memory_space<vmem>>, vector<16x144xbf16>
    %cst_17 = arith.constant dense<0.000000e+00> : vector<16x360xf32>
    %48 = tpu.matmul %47, %46, %cst_17 {dimension_numbers = #tpu.dot_dimension_numbers<[1], [0], [0], [1], [0, 0, 1, 1], [], []>} : vector<16x144xbf16>, vector<144x360xbf16>, vector<16x360xf32> -> vector<16x360xf32>
    %c0_18 = arith.constant 0 : index
    %c2 = arith.constant 2 : index
    %49 = vector.load %arg2[%c0_18, %c2] : memref<64x11xf32, #tpu.memory_space<vmem>>, vector<16x1xf32>
    %50 = vector.broadcast %49 : vector<16x1xf32> to vector<16x360xf32>
    %51 = arith.addf %48, %50 : vector<16x360xf32>
    %cst_19 = arith.constant 0.000000e+00 : f32
    %52 = vector.broadcast %cst_19 : f32 to vector<16x360xf32>
    %53 = arith.maximumf %51, %52 : vector<16x360xf32>
    %c0_20 = arith.constant 0 : index
    %c0_21 = arith.constant 0 : index
    %54 = vector.load %arg3[%c0_20, %c0_21] : memref<3x360xf32, #tpu.memory_space<vmem>>, vector<1x360xf32>
    %55 = vector.broadcast %54 : vector<1x360xf32> to vector<16x360xf32>
    %56 = arith.mulf %53, %55 : vector<16x360xf32>
    %57 = arith.truncf %56 : vector<16x360xf32> to vector<16x360xbf16>
    %cst_22 = arith.constant 0.000000e+00 : bf16
    %58 = vector.broadcast %cst_22 : bf16 to vector<16x11xbf16>
    %59 = tpu.concatenate %58, %57, %58 in 1 : vector<16x11xbf16>, vector<16x360xbf16>, vector<16x11xbf16> -> vector<16x382xbf16>
    %60 = vector.extract_strided_slice %59 {offsets = [0, 0], sizes = [16, 360], strides = [1, 1]} : vector<16x382xbf16> to vector<16x360xbf16>
    %61 = vector.extract_strided_slice %59 {offsets = [0, 1], sizes = [16, 360], strides = [1, 1]} : vector<16x382xbf16> to vector<16x360xbf16>
    %62 = vector.extract_strided_slice %59 {offsets = [0, 2], sizes = [16, 360], strides = [1, 1]} : vector<16x382xbf16> to vector<16x360xbf16>
    %63 = vector.extract_strided_slice %59 {offsets = [0, 10], sizes = [16, 360], strides = [1, 1]} : vector<16x382xbf16> to vector<16x360xbf16>
    %64 = vector.extract_strided_slice %59 {offsets = [0, 11], sizes = [16, 360], strides = [1, 1]} : vector<16x382xbf16> to vector<16x360xbf16>
    %65 = vector.extract_strided_slice %59 {offsets = [0, 12], sizes = [16, 360], strides = [1, 1]} : vector<16x382xbf16> to vector<16x360xbf16>
    %66 = vector.extract_strided_slice %59 {offsets = [0, 20], sizes = [16, 360], strides = [1, 1]} : vector<16x382xbf16> to vector<16x360xbf16>
    %67 = vector.extract_strided_slice %59 {offsets = [0, 21], sizes = [16, 360], strides = [1, 1]} : vector<16x382xbf16> to vector<16x360xbf16>
    %68 = vector.extract_strided_slice %59 {offsets = [0, 22], sizes = [16, 360], strides = [1, 1]} : vector<16x382xbf16> to vector<16x360xbf16>
    %69 = tpu.concatenate %60, %61, %62, %63, %64, %65, %66, %67, %68 in 0 : vector<16x360xbf16>, vector<16x360xbf16>, vector<16x360xbf16>, vector<16x360xbf16>, vector<16x360xbf16>, vector<16x360xbf16>, vector<16x360xbf16>, vector<16x360xbf16>, vector<16x360xbf16> -> vector<144x360xbf16>
    %c0_23 = arith.constant 0 : index
    %c512 = arith.constant 512 : index
    %70 = vector.load %arg1[%c0_23, %c512] : memref<64x2688xbf16, #tpu.memory_space<vmem>>, vector<16x144xbf16>
    %cst_24 = arith.constant dense<0.000000e+00> : vector<16x360xf32>
    %71 = tpu.matmul %70, %69, %cst_24 {dimension_numbers = #tpu.dot_dimension_numbers<[1], [0], [0], [1], [0, 0, 1, 1], [], []>} : vector<16x144xbf16>, vector<144x360xbf16>, vector<16x360xf32> -> vector<16x360xf32>
    %c0_25 = arith.constant 0 : index
    %c3 = arith.constant 3 : index
    %72 = vector.load %arg2[%c0_25, %c3] : memref<64x11xf32, #tpu.memory_space<vmem>>, vector<16x1xf32>
    %73 = vector.broadcast %72 : vector<16x1xf32> to vector<16x360xf32>
    %74 = arith.addf %71, %73 : vector<16x360xf32>
    %75 = arith.addf %74, %33 : vector<16x360xf32>
    %cst_26 = arith.constant 0.000000e+00 : f32
    %76 = vector.broadcast %cst_26 : f32 to vector<16x360xf32>
    %77 = arith.maximumf %75, %76 : vector<16x360xf32>
    %c0_27 = arith.constant 0 : index
    %c0_28 = arith.constant 0 : index
    %78 = vector.load %arg3[%c0_27, %c0_28] : memref<3x360xf32, #tpu.memory_space<vmem>>, vector<1x360xf32>
    %79 = vector.broadcast %78 : vector<1x360xf32> to vector<16x360xf32>
    %80 = arith.mulf %77, %79 : vector<16x360xf32>
    %81 = arith.truncf %80 : vector<16x360xf32> to vector<16x360xbf16>
    %cst_29 = arith.constant 0.000000e+00 : bf16
    %82 = vector.broadcast %cst_29 : bf16 to vector<16x11xbf16>
    %83 = tpu.concatenate %82, %81, %82 in 1 : vector<16x11xbf16>, vector<16x360xbf16>, vector<16x11xbf16> -> vector<16x382xbf16>
    %84 = vector.extract_strided_slice %83 {offsets = [0, 0], sizes = [16, 360], strides = [1, 1]} : vector<16x382xbf16> to vector<16x360xbf16>
    %85 = vector.extract_strided_slice %83 {offsets = [0, 1], sizes = [16, 360], strides = [1, 1]} : vector<16x382xbf16> to vector<16x360xbf16>
    %86 = vector.extract_strided_slice %83 {offsets = [0, 2], sizes = [16, 360], strides = [1, 1]} : vector<16x382xbf16> to vector<16x360xbf16>
    %87 = vector.extract_strided_slice %83 {offsets = [0, 10], sizes = [16, 360], strides = [1, 1]} : vector<16x382xbf16> to vector<16x360xbf16>
    %88 = vector.extract_strided_slice %83 {offsets = [0, 11], sizes = [16, 360], strides = [1, 1]} : vector<16x382xbf16> to vector<16x360xbf16>
    %89 = vector.extract_strided_slice %83 {offsets = [0, 12], sizes = [16, 360], strides = [1, 1]} : vector<16x382xbf16> to vector<16x360xbf16>
    %90 = vector.extract_strided_slice %83 {offsets = [0, 20], sizes = [16, 360], strides = [1, 1]} : vector<16x382xbf16> to vector<16x360xbf16>
    %91 = vector.extract_strided_slice %83 {offsets = [0, 21], sizes = [16, 360], strides = [1, 1]} : vector<16x382xbf16> to vector<16x360xbf16>
    %92 = vector.extract_strided_slice %83 {offsets = [0, 22], sizes = [16, 360], strides = [1, 1]} : vector<16x382xbf16> to vector<16x360xbf16>
    %93 = tpu.concatenate %84, %85, %86, %87, %88, %89, %90, %91, %92 in 0 : vector<16x360xbf16>, vector<16x360xbf16>, vector<16x360xbf16>, vector<16x360xbf16>, vector<16x360xbf16>, vector<16x360xbf16>, vector<16x360xbf16>, vector<16x360xbf16>, vector<16x360xbf16> -> vector<144x360xbf16>
    %c0_30 = arith.constant 0 : index
    %c768 = arith.constant 768 : index
    %94 = vector.load %arg1[%c0_30, %c768] : memref<64x2688xbf16, #tpu.memory_space<vmem>>, vector<32x144xbf16>
    %cst_31 = arith.constant dense<0.000000e+00> : vector<32x360xf32>
    %95 = tpu.matmul %94, %93, %cst_31 {dimension_numbers = #tpu.dot_dimension_numbers<[1], [0], [0], [1], [0, 0, 1, 1], [], []>} : vector<32x144xbf16>, vector<144x360xbf16>, vector<32x360xf32> -> vector<32x360xf32>
    %c0_32 = arith.constant 0 : index
    %c4 = arith.constant 4 : index
    %96 = vector.load %arg2[%c0_32, %c4] : memref<64x11xf32, #tpu.memory_space<vmem>>, vector<32x1xf32>
    %97 = vector.broadcast %96 : vector<32x1xf32> to vector<32x360xf32>
    %98 = arith.addf %95, %97 : vector<32x360xf32>
    %cst_33 = arith.constant 0.000000e+00 : f32
    %99 = vector.broadcast %cst_33 : f32 to vector<32x360xf32>
    %100 = arith.maximumf %98, %99 : vector<32x360xf32>
    %c0_34 = arith.constant 0 : index
    %c0_35 = arith.constant 0 : index
    %101 = vector.load %arg4[%c0_34, %c0_35] : memref<360x168xbf16, #tpu.memory_space<vmem>>, vector<360x120xbf16>
    %102 = arith.truncf %100 : vector<32x360xf32> to vector<32x360xbf16>
    %cst_36 = arith.constant dense<0.000000e+00> : vector<32x120xf32>
    %103 = tpu.matmul %102, %101, %cst_36 {dimension_numbers = #tpu.dot_dimension_numbers<[1], [0], [0], [1], [0, 0, 1, 1], [], []>} : vector<32x360xbf16>, vector<360x120xbf16>, vector<32x120xf32> -> vector<32x120xf32>
    %104 = arith.truncf %103 : vector<32x120xf32> to vector<32x120xbf16>
    %cst_37 = arith.constant 0.000000e+00 : bf16
    %105 = vector.broadcast %cst_37 : bf16 to vector<32x7xbf16>
    %106 = tpu.concatenate %105, %104, %105 in 1 : vector<32x7xbf16>, vector<32x120xbf16>, vector<32x7xbf16> -> vector<32x134xbf16>
    %107 = vector.extract_strided_slice %106 {offsets = [0, 0], sizes = [32, 120], strides = [1, 1]} : vector<32x134xbf16> to vector<32x120xbf16>
    %108 = vector.extract_strided_slice %106 {offsets = [0, 1], sizes = [32, 120], strides = [1, 1]} : vector<32x134xbf16> to vector<32x120xbf16>
    %109 = vector.extract_strided_slice %106 {offsets = [0, 2], sizes = [32, 120], strides = [1, 1]} : vector<32x134xbf16> to vector<32x120xbf16>
    %110 = vector.extract_strided_slice %106 {offsets = [0, 6], sizes = [32, 120], strides = [1, 1]} : vector<32x134xbf16> to vector<32x120xbf16>
    %111 = vector.extract_strided_slice %106 {offsets = [0, 7], sizes = [32, 120], strides = [1, 1]} : vector<32x134xbf16> to vector<32x120xbf16>
    %112 = vector.extract_strided_slice %106 {offsets = [0, 8], sizes = [32, 120], strides = [1, 1]} : vector<32x134xbf16> to vector<32x120xbf16>
    %113 = vector.extract_strided_slice %106 {offsets = [0, 12], sizes = [32, 120], strides = [1, 1]} : vector<32x134xbf16> to vector<32x120xbf16>
    %114 = vector.extract_strided_slice %106 {offsets = [0, 13], sizes = [32, 120], strides = [1, 1]} : vector<32x134xbf16> to vector<32x120xbf16>
    %115 = vector.extract_strided_slice %106 {offsets = [0, 14], sizes = [32, 120], strides = [1, 1]} : vector<32x134xbf16> to vector<32x120xbf16>
    %116 = tpu.concatenate %107, %108, %109, %110, %111, %112, %113, %114, %115 in 0 : vector<32x120xbf16>, vector<32x120xbf16>, vector<32x120xbf16>, vector<32x120xbf16>, vector<32x120xbf16>, vector<32x120xbf16>, vector<32x120xbf16>, vector<32x120xbf16>, vector<32x120xbf16> -> vector<288x120xbf16>
    %c0_38 = arith.constant 0 : index
    %c1024 = arith.constant 1024 : index
    %117 = vector.load %arg1[%c0_38, %c1024] : memref<64x2688xbf16, #tpu.memory_space<vmem>>, vector<32x288xbf16>
    %cst_39 = arith.constant dense<0.000000e+00> : vector<32x120xf32>
    %118 = tpu.matmul %117, %116, %cst_39 {dimension_numbers = #tpu.dot_dimension_numbers<[1], [0], [0], [1], [0, 0, 1, 1], [], []>} : vector<32x288xbf16>, vector<288x120xbf16>, vector<32x120xf32> -> vector<32x120xf32>
    %c0_40 = arith.constant 0 : index
    %c5 = arith.constant 5 : index
    %119 = vector.load %arg2[%c0_40, %c5] : memref<64x11xf32, #tpu.memory_space<vmem>>, vector<32x1xf32>
    %120 = vector.broadcast %119 : vector<32x1xf32> to vector<32x120xf32>
    %121 = arith.addf %118, %120 : vector<32x120xf32>
    %c0_41 = arith.constant 0 : index
    %c1408 = arith.constant 1408 : index
    %122 = vector.load %arg1[%c0_41, %c1408] : memref<64x2688xbf16, #tpu.memory_space<vmem>>, vector<32x16xbf16>
    %cst_42 = arith.constant dense<0.000000e+00> : vector<32x360xf32>
    %123 = tpu.matmul %122, %81, %cst_42 {dimension_numbers = #tpu.dot_dimension_numbers<[1], [0], [0], [1], [0, 0, 1, 1], [], []>} : vector<32x16xbf16>, vector<16x360xbf16>, vector<32x360xf32> -> vector<32x360xf32>
    %c0_43 = arith.constant 0 : index
    %c0_44 = arith.constant 0 : index
    %124 = vector.load %arg4[%c0_43, %c0_44] : memref<360x168xbf16, #tpu.memory_space<vmem>>, vector<360x120xbf16>
    %125 = arith.truncf %123 : vector<32x360xf32> to vector<32x360xbf16>
    %cst_45 = arith.constant dense<0.000000e+00> : vector<32x120xf32>
    %126 = tpu.matmul %125, %124, %cst_45 {dimension_numbers = #tpu.dot_dimension_numbers<[1], [0], [0], [1], [0, 0, 1, 1], [], []>} : vector<32x360xbf16>, vector<360x120xbf16>, vector<32x120xf32> -> vector<32x120xf32>
    %c0_46 = arith.constant 0 : index
    %c6 = arith.constant 6 : index
    %127 = vector.load %arg2[%c0_46, %c6] : memref<64x11xf32, #tpu.memory_space<vmem>>, vector<32x1xf32>
    %128 = vector.broadcast %127 : vector<32x1xf32> to vector<32x120xf32>
    %129 = arith.addf %126, %128 : vector<32x120xf32>
    %130 = arith.addf %121, %129 : vector<32x120xf32>
    %cst_47 = arith.constant 0.000000e+00 : f32
    %131 = vector.broadcast %cst_47 : f32 to vector<32x120xf32>
    %132 = arith.maximumf %130, %131 : vector<32x120xf32>
    %c1_48 = arith.constant 1 : index
    %c0_49 = arith.constant 0 : index
    %133 = vector.load %arg3[%c1_48, %c0_49] : memref<3x360xf32, #tpu.memory_space<vmem>>, vector<1x120xf32>
    %134 = vector.broadcast %133 : vector<1x120xf32> to vector<32x120xf32>
    %135 = arith.mulf %132, %134 : vector<32x120xf32>
    %136 = arith.truncf %135 : vector<32x120xf32> to vector<32x120xbf16>
    %cst_50 = arith.constant 0.000000e+00 : bf16
    %137 = vector.broadcast %cst_50 : bf16 to vector<32x7xbf16>
    %138 = tpu.concatenate %137, %136, %137 in 1 : vector<32x7xbf16>, vector<32x120xbf16>, vector<32x7xbf16> -> vector<32x134xbf16>
    %139 = vector.extract_strided_slice %138 {offsets = [0, 0], sizes = [32, 120], strides = [1, 1]} : vector<32x134xbf16> to vector<32x120xbf16>
    %140 = vector.extract_strided_slice %138 {offsets = [0, 1], sizes = [32, 120], strides = [1, 1]} : vector<32x134xbf16> to vector<32x120xbf16>
    %141 = vector.extract_strided_slice %138 {offsets = [0, 2], sizes = [32, 120], strides = [1, 1]} : vector<32x134xbf16> to vector<32x120xbf16>
    %142 = vector.extract_strided_slice %138 {offsets = [0, 6], sizes = [32, 120], strides = [1, 1]} : vector<32x134xbf16> to vector<32x120xbf16>
    %143 = vector.extract_strided_slice %138 {offsets = [0, 7], sizes = [32, 120], strides = [1, 1]} : vector<32x134xbf16> to vector<32x120xbf16>
    %144 = vector.extract_strided_slice %138 {offsets = [0, 8], sizes = [32, 120], strides = [1, 1]} : vector<32x134xbf16> to vector<32x120xbf16>
    %145 = vector.extract_strided_slice %138 {offsets = [0, 12], sizes = [32, 120], strides = [1, 1]} : vector<32x134xbf16> to vector<32x120xbf16>
    %146 = vector.extract_strided_slice %138 {offsets = [0, 13], sizes = [32, 120], strides = [1, 1]} : vector<32x134xbf16> to vector<32x120xbf16>
    %147 = vector.extract_strided_slice %138 {offsets = [0, 14], sizes = [32, 120], strides = [1, 1]} : vector<32x134xbf16> to vector<32x120xbf16>
    %148 = tpu.concatenate %139, %140, %141, %142, %143, %144, %145, %146, %147 in 0 : vector<32x120xbf16>, vector<32x120xbf16>, vector<32x120xbf16>, vector<32x120xbf16>, vector<32x120xbf16>, vector<32x120xbf16>, vector<32x120xbf16>, vector<32x120xbf16>, vector<32x120xbf16> -> vector<288x120xbf16>
    %c0_51 = arith.constant 0 : index
    %c1536 = arith.constant 1536 : index
    %149 = vector.load %arg1[%c0_51, %c1536] : memref<64x2688xbf16, #tpu.memory_space<vmem>>, vector<64x288xbf16>
    %cst_52 = arith.constant dense<0.000000e+00> : vector<64x120xf32>
    %150 = tpu.matmul %149, %148, %cst_52 {dimension_numbers = #tpu.dot_dimension_numbers<[1], [0], [0], [1], [0, 0, 1, 1], [], []>} : vector<64x288xbf16>, vector<288x120xbf16>, vector<64x120xf32> -> vector<64x120xf32>
    %c0_53 = arith.constant 0 : index
    %c7 = arith.constant 7 : index
    %151 = vector.load %arg2[%c0_53, %c7] : memref<64x11xf32, #tpu.memory_space<vmem>>, vector<64x1xf32>
    %152 = vector.broadcast %151 : vector<64x1xf32> to vector<64x120xf32>
    %153 = arith.addf %150, %152 : vector<64x120xf32>
    %cst_54 = arith.constant 0.000000e+00 : f32
    %154 = vector.broadcast %cst_54 : f32 to vector<64x120xf32>
    %155 = arith.maximumf %153, %154 : vector<64x120xf32>
    %c0_55 = arith.constant 0 : index
    %c120 = arith.constant 120 : index
    %156 = vector.load %arg4[%c0_55, %c120] : memref<360x168xbf16, #tpu.memory_space<vmem>>, vector<120x48xbf16>
    %157 = arith.truncf %155 : vector<64x120xf32> to vector<64x120xbf16>
    %cst_56 = arith.constant dense<0.000000e+00> : vector<64x48xf32>
    %158 = tpu.matmul %157, %156, %cst_56 {dimension_numbers = #tpu.dot_dimension_numbers<[1], [0], [0], [1], [0, 0, 1, 1], [], []>} : vector<64x120xbf16>, vector<120x48xbf16>, vector<64x48xf32> -> vector<64x48xf32>
    %159 = arith.truncf %158 : vector<64x48xf32> to vector<64x48xbf16>
    %cst_57 = arith.constant 0.000000e+00 : bf16
    %160 = vector.broadcast %cst_57 : bf16 to vector<64x5xbf16>
    %161 = tpu.concatenate %160, %159, %160 in 1 : vector<64x5xbf16>, vector<64x48xbf16>, vector<64x5xbf16> -> vector<64x58xbf16>
    %162 = vector.extract_strided_slice %161 {offsets = [0, 0], sizes = [64, 48], strides = [1, 1]} : vector<64x58xbf16> to vector<64x48xbf16>
    %163 = vector.extract_strided_slice %161 {offsets = [0, 1], sizes = [64, 48], strides = [1, 1]} : vector<64x58xbf16> to vector<64x48xbf16>
    %164 = vector.extract_strided_slice %161 {offsets = [0, 2], sizes = [64, 48], strides = [1, 1]} : vector<64x58xbf16> to vector<64x48xbf16>
    %165 = vector.extract_strided_slice %161 {offsets = [0, 4], sizes = [64, 48], strides = [1, 1]} : vector<64x58xbf16> to vector<64x48xbf16>
    %166 = vector.extract_strided_slice %161 {offsets = [0, 5], sizes = [64, 48], strides = [1, 1]} : vector<64x58xbf16> to vector<64x48xbf16>
    %167 = vector.extract_strided_slice %161 {offsets = [0, 6], sizes = [64, 48], strides = [1, 1]} : vector<64x58xbf16> to vector<64x48xbf16>
    %168 = vector.extract_strided_slice %161 {offsets = [0, 8], sizes = [64, 48], strides = [1, 1]} : vector<64x58xbf16> to vector<64x48xbf16>
    %169 = vector.extract_strided_slice %161 {offsets = [0, 9], sizes = [64, 48], strides = [1, 1]} : vector<64x58xbf16> to vector<64x48xbf16>
    %170 = vector.extract_strided_slice %161 {offsets = [0, 10], sizes = [64, 48], strides = [1, 1]} : vector<64x58xbf16> to vector<64x48xbf16>
    %171 = tpu.concatenate %162, %163, %164, %165, %166, %167, %168, %169, %170 in 0 : vector<64x48xbf16>, vector<64x48xbf16>, vector<64x48xbf16>, vector<64x48xbf16>, vector<64x48xbf16>, vector<64x48xbf16>, vector<64x48xbf16>, vector<64x48xbf16>, vector<64x48xbf16> -> vector<576x48xbf16>
    %c0_58 = arith.constant 0 : index
    %c1920 = arith.constant 1920 : index
    %172 = vector.load %arg1[%c0_58, %c1920] : memref<64x2688xbf16, #tpu.memory_space<vmem>>, vector<64x576xbf16>
    %cst_59 = arith.constant dense<0.000000e+00> : vector<64x48xf32>
    %173 = tpu.matmul %172, %171, %cst_59 {dimension_numbers = #tpu.dot_dimension_numbers<[1], [0], [0], [1], [0, 0, 1, 1], [], []>} : vector<64x576xbf16>, vector<576x48xbf16>, vector<64x48xf32> -> vector<64x48xf32>
    %c0_60 = arith.constant 0 : index
    %c8 = arith.constant 8 : index
    %174 = vector.load %arg2[%c0_60, %c8] : memref<64x11xf32, #tpu.memory_space<vmem>>, vector<64x1xf32>
    %175 = vector.broadcast %174 : vector<64x1xf32> to vector<64x48xf32>
    %176 = arith.addf %173, %175 : vector<64x48xf32>
    %c0_61 = arith.constant 0 : index
    %c2560 = arith.constant 2560 : index
    %177 = vector.load %arg1[%c0_61, %c2560] : memref<64x2688xbf16, #tpu.memory_space<vmem>>, vector<64x32xbf16>
    %cst_62 = arith.constant dense<0.000000e+00> : vector<64x120xf32>
    %178 = tpu.matmul %177, %136, %cst_62 {dimension_numbers = #tpu.dot_dimension_numbers<[1], [0], [0], [1], [0, 0, 1, 1], [], []>} : vector<64x32xbf16>, vector<32x120xbf16>, vector<64x120xf32> -> vector<64x120xf32>
    %c0_63 = arith.constant 0 : index
    %c120_64 = arith.constant 120 : index
    %179 = vector.load %arg4[%c0_63, %c120_64] : memref<360x168xbf16, #tpu.memory_space<vmem>>, vector<120x48xbf16>
    %180 = arith.truncf %178 : vector<64x120xf32> to vector<64x120xbf16>
    %cst_65 = arith.constant dense<0.000000e+00> : vector<64x48xf32>
    %181 = tpu.matmul %180, %179, %cst_65 {dimension_numbers = #tpu.dot_dimension_numbers<[1], [0], [0], [1], [0, 0, 1, 1], [], []>} : vector<64x120xbf16>, vector<120x48xbf16>, vector<64x48xf32> -> vector<64x48xf32>
    %c0_66 = arith.constant 0 : index
    %c9 = arith.constant 9 : index
    %182 = vector.load %arg2[%c0_66, %c9] : memref<64x11xf32, #tpu.memory_space<vmem>>, vector<64x1xf32>
    %183 = vector.broadcast %182 : vector<64x1xf32> to vector<64x48xf32>
    %184 = arith.addf %181, %183 : vector<64x48xf32>
    %185 = arith.addf %176, %184 : vector<64x48xf32>
    %cst_67 = arith.constant 0.000000e+00 : f32
    %186 = vector.broadcast %cst_67 : f32 to vector<64x48xf32>
    %187 = arith.maximumf %185, %186 : vector<64x48xf32>
    %c2_68 = arith.constant 2 : index
    %c0_69 = arith.constant 0 : index
    %188 = vector.load %arg3[%c2_68, %c0_69] : memref<3x360xf32, #tpu.memory_space<vmem>>, vector<1x48xf32>
    %189 = vector.broadcast %188 : vector<1x48xf32> to vector<64x48xf32>
    %190 = arith.mulf %187, %189 : vector<64x48xf32>
    %191 = arith.truncf %190 : vector<64x48xf32> to vector<64x48xbf16>
    %c0_70 = arith.constant 0 : index
    %c0_71 = arith.constant 0 : index
    %c0_72 = arith.constant 0 : index
    %192 = vector.load %arg5[%c0_70, %c0_71, %c0_72] : memref<2x48x2xbf16, #tpu.memory_space<vmem>>, vector<1x48x2xbf16>
    %193 = vector.shape_cast %192 : vector<1x48x2xbf16> to vector<48x2xbf16>
    %cst_73 = arith.constant dense<0.000000e+00> : vector<64x2xf32>
    %194 = tpu.matmul %191, %193, %cst_73 {dimension_numbers = #tpu.dot_dimension_numbers<[1], [0], [0], [1], [0, 0, 1, 1], [], []>} : vector<64x48xbf16>, vector<48x2xbf16>, vector<64x2xf32> -> vector<64x2xf32>
    %c0_74 = arith.constant 0 : index
    %c0_75 = arith.constant 0 : index
    %c0_76 = arith.constant 0 : index
    %195 = vector.load %arg6[%c0_74, %c0_75, %c0_76] : memref<2x10x64xbf16, #tpu.memory_space<vmem>>, vector<1x10x64xbf16>
    %196 = vector.shape_cast %195 : vector<1x10x64xbf16> to vector<10x64xbf16>
    %197 = arith.truncf %194 : vector<64x2xf32> to vector<64x2xbf16>
    %cst_77 = arith.constant dense<0.000000e+00> : vector<10x2xf32>
    %198 = tpu.matmul %196, %197, %cst_77 {dimension_numbers = #tpu.dot_dimension_numbers<[1], [0], [0], [1], [0, 0, 1, 1], [], []>} : vector<10x64xbf16>, vector<64x2xbf16>, vector<10x2xf32> -> vector<10x2xf32>
    %c1_78 = arith.constant 1 : index
    %c0_79 = arith.constant 0 : index
    %c0_80 = arith.constant 0 : index
    %199 = vector.load %arg5[%c1_78, %c0_79, %c0_80] : memref<2x48x2xbf16, #tpu.memory_space<vmem>>, vector<1x48x2xbf16>
    %200 = vector.shape_cast %199 : vector<1x48x2xbf16> to vector<48x2xbf16>
    %cst_81 = arith.constant dense<0.000000e+00> : vector<64x2xf32>
    %201 = tpu.matmul %191, %200, %cst_81 {dimension_numbers = #tpu.dot_dimension_numbers<[1], [0], [0], [1], [0, 0, 1, 1], [], []>} : vector<64x48xbf16>, vector<48x2xbf16>, vector<64x2xf32> -> vector<64x2xf32>
    %c1_82 = arith.constant 1 : index
    %c0_83 = arith.constant 0 : index
    %c0_84 = arith.constant 0 : index
    %202 = vector.load %arg6[%c1_82, %c0_83, %c0_84] : memref<2x10x64xbf16, #tpu.memory_space<vmem>>, vector<1x10x64xbf16>
    %203 = vector.shape_cast %202 : vector<1x10x64xbf16> to vector<10x64xbf16>
    %204 = arith.truncf %201 : vector<64x2xf32> to vector<64x2xbf16>
    %cst_85 = arith.constant dense<0.000000e+00> : vector<10x2xf32>
    %205 = tpu.matmul %203, %204, %cst_85 {dimension_numbers = #tpu.dot_dimension_numbers<[1], [0], [0], [1], [0, 0, 1, 1], [], []>} : vector<10x64xbf16>, vector<64x2xbf16>, vector<10x2xf32> -> vector<10x2xf32>
    %206 = arith.addf %198, %205 : vector<10x2xf32>
    %c0_86 = arith.constant 0 : index
    %c10 = arith.constant 10 : index
    %207 = vector.load %arg2[%c0_86, %c10] : memref<64x11xf32, #tpu.memory_space<vmem>>, vector<10x1xf32>
    %208 = vector.broadcast %207 : vector<10x1xf32> to vector<10x2xf32>
    %209 = arith.addf %206, %208 : vector<10x2xf32>
    %c0_87 = arith.constant 0 : index
    %c0_88 = arith.constant 0 : index
    %210 = vector.load %arg7[%c0_87, %c0_88] : memref<10x2xf32, #tpu.memory_space<vmem>>, vector<10x2xf32>
    tpu.vector_store %arg7[%c0_87, %c0_88], %209 {strides = array<i32>} : memref<10x2xf32, #tpu.memory_space<vmem>>, vector<10x2xf32>,
    return
  }
}

</mosaic_0001>

<llo_original>
// kernel: forward.1
$region0: #{forward.1}
  #allocation0 [shape = 'u32[]', space=smem, size = 0x4, offset = 0x4, fixed_abs, tag = 'smem constant byte address 0x4 - core index']
  #allocation1 [shape = 'u32[144,128]{1,0:T(1,128)}', space=vmem, size = 0x12000, scoped, tag = 'internal scratch']
  %s0 = inlined_call_operand.vmem [shape: bf16[4,360], index: 0, kind: input, shape index: {}]
  %s1 = inlined_call_operand.vmem [shape: bf16[64,2688], index: 1, kind: input, shape index: {}]
  %s2 = inlined_call_operand.vmem [shape: f32[64,11], index: 2, kind: input, shape index: {}]
  %s3 = inlined_call_operand.vmem [shape: f32[3,360], index: 3, kind: input, shape index: {}]
  %s4 = inlined_call_operand.vmem [shape: bf16[360,168], index: 4, kind: input, shape index: {}]
  %s5 = inlined_call_operand.vmem [shape: bf16[2,48,2], index: 5, kind: input, shape index: {}]
  %s6 = inlined_call_operand.vmem [shape: bf16[2,10,64], index: 6, kind: input, shape index: {}]
  %s7 = inlined_call_operand.vmem [shape: f32[10,2], index: 7, kind: output, shape index: {}]
  %s8 = sld [smem:[#allocation0]]
  $region38: #{forward.1} parent=0
    _
  %s10 = ssub.s32 1, %s8
  %s11 = scalar_select 0, %s10, %s8
  // Predicated region
  $region2: #{forward.1} parent=0 // pred_check
    _
  $region3: #{forward.1} parent=0 // pred_check_branch
    %13 = sbr.rel (0) target = $region5
  $region4: #{forward.1} parent=0 // pred_region
    _
  $region5: #{forward.1} parent=0 // pred_fallthru
    _
  // Predicated region
  $region6: #{forward.1} parent=0 // pred_check
    _
  $region7: #{forward.1} parent=0 // pred_check_branch
    %15 = sbr.rel (0) target = $region9
  $region8: #{forward.1} parent=0 // pred_region
    _
  $region9: #{forward.1} parent=0 // pred_fallthru
    _
  // Predicated region
  $region10: #{forward.1} parent=0 // pred_check
    _
  $region11: #{forward.1} parent=0 // pred_check_branch
    %17 = sbr.rel (0) target = $region13
  $region12: #{forward.1} parent=0 // pred_region
    _
  $region13: #{forward.1} parent=0 // pred_fallthru
    _
  // Predicated region
  $region14: #{forward.1} parent=0 // pred_check
    _
  $region15: #{forward.1} parent=0 // pred_check_branch
    %19 = sbr.rel (0) target = $region17
  $region16: #{forward.1} parent=0 // pred_region
    _
  $region17: #{forward.1} parent=0 // pred_fallthru
    _
  // Predicated region
  $region18: #{forward.1} parent=0 // pred_check
    _
  $region19: #{forward.1} parent=0 // pred_check_branch
    %21 = sbr.rel (0) target = $region21
  $region20: #{forward.1} parent=0 // pred_region
    _
  $region21: #{forward.1} parent=0 // pred_fallthru
    _
  // Predicated region
  $region22: #{forward.1} parent=0 // pred_check
    _
  $region23: #{forward.1} parent=0 // pred_check_branch
    %23 = sbr.rel (0) target = $region25
  $region24: #{forward.1} parent=0 // pred_region
    _
  $region25: #{forward.1} parent=0 // pred_fallthru
    _
  // Predicated region
  $region26: #{forward.1} parent=0 // pred_check
    _
  $region27: #{forward.1} parent=0 // pred_check_branch
    %25 = sbr.rel (0) target = $region29
  $region28: #{forward.1} parent=0 // pred_region
    _
  $region29: #{forward.1} parent=0 // pred_fallthru
    _
  %v27 = vld [vmem:[%s0] sm:$0x3f]
  %v28 = vld [vmem:[%s1] sm:$0x3]
  %v29 = vld [vmem:[%s2] sm:$0xf]
  %31 = vset.pattern.permute.xlu0 0
  %32 = vperm.xlu0 %31, %v29
  %v33 = vpop.permute.xlu0 %32
  %v36 = vcombine.high %v27, %v27
  %v38 = vunpack.c.l.s4 1983009808
  %v39 = vunpack.c.0.s8 %v38
  %v40 = vlaneseq
  %v41 = vshrl.u32 %v40, 7
  %v42 = vsub.s32 %v39, %v41
  %v43 = vrot.slane %v27, %v42
  %v45 = vunpack.c.l.s4 1983009808
  %v46 = vunpack.c.0.s8 %v45
  %v47 = vlaneseq
  %v48 = vshrl.u32 %v47, 7
  %v49 = vsub.s32 %v46, %v48
  %v50 = vrot.slane %v36, %v49
  %v51 = vcombine.high %v43, %v43
  %vm52 = vcmask 31744
  %v54 = vsel %vm52, %v28, 0
  %vm56 = vcmask 1041408
  %v58 = vsel %vm56, %v43, 0
  %v61 = vsel %vm56, %v51, 0
  %v64 = vsel %vm56, %v50, 0
  %66 = vmatprep.subr.bf16.mxu0 %v61
  %67 = vmatpush1.bf16.msra.mxu0 %v58
  %68 = vmatprep.subr.bf16.mxu0 0
  %69 = vmatpush1.bf16.msra.mxu0 0
  %70 = vmatprep.subr.bf16.mxu0 0
  %71 = vmatpush1.bf16.msra.mxu0 0
  %72 = vmatprep.subr.bf16.mxu0 0
  %73 = vmatpush1.bf16.msra.mxu0 0
  %74 = vmatprep.subr.bf16.mxu0 0
  %75 = vmatpush1.bf16.msra.mxu0 0
  %76 = vmatprep.subr.bf16.mxu0 0
  %77 = vmatpush1.bf16.msra.mxu0 0
  %78 = vmatprep.subr.bf16.mxu0 0
  %79 = vmatpush1.bf16.msra.mxu0 0
  %80 = vmatprep.subr.bf16.mxu0 0
  %81 = vmatpush1.bf16.msra.mxu0 0
  %82 = vmatprep.subr.bf16.mxu0 0
  %83 = vmatpush1.bf16.msra.mxu0 0
  %84 = vmatprep.subr.bf16.mxu0 0
  %85 = vmatpush1.bf16.msra.mxu0 0
  %86 = vmatprep.subr.bf16.mxu0 0
  %87 = vmatpush1.bf16.msra.mxu0 0
  %88 = vmatprep.subr.bf16.mxu0 0
  %89 = vmatpush1.bf16.msra.mxu0 0
  %90 = vmatprep.subr.bf16.mxu0 0
  %91 = vmatpush1.bf16.msra.mxu0 0
  %92 = vmatprep.subr.bf16.mxu0 0
  %93 = vmatpush1.bf16.msra.mxu0 0
  %94 = vmatprep.subr.bf16.mxu0 0
  %95 = vmatpush1.bf16.msra.mxu0 0
  %96 = vmatprep.subr.bf16.mxu0 0
  %97 = vmatpush1.bf16.msra.mxu0 0
  %98 = vmatprep.mubr.bf16.mxu0 0
  %99 = vmatmul.mubr.bf16.gmra.mrb[0].mxu0 %v54
  %v100 = vpop.f32.mrb[0].mxu0
  %v101 = vadd.f32 %v33, %v100
  %v102 = vpop.f32.mrb[0].mxu0
  %v103 = vadd.f32 %v33, %v102
  %v104 = vpop.f32.mrb[0].mxu0
  %v105 = vpop.f32.mrb[0].mxu0
  %106 = vdwg.mxu0
  %107 = vmatprep.subr.bf16.mxu0 0
  %108 = vmatpush1.bf16.msra.mxu0 %v64
  %109 = vmatprep.subr.bf16.mxu0 0
  %110 = vmatpush1.bf16.msra.mxu0 0
  %111 = vmatprep.subr.bf16.mxu0 0
  %112 = vmatpush1.bf16.msra.mxu0 0
  %113 = vmatprep.subr.bf16.mxu0 0
  %114 = vmatpush1.bf16.msra.mxu0 0
  %115 = vmatprep.subr.bf16.mxu0 0
  %116 = vmatpush1.bf16.msra.mxu0 0
  %117 = vmatprep.subr.bf16.mxu0 0
  %118 = vmatpush1.bf16.msra.mxu0 0
  %119 = vmatprep.subr.bf16.mxu0 0
  %120 = vmatpush1.bf16.msra.mxu0 0
  %121 = vmatprep.subr.bf16.mxu0 0
  %122 = vmatpush1.bf16.msra.mxu0 0
  %123 = vmatprep.subr.bf16.mxu0 0
  %124 = vmatpush1.bf16.msra.mxu0 0
  %125 = vmatprep.subr.bf16.mxu0 0
  %126 = vmatpush1.bf16.msra.mxu0 0
  %127 = vmatprep.subr.bf16.mxu0 0
  %128 = vmatpush1.bf16.msra.mxu0 0
  %129 = vmatprep.subr.bf16.mxu0 0
  %130 = vmatpush1.bf16.msra.mxu0 0
  %131 = vmatprep.subr.bf16.mxu0 0
  %132 = vmatpush1.bf16.msra.mxu0 0
  %133 = vmatprep.subr.bf16.mxu0 0
  %134 = vmatpush1.bf16.msra.mxu0 0
  %135 = vmatprep.subr.bf16.mxu0 0
  %136 = vmatpush1.bf16.msra.mxu0 0
  %137 = vmatprep.subr.bf16.mxu0 0
  %138 = vmatpush1.bf16.msra.mxu0 0
  %139 = vmatprep.mubr.bf16.mxu0 0
  %140 = vmatmul.mubr.bf16.gmra.mrb[0].mxu0 %v54
  %v141 = vpop.f32.mrb[0].mxu0
  %v142 = vadd.f32 %v33, %v141
  %v143 = vpop.f32.mrb[0].mxu0
  %v144 = vpop.f32.mrb[0].mxu0
  %v145 = vpop.f32.mrb[0].mxu0
  %146 = vdwg.mxu0
  %v147 = vmax.f32 %v101, 0.0
  %v148 = vmax.f32 %v103, 0.0
  %v149 = vmax.f32 %v142, 0.0
  %v150 = vld [vmem:[%s3] ss:$4 sm:$0x7]
  %v152 = vlaneseq
  %v153 = vshrl.u32 %v152, 7
  %v154 = vsub.s32 0, %v153
  %v155 = vrot.slane %v150, %v154
  %v156 = vlaneseq
  %v157 = vshrl.u32 %v156, 7
  %v158 = vsub.s32 1, %v157
  %v159 = vrot.slane %v150, %v158
  %v160 = vlaneseq
  %v161 = vshrl.u32 %v160, 7
  %v162 = vsub.s32 2, %v161
  %v163 = vrot.slane %v150, %v162
  %v167 = vmul.f32 %v147, %v155
  %v168 = vmul.f32 %v148, %v159
  %v169 = vmul.f32 %v149, %v163
  %v170 = vpack.c.bf16 %v167, %v167
  %v171 = vpack.c.bf16 %v168, %v168
  %v172 = vpack.c.bf16 %v169, %v169
  %176 = vrot.lane.b32.xlu0 %v170, 11
  %v177 = vpop.permute.xlu0 %176
  %178 = vrot.lane.b32.xlu0 %v171, 11
  %v179 = vpop.permute.xlu0 %178
  %180 = vrot.lane.b32.xlu0 %v172, 11
  %v181 = vpop.permute.xlu0 %180
  %vm182 = vcmask 89088
  %v183 = vsel %vm182, %v177, %v179
  %v184 = vsel %vm182, %v179, %v181
  %vm185 = vcmask 89088
  %v188 = vsel %vm185, 0, %v177
  %vm189 = vcmask 941056
  %v191 = vsel %vm189, %v184, 0
  %v194 = vrot.slane %v188, 6
  %v195 = vrot.slane %v183, 6
  %v196 = vrot.slane %v191, 6
  %197 = vrot.lane.b32.xlu0 %v194, 127
  %v198 = vpop.permute.xlu0 %197
  %199 = vrot.lane.b32.xlu0 %v195, 127
  %v200 = vpop.permute.xlu0 %199
  %201 = vrot.lane.b32.xlu0 %v196, 127
  %v202 = vpop.permute.xlu0 %201
  %vm203 = vcmask 1039360
  %v204 = vsel %vm203, %v198, %v200
  %v205 = vsel %vm203, %v200, %v202
  %v206 = vrot.slane %v188, 4
  %v207 = vrot.slane %v183, 4
  %v208 = vrot.slane %v191, 4
  %209 = vrot.lane.b32.xlu0 %v206, 126
  %v210 = vpop.permute.xlu0 %209
  %211 = vrot.lane.b32.xlu0 %v207, 126
  %v212 = vpop.permute.xlu0 %211
  %213 = vrot.lane.b32.xlu0 %v208, 126
  %v214 = vpop.permute.xlu0 %213
  %vm215 = vcmask 1031168
  %v216 = vsel %vm215, %v210, %v212
  %v217 = vsel %vm215, %v212, %v214
  %v218 = vrot.slane %v188, 2
  %v219 = vrot.slane %v183, 2
  %v220 = vrot.slane %v191, 2
  %221 = vrot.lane.b32.xlu0 %v218, 118
  %v222 = vpop.permute.xlu0 %221
  %223 = vrot.lane.b32.xlu0 %v219, 118
  %v224 = vpop.permute.xlu0 %223
  %225 = vrot.lane.b32.xlu0 %v220, 118
  %v226 = vpop.permute.xlu0 %225
  %vm227 = vcmask 965632
  %v228 = vsel %vm227, %v222, %v224
  %v229 = vsel %vm227, %v224, %v226
  %230 = vrot.lane.b32.xlu0 %v188, 117
  %v231 = vpop.permute.xlu0 %230
  %232 = vrot.lane.b32.xlu0 %v183, 117
  %v233 = vpop.permute.xlu0 %232
  %234 = vrot.lane.b32.xlu0 %v191, 117
  %v235 = vpop.permute.xlu0 %234
  %vm236 = vcmask 957440
  %v237 = vsel %vm236, %v231, %v233
  %v238 = vsel %vm236, %v233, %v235
  %239 = vrot.lane.b32.xlu0 %v194, 116
  %v240 = vpop.permute.xlu0 %239
  %241 = vrot.lane.b32.xlu0 %v195, 116
  %v242 = vpop.permute.xlu0 %241
  %243 = vrot.lane.b32.xlu0 %v196, 116
  %v244 = vpop.permute.xlu0 %243
  %vm245 = vcmask 949248
  %v246 = vsel %vm245, %v240, %v242
  %v247 = vsel %vm245, %v242, %v244
  %248 = vrot.lane.b32.xlu0 %v206, 108
  %v249 = vpop.permute.xlu0 %248
  %250 = vrot.lane.b32.xlu0 %v207, 108
  %v251 = vpop.permute.xlu0 %250
  %252 = vrot.lane.b32.xlu0 %v208, 108
  %v253 = vpop.permute.xlu0 %252
  %vm254 = vcmask 883712
  %v255 = vsel %vm254, %v249, %v251
  %v256 = vsel %vm254, %v251, %v253
  %257 = vrot.lane.b32.xlu0 %v218, 107
  %v258 = vpop.permute.xlu0 %257
  %259 = vrot.lane.b32.xlu0 %v219, 107
  %v260 = vpop.permute.xlu0 %259
  %261 = vrot.lane.b32.xlu0 %v220, 107
  %v262 = vpop.permute.xlu0 %261
  %vm263 = vcmask 875520
  %v264 = vsel %vm263, %v258, %v260
  %v265 = vsel %vm263, %v260, %v262
  %266 = vrot.lane.b32.xlu0 %v188, 106
  %v267 = vpop.permute.xlu0 %266
  %268 = vrot.lane.b32.xlu0 %v183, 106
  %v269 = vpop.permute.xlu0 %268
  %270 = vrot.lane.b32.xlu0 %v191, 106
  %v271 = vpop.permute.xlu0 %270
  %vm272 = vcmask 867328
  %v273 = vsel %vm272, %v267, %v269
  %v274 = vsel %vm272, %v269, %v271
  %v276 = vsel %vm56, %v188, %v204
  %v279 = vsel %vm56, %v183, %v205
  %v281 = vsel %vm56, %v191, %v202
  %vm282 = vcmask 1043456
  %v284 = vsel %vm282, %v276, %v216
  %v286 = vsel %vm282, %v279, %v217
  %v288 = vsel %vm282, %v281, %v214
  %vm289 = vcmask 1045504
  %v291 = vsel %vm289, %v284, %v228
  %v294 = vsel %vm289, %v286, %v229
  %v297 = vsel %vm289, %v288, %v226
  %v301 = vsel %vm56, %v237, %v246
  %v304 = vsel %vm56, %v238, %v247
  %v307 = vsel %vm56, %v235, %v244
  %v309 = vsel %vm282, %v301, %v255
  %v311 = vsel %vm282, %v304, %v256
  %v313 = vsel %vm282, %v307, %v253
  %v315 = vsel %vm289, %v309, %v264
  %v318 = vsel %vm289, %v311, %v265
  %v321 = vsel %vm289, %v313, %v262
  %v323 = vld [vmem:[%s1 + $0x4] sm:$0xf]
  %v324 = vld [vmem:[%s1 + $0x58] sm:$0xf]
  %v325 = vld [vmem:[%s2] sm:$0xff]
  %v326 = vld [vmem:[%s2 + $0x8] sm:$0xff]
  %328 = vset.pattern.permute.xlu0 1
  %329 = vperm.xlu0 %328, %v325
  %v330 = vpop.permute.xlu0 %329
  %333 = vset.pattern.permute.xlu0 1
  %334 = vperm.xlu0 %333, %v326
  %v335 = vpop.permute.xlu0 %334
  %v339 = vunpack.c.l.b16 %v323
  %v340 = vunpack.c.l.b16 %v324
  %v341 = vpack.c.b16 %v340, %v339
  %vm342 = vcmask 293888
  %v344 = vsel %vm342, %v341, 0
  %v347 = vsel %vm56, %v273, 0
  %v350 = vsel %vm56, %v274, 0
  %v353 = vsel %vm56, %v271, 0
  %355 = vmatprep.subr.bf16.mxu0 %v294
  %356 = vmatpush1.bf16.msra.mxu0 %v291
  %357 = vmatprep.subr.bf16.mxu0 %v318
  %358 = vmatpush1.bf16.msra.mxu0 %v315
  %359 = vmatprep.subr.bf16.mxu0 %v350
  %360 = vmatpush1.bf16.msra.mxu0 %v347
  %361 = vmatprep.subr.bf16.mxu0 0
  %362 = vmatpush1.bf16.msra.mxu0 0
  %363 = vmatprep.subr.bf16.mxu0 0
  %364 = vmatpush1.bf16.msra.mxu0 0
  %365 = vmatprep.subr.bf16.mxu0 0
  %366 = vmatpush1.bf16.msra.mxu0 0
  %367 = vmatprep.subr.bf16.mxu0 0
  %368 = vmatpush1.bf16.msra.mxu0 0
  %369 = vmatprep.subr.bf16.mxu0 0
  %370 = vmatpush1.bf16.msra.mxu0 0
  %371 = vmatprep.subr.bf16.mxu0 0
  %372 = vmatpush1.bf16.msra.mxu0 0
  %373 = vmatprep.subr.bf16.mxu0 0
  %374 = vmatpush1.bf16.msra.mxu0 0
  %375 = vmatprep.subr.bf16.mxu0 0
  %376 = vmatpush1.bf16.msra.mxu0 0
  %377 = vmatprep.subr.bf16.mxu0 0
  %378 = vmatpush1.bf16.msra.mxu0 0
  %379 = vmatprep.subr.bf16.mxu0 0
  %380 = vmatpush1.bf16.msra.mxu0 0
  %381 = vmatprep.subr.bf16.mxu0 0
  %382 = vmatpush1.bf16.msra.mxu0 0
  %383 = vmatprep.subr.bf16.mxu0 0
  %384 = vmatpush1.bf16.msra.mxu0 0
  %385 = vmatprep.subr.bf16.mxu0 0
  %386 = vmatpush1.bf16.msra.mxu0 0
  %387 = vmatprep.mubr.bf16.mxu0 0
  %388 = vmatmul.mubr.bf16.gmra.mrb[0].mxu0 %v344
  %v389 = vpop.f32.mrb[0].mxu0
  %v390 = vadd.f32 %v330, %v389
  %v391 = vpop.f32.mrb[0].mxu0
  %v392 = vadd.f32 %v330, %v391
  %v393 = vpop.f32.mrb[0].mxu0
  %v394 = vadd.f32 %v335, %v393
  %v395 = vpop.f32.mrb[0].mxu0
  %v396 = vadd.f32 %v335, %v395
  %397 = vdwg.mxu0
  %398 = vmatprep.subr.bf16.mxu0 0
  %399 = vmatpush1.bf16.msra.mxu0 %v297
  %400 = vmatprep.subr.bf16.mxu0 0
  %401 = vmatpush1.bf16.msra.mxu0 %v321
  %402 = vmatprep.subr.bf16.mxu0 0
  %403 = vmatpush1.bf16.msra.mxu0 %v353
  %404 = vmatprep.subr.bf16.mxu0 0
  %405 = vmatpush1.bf16.msra.mxu0 0
  %406 = vmatprep.subr.bf16.mxu0 0
  %407 = vmatpush1.bf16.msra.mxu0 0
  %408 = vmatprep.subr.bf16.mxu0 0
  %409 = vmatpush1.bf16.msra.mxu0 0
  %410 = vmatprep.subr.bf16.mxu0 0
  %411 = vmatpush1.bf16.msra.mxu0 0
  %412 = vmatprep.subr.bf16.mxu0 0
  %413 = vmatpush1.bf16.msra.mxu0 0
  %414 = vmatprep.subr.bf16.mxu0 0
  %415 = vmatpush1.bf16.msra.mxu0 0
  %416 = vmatprep.subr.bf16.mxu0 0
  %417 = vmatpush1.bf16.msra.mxu0 0
  %418 = vmatprep.subr.bf16.mxu0 0
  %419 = vmatpush1.bf16.msra.mxu0 0
  %420 = vmatprep.subr.bf16.mxu0 0
  %421 = vmatpush1.bf16.msra.mxu0 0
  %422 = vmatprep.subr.bf16.mxu0 0
  %423 = vmatpush1.bf16.msra.mxu0 0
  %424 = vmatprep.subr.bf16.mxu0 0
  %425 = vmatpush1.bf16.msra.mxu0 0
  %426 = vmatprep.subr.bf16.mxu0 0
  %427 = vmatpush1.bf16.msra.mxu0 0
  %428 = vmatprep.subr.bf16.mxu0 0
  %429 = vmatpush1.bf16.msra.mxu0 0
  %430 = vmatprep.mubr.bf16.mxu0 0
  %431 = vmatmul.mubr.bf16.gmra.mrb[0].mxu0 %v344
  %v432 = vpop.f32.mrb[0].mxu0
  %v433 = vadd.f32 %v330, %v432
  %v434 = vpop.f32.mrb[0].mxu0
  %v435 = vpop.f32.mrb[0].mxu0
  %v436 = vadd.f32 %v335, %v435
  %v437 = vpop.f32.mrb[0].mxu0
  %438 = vdwg.mxu0
  %v439 = vmax.f32 %v390, 0.0
  %v440 = vmax.f32 %v392, 0.0
  %v441 = vmax.f32 %v433, 0.0
  %v442 = vmax.f32 %v394, 0.0
  %v443 = vmax.f32 %v396, 0.0
  %v444 = vmax.f32 %v436, 0.0
  %v445 = vmul.f32 %v439, %v155
  %v446 = vmul.f32 %v440, %v159
  %v447 = vmul.f32 %v441, %v163
  %v448 = vmul.f32 %v442, %v155
  %v449 = vmul.f32 %v443, %v159
  %v450 = vmul.f32 %v444, %v163
  %v451 = vpack.c.bf16 %v448, %v445
  %v452 = vpack.c.bf16 %v449, %v446
  %v453 = vpack.c.bf16 %v450, %v447
  %457 = vrot.lane.b32.xlu0 %v451, 11
  %v458 = vpop.permute.xlu0 %457
  %459 = vrot.lane.b32.xlu0 %v452, 11
  %v460 = vpop.permute.xlu0 %459
  %461 = vrot.lane.b32.xlu0 %v453, 11
  %v462 = vpop.permute.xlu0 %461
  %v463 = vsel %vm182, %v458, %v460
  %v464 = vsel %vm182, %v460, %v462
  %v467 = vsel %vm185, 0, %v458
  %v470 = vsel %vm189, %v464, 0
  %474 = vrot.lane.b32.xlu0 %v467, 127
  %v475 = vpop.permute.xlu0 %474
  %476 = vrot.lane.b32.xlu0 %v463, 127
  %v477 = vpop.permute.xlu0 %476
  %478 = vrot.lane.b32.xlu0 %v470, 127
  %v479 = vpop.permute.xlu0 %478
  %v480 = vsel %vm203, %v475, %v477
  %v481 = vsel %vm203, %v477, %v479
  %485 = vrot.lane.b32.xlu0 %v467, 126
  %v486 = vpop.permute.xlu0 %485
  %487 = vrot.lane.b32.xlu0 %v463, 126
  %v488 = vpop.permute.xlu0 %487
  %489 = vrot.lane.b32.xlu0 %v470, 126
  %v490 = vpop.permute.xlu0 %489
  %v491 = vsel %vm215, %v486, %v488
  %v492 = vsel %vm215, %v488, %v490
  %496 = vrot.lane.b32.xlu0 %v467, 118
  %v497 = vpop.permute.xlu0 %496
  %498 = vrot.lane.b32.xlu0 %v463, 118
  %v499 = vpop.permute.xlu0 %498
  %500 = vrot.lane.b32.xlu0 %v470, 118
  %v501 = vpop.permute.xlu0 %500
  %v502 = vsel %vm227, %v497, %v499
  %v503 = vsel %vm227, %v499, %v501
  %507 = vrot.lane.b32.xlu0 %v467, 117
  %v508 = vpop.permute.xlu0 %507
  %509 = vrot.lane.b32.xlu0 %v463, 117
  %v510 = vpop.permute.xlu0 %509
  %511 = vrot.lane.b32.xlu0 %v470, 117
  %v512 = vpop.permute.xlu0 %511
  %v513 = vsel %vm236, %v508, %v510
  %v514 = vsel %vm236, %v510, %v512
  %518 = vrot.lane.b32.xlu0 %v467, 116
  %v519 = vpop.permute.xlu0 %518
  %520 = vrot.lane.b32.xlu0 %v463, 116
  %v521 = vpop.permute.xlu0 %520
  %522 = vrot.lane.b32.xlu0 %v470, 116
  %v523 = vpop.permute.xlu0 %522
  %v524 = vsel %vm245, %v519, %v521
  %v525 = vsel %vm245, %v521, %v523
  %529 = vrot.lane.b32.xlu0 %v467, 108
  %v530 = vpop.permute.xlu0 %529
  %531 = vrot.lane.b32.xlu0 %v463, 108
  %v532 = vpop.permute.xlu0 %531
  %533 = vrot.lane.b32.xlu0 %v470, 108
  %v534 = vpop.permute.xlu0 %533
  %v535 = vsel %vm254, %v530, %v532
  %v536 = vsel %vm254, %v532, %v534
  %540 = vrot.lane.b32.xlu0 %v467, 107
  %v541 = vpop.permute.xlu0 %540
  %542 = vrot.lane.b32.xlu0 %v463, 107
  %v543 = vpop.permute.xlu0 %542
  %544 = vrot.lane.b32.xlu0 %v470, 107
  %v545 = vpop.permute.xlu0 %544
  %v546 = vsel %vm263, %v541, %v543
  %v547 = vsel %vm263, %v543, %v545
  %551 = vrot.lane.b32.xlu0 %v467, 106
  %v552 = vpop.permute.xlu0 %551
  %553 = vrot.lane.b32.xlu0 %v463, 106
  %v554 = vpop.permute.xlu0 %553
  %555 = vrot.lane.b32.xlu0 %v470, 106
  %v556 = vpop.permute.xlu0 %555
  %v557 = vsel %vm272, %v552, %v554
  %v558 = vsel %vm272, %v554, %v556
  %v562 = vld [vmem:[%s1 + $0x8] sm:$0xff]
  %v563 = vld [vmem:[%s1 + $0x5c] sm:$0xff]
  %564 = vset.pattern.permute.xlu0 2
  %565 = vperm.xlu0 %564, %v325
  %v566 = vpop.permute.xlu0 %565
  %568 = vset.pattern.permute.xlu0 2
  %569 = vperm.xlu0 %568, %v326
  %v570 = vpop.permute.xlu0 %569
  %v574 = vunpack.c.l.b16 %v562
  %v575 = vunpack.c.h.b16 %v562
  %v576 = vunpack.c.l.b16 %v563
  %v577 = vunpack.c.h.b16 %v563
  %v578 = vpack.c.b16 %v576, %v574
  %v579 = vpack.c.b16 %v577, %v575
  %vm581 = vcmask 130048
  %v583 = vsel %vm581, %v579, 0
  %585 = vmatprep.subr.bf16.mxu0 %v463
  %586 = vmatpush1.bf16.msra.mxu0 %v467
  %587 = vmatprep.subr.bf16.mxu0 %v481
  %588 = vmatpush1.bf16.msra.mxu0 %v480
  %589 = vmatprep.subr.bf16.mxu0 %v492
  %590 = vmatpush1.bf16.msra.mxu0 %v491
  %591 = vmatprep.subr.bf16.mxu0 %v503
  %592 = vmatpush1.bf16.msra.mxu0 %v502
  %593 = vmatprep.subr.bf16.mxu0 %v514
  %594 = vmatpush1.bf16.msra.mxu0 %v513
  %595 = vmatprep.subr.bf16.mxu0 %v525
  %596 = vmatpush1.bf16.msra.mxu0 %v524
  %597 = vmatprep.subr.bf16.mxu0 %v536
  %598 = vmatpush1.bf16.msra.mxu0 %v535
  %599 = vmatprep.subr.bf16.mxu0 %v547
  %600 = vmatpush1.bf16.msra.mxu0 %v546
  %601 = vmatprep.subr.bf16.mxu0 %v558
  %602 = vmatpush1.bf16.msra.mxu0 %v557
  %603 = vmatprep.subr.bf16.mxu0 0
  %604 = vmatpush1.bf16.msra.mxu0 0
  %605 = vmatprep.subr.bf16.mxu0 0
  %606 = vmatpush1.bf16.msra.mxu0 0
  %607 = vmatprep.subr.bf16.mxu0 0
  %608 = vmatpush1.bf16.msra.mxu0 0
  %609 = vmatprep.subr.bf16.mxu0 0
  %610 = vmatpush1.bf16.msra.mxu0 0
  %611 = vmatprep.subr.bf16.mxu0 0
  %612 = vmatpush1.bf16.msra.mxu0 0
  %613 = vmatprep.subr.bf16.mxu0 0
  %614 = vmatpush1.bf16.msra.mxu0 0
  %615 = vmatprep.subr.bf16.mxu0 0
  %616 = vmatpush1.bf16.msra.mxu0 0
  %617 = vmatprep.mubr.bf16.mxu0 %v583
  %618 = vmatmul.mubr.bf16.gmra.mrb[0].mxu0 %v578
  %v619 = vpop.f32.mrb[0].mxu0
  %v620 = vadd.f32 %v566, %v619
  %v621 = vpop.f32.mrb[0].mxu0
  %v622 = vadd.f32 %v566, %v621
  %v623 = vpop.f32.mrb[0].mxu0
  %v624 = vadd.f32 %v570, %v623
  %v625 = vpop.f32.mrb[0].mxu0
  %v626 = vadd.f32 %v570, %v625
  %627 = vdwg.mxu0
  %628 = vmatprep.subr.bf16.mxu0 0
  %629 = vmatpush1.bf16.msra.mxu0 %v470
  %630 = vmatprep.subr.bf16.mxu0 0
  %631 = vmatpush1.bf16.msra.mxu0 %v479
  %632 = vmatprep.subr.bf16.mxu0 0
  %633 = vmatpush1.bf16.msra.mxu0 %v490
  %634 = vmatprep.subr.bf16.mxu0 0
  %635 = vmatpush1.bf16.msra.mxu0 %v501
  %636 = vmatprep.subr.bf16.mxu0 0
  %637 = vmatpush1.bf16.msra.mxu0 %v512
  %638 = vmatprep.subr.bf16.mxu0 0
  %639 = vmatpush1.bf16.msra.mxu0 %v523
  %640 = vmatprep.subr.bf16.mxu0 0
  %641 = vmatpush1.bf16.msra.mxu0 %v534
  %642 = vmatprep.subr.bf16.mxu0 0
  %643 = vmatpush1.bf16.msra.mxu0 %v545
  %644 = vmatprep.subr.bf16.mxu0 0
  %645 = vmatpush1.bf16.msra.mxu0 %v556
  %646 = vmatprep.subr.bf16.mxu0 0
  %647 = vmatpush1.bf16.msra.mxu0 0
  %648 = vmatprep.subr.bf16.mxu0 0
  %649 = vmatpush1.bf16.msra.mxu0 0
  %650 = vmatprep.subr.bf16.mxu0 0
  %651 = vmatpush1.bf16.msra.mxu0 0
  %652 = vmatprep.subr.bf16.mxu0 0
  %653 = vmatpush1.bf16.msra.mxu0 0
  %654 = vmatprep.subr.bf16.mxu0 0
  %655 = vmatpush1.bf16.msra.mxu0 0
  %656 = vmatprep.subr.bf16.mxu0 0
  %657 = vmatpush1.bf16.msra.mxu0 0
  %658 = vmatprep.subr.bf16.mxu0 0
  %659 = vmatpush1.bf16.msra.mxu0 0
  %660 = vmatprep.mubr.bf16.mxu0 %v583
  %661 = vmatmul.mubr.bf16.gmra.mrb[0].mxu0 %v578
  %v662 = vpop.f32.mrb[0].mxu0
  %v663 = vadd.f32 %v566, %v662
  %v664 = vpop.f32.mrb[0].mxu0
  %v665 = vpop.f32.mrb[0].mxu0
  %v666 = vadd.f32 %v570, %v665
  %v667 = vpop.f32.mrb[0].mxu0
  %668 = vdwg.mxu0
  %v669 = vmax.f32 %v620, 0.0
  %v670 = vmax.f32 %v622, 0.0
  %v671 = vmax.f32 %v663, 0.0
  %v672 = vmax.f32 %v624, 0.0
  %v673 = vmax.f32 %v626, 0.0
  %v674 = vmax.f32 %v666, 0.0
  %v675 = vmul.f32 %v669, %v155
  %v676 = vmul.f32 %v670, %v159
  %v677 = vmul.f32 %v671, %v163
  %v678 = vmul.f32 %v672, %v155
  %v679 = vmul.f32 %v673, %v159
  %v680 = vmul.f32 %v674, %v163
  %v681 = vpack.c.bf16 %v678, %v675
  %v682 = vpack.c.bf16 %v679, %v676
  %v683 = vpack.c.bf16 %v680, %v677
  %687 = vrot.lane.b32.xlu0 %v681, 11
  %v688 = vpop.permute.xlu0 %687
  %689 = vrot.lane.b32.xlu0 %v682, 11
  %v690 = vpop.permute.xlu0 %689
  %691 = vrot.lane.b32.xlu0 %v683, 11
  %v692 = vpop.permute.xlu0 %691
  %v693 = vsel %vm182, %v688, %v690
  %v694 = vsel %vm182, %v690, %v692
  %v697 = vsel %vm185, 0, %v688
  %v700 = vsel %vm189, %v694, 0
  %704 = vrot.lane.b32.xlu0 %v697, 127
  %v705 = vpop.permute.xlu0 %704
  %706 = vrot.lane.b32.xlu0 %v693, 127
  %v707 = vpop.permute.xlu0 %706
  %708 = vrot.lane.b32.xlu0 %v700, 127
  %v709 = vpop.permute.xlu0 %708
  %v710 = vsel %vm203, %v705, %v707
  %v711 = vsel %vm203, %v707, %v709
  %715 = vrot.lane.b32.xlu0 %v697, 126
  %v716 = vpop.permute.xlu0 %715
  %717 = vrot.lane.b32.xlu0 %v693, 126
  %v718 = vpop.permute.xlu0 %717
  %719 = vrot.lane.b32.xlu0 %v700, 126
  %v720 = vpop.permute.xlu0 %719
  %v721 = vsel %vm215, %v716, %v718
  %v722 = vsel %vm215, %v718, %v720
  %726 = vrot.lane.b32.xlu0 %v697, 118
  %v727 = vpop.permute.xlu0 %726
  %728 = vrot.lane.b32.xlu0 %v693, 118
  %v729 = vpop.permute.xlu0 %728
  %730 = vrot.lane.b32.xlu0 %v700, 118
  %v731 = vpop.permute.xlu0 %730
  %v732 = vsel %vm227, %v727, %v729
  %v733 = vsel %vm227, %v729, %v731
  %737 = vrot.lane.b32.xlu0 %v697, 117
  %v738 = vpop.permute.xlu0 %737
  %739 = vrot.lane.b32.xlu0 %v693, 117
  %v740 = vpop.permute.xlu0 %739
  %741 = vrot.lane.b32.xlu0 %v700, 117
  %v742 = vpop.permute.xlu0 %741
  %v743 = vsel %vm236, %v738, %v740
  %v744 = vsel %vm236, %v740, %v742
  %748 = vrot.lane.b32.xlu0 %v697, 116
  %v749 = vpop.permute.xlu0 %748
  %750 = vrot.lane.b32.xlu0 %v693, 116
  %v751 = vpop.permute.xlu0 %750
  %752 = vrot.lane.b32.xlu0 %v700, 116
  %v753 = vpop.permute.xlu0 %752
  %v754 = vsel %vm245, %v749, %v751
  %v755 = vsel %vm245, %v751, %v753
  %759 = vrot.lane.b32.xlu0 %v697, 108
  %v760 = vpop.permute.xlu0 %759
  %761 = vrot.lane.b32.xlu0 %v693, 108
  %v762 = vpop.permute.xlu0 %761
  %763 = vrot.lane.b32.xlu0 %v700, 108
  %v764 = vpop.permute.xlu0 %763
  %v765 = vsel %vm254, %v760, %v762
  %v766 = vsel %vm254, %v762, %v764
  %770 = vrot.lane.b32.xlu0 %v697, 107
  %v771 = vpop.permute.xlu0 %770
  %772 = vrot.lane.b32.xlu0 %v693, 107
  %v773 = vpop.permute.xlu0 %772
  %774 = vrot.lane.b32.xlu0 %v700, 107
  %v775 = vpop.permute.xlu0 %774
  %v776 = vsel %vm263, %v771, %v773
  %v777 = vsel %vm263, %v773, %v775
  %781 = vrot.lane.b32.xlu0 %v697, 106
  %v782 = vpop.permute.xlu0 %781
  %783 = vrot.lane.b32.xlu0 %v693, 106
  %v784 = vpop.permute.xlu0 %783
  %785 = vrot.lane.b32.xlu0 %v700, 106
  %v786 = vpop.permute.xlu0 %785
  %v787 = vsel %vm272, %v782, %v784
  %v788 = vsel %vm272, %v784, %v786
  %v792 = vld [vmem:[%s1 + $0x10] sm:$0xff]
  %v793 = vld [vmem:[%s1 + $0x64] sm:$0xff]
  %794 = vset.pattern.permute.xlu0 3
  %795 = vperm.xlu0 %794, %v325
  %v796 = vpop.permute.xlu0 %795
  %798 = vset.pattern.permute.xlu0 3
  %799 = vperm.xlu0 %798, %v326
  %v800 = vpop.permute.xlu0 %799
  %v804 = vunpack.c.l.b16 %v792
  %v805 = vunpack.c.h.b16 %v792
  %v806 = vunpack.c.l.b16 %v793
  %v807 = vunpack.c.h.b16 %v793
  %v808 = vpack.c.b16 %v806, %v804
  %v809 = vpack.c.b16 %v807, %v805
  %v812 = vsel %vm581, %v809, 0
  %814 = vmatprep.subr.bf16.mxu0 %v693
  %815 = vmatpush1.bf16.msra.mxu0 %v697
  %816 = vmatprep.subr.bf16.mxu0 %v711
  %817 = vmatpush1.bf16.msra.mxu0 %v710
  %818 = vmatprep.subr.bf16.mxu0 %v722
  %819 = vmatpush1.bf16.msra.mxu0 %v721
  %820 = vmatprep.subr.bf16.mxu0 %v733
  %821 = vmatpush1.bf16.msra.mxu0 %v732
  %822 = vmatprep.subr.bf16.mxu0 %v744
  %823 = vmatpush1.bf16.msra.mxu0 %v743
  %824 = vmatprep.subr.bf16.mxu0 %v755
  %825 = vmatpush1.bf16.msra.mxu0 %v754
  %826 = vmatprep.subr.bf16.mxu0 %v766
  %827 = vmatpush1.bf16.msra.mxu0 %v765
  %828 = vmatprep.subr.bf16.mxu0 %v777
  %829 = vmatpush1.bf16.msra.mxu0 %v776
  %830 = vmatprep.subr.bf16.mxu0 %v788
  %831 = vmatpush1.bf16.msra.mxu0 %v787
  %832 = vmatprep.subr.bf16.mxu0 0
  %833 = vmatpush1.bf16.msra.mxu0 0
  %834 = vmatprep.subr.bf16.mxu0 0
  %835 = vmatpush1.bf16.msra.mxu0 0
  %836 = vmatprep.subr.bf16.mxu0 0
  %837 = vmatpush1.bf16.msra.mxu0 0
  %838 = vmatprep.subr.bf16.mxu0 0
  %839 = vmatpush1.bf16.msra.mxu0 0
  %840 = vmatprep.subr.bf16.mxu0 0
  %841 = vmatpush1.bf16.msra.mxu0 0
  %842 = vmatprep.subr.bf16.mxu0 0
  %843 = vmatpush1.bf16.msra.mxu0 0
  %844 = vmatprep.subr.bf16.mxu0 0
  %845 = vmatpush1.bf16.msra.mxu0 0
  %846 = vmatprep.mubr.bf16.mxu0 %v812
  %847 = vmatmul.mubr.bf16.gmra.mrb[0].mxu0 %v808
  %v848 = vpop.f32.mrb[0].mxu0
  %v849 = vadd.f32 %v796, %v848
  %v850 = vpop.f32.mrb[0].mxu0
  %v851 = vadd.f32 %v796, %v850
  %v852 = vpop.f32.mrb[0].mxu0
  %v853 = vadd.f32 %v800, %v852
  %v854 = vpop.f32.mrb[0].mxu0
  %v855 = vadd.f32 %v800, %v854
  %856 = vdwg.mxu0
  %857 = vmatprep.subr.bf16.mxu0 0
  %858 = vmatpush1.bf16.msra.mxu0 %v700
  %859 = vmatprep.subr.bf16.mxu0 0
  %860 = vmatpush1.bf16.msra.mxu0 %v709
  %861 = vmatprep.subr.bf16.mxu0 0
  %862 = vmatpush1.bf16.msra.mxu0 %v720
  %863 = vmatprep.subr.bf16.mxu0 0
  %864 = vmatpush1.bf16.msra.mxu0 %v731
  %865 = vmatprep.subr.bf16.mxu0 0
  %866 = vmatpush1.bf16.msra.mxu0 %v742
  %867 = vmatprep.subr.bf16.mxu0 0
  %868 = vmatpush1.bf16.msra.mxu0 %v753
  %869 = vmatprep.subr.bf16.mxu0 0
  %870 = vmatpush1.bf16.msra.mxu0 %v764
  %871 = vmatprep.subr.bf16.mxu0 0
  %872 = vmatpush1.bf16.msra.mxu0 %v775
  %873 = vmatprep.subr.bf16.mxu0 0
  %874 = vmatpush1.bf16.msra.mxu0 %v786
  %875 = vmatprep.subr.bf16.mxu0 0
  %876 = vmatpush1.bf16.msra.mxu0 0
  %877 = vmatprep.subr.bf16.mxu0 0
  %878 = vmatpush1.bf16.msra.mxu0 0
  %879 = vmatprep.subr.bf16.mxu0 0
  %880 = vmatpush1.bf16.msra.mxu0 0
  %881 = vmatprep.subr.bf16.mxu0 0
  %882 = vmatpush1.bf16.msra.mxu0 0
  %883 = vmatprep.subr.bf16.mxu0 0
  %884 = vmatpush1.bf16.msra.mxu0 0
  %885 = vmatprep.subr.bf16.mxu0 0
  %886 = vmatpush1.bf16.msra.mxu0 0
  %887 = vmatprep.subr.bf16.mxu0 0
  %888 = vmatpush1.bf16.msra.mxu0 0
  %889 = vmatprep.mubr.bf16.mxu0 %v812
  %890 = vmatmul.mubr.bf16.gmra.mrb[0].mxu0 %v808
  %v891 = vpop.f32.mrb[0].mxu0
  %v892 = vadd.f32 %v796, %v891
  %v893 = vpop.f32.mrb[0].mxu0
  %v894 = vpop.f32.mrb[0].mxu0
  %v895 = vadd.f32 %v800, %v894
  %v896 = vpop.f32.mrb[0].mxu0
  %897 = vdwg.mxu0
  %v898 = vadd.f32 %v849, %v445
  %v899 = vadd.f32 %v851, %v446
  %v900 = vadd.f32 %v892, %v447
  %v901 = vadd.f32 %v853, %v448
  %v902 = vadd.f32 %v855, %v449
  %v903 = vadd.f32 %v895, %v450
  %v904 = vmax.f32 %v898, 0.0
  %v905 = vmax.f32 %v899, 0.0
  %v906 = vmax.f32 %v900, 0.0
  %v907 = vmax.f32 %v901, 0.0
  %v908 = vmax.f32 %v902, 0.0
  %v909 = vmax.f32 %v903, 0.0
  %v910 = vmul.f32 %v904, %v155
  %v911 = vmul.f32 %v905, %v159
  %v912 = vmul.f32 %v906, %v163
  %v913 = vmul.f32 %v907, %v155
  %v914 = vmul.f32 %v908, %v159
  %v915 = vmul.f32 %v909, %v163
  %v916 = vpack.c.bf16 %v913, %v910
  %v917 = vpack.c.bf16 %v914, %v911
  %v918 = vpack.c.bf16 %v915, %v912
  %922 = vrot.lane.b32.xlu0 %v916, 11
  %v923 = vpop.permute.xlu0 %922
  %924 = vrot.lane.b32.xlu0 %v917, 11
  %v925 = vpop.permute.xlu0 %924
  %926 = vrot.lane.b32.xlu0 %v918, 11
  %v927 = vpop.permute.xlu0 %926
  %v928 = vsel %vm182, %v923, %v925
  %v929 = vsel %vm182, %v925, %v927
  %v932 = vsel %vm185, 0, %v923
  %v935 = vsel %vm189, %v929, 0
  %939 = vrot.lane.b32.xlu0 %v932, 127
  %v940 = vpop.permute.xlu0 %939
  %941 = vrot.lane.b32.xlu0 %v928, 127
  %v942 = vpop.permute.xlu0 %941
  %943 = vrot.lane.b32.xlu0 %v935, 127
  %v944 = vpop.permute.xlu0 %943
  %v945 = vsel %vm203, %v940, %v942
  %v946 = vsel %vm203, %v942, %v944
  %950 = vrot.lane.b32.xlu0 %v932, 126
  %v951 = vpop.permute.xlu0 %950
  %952 = vrot.lane.b32.xlu0 %v928, 126
  %v953 = vpop.permute.xlu0 %952
  %954 = vrot.lane.b32.xlu0 %v935, 126
  %v955 = vpop.permute.xlu0 %954
  %v956 = vsel %vm215, %v951, %v953
  %v957 = vsel %vm215, %v953, %v955
  %961 = vrot.lane.b32.xlu0 %v932, 118
  %v962 = vpop.permute.xlu0 %961
  %963 = vrot.lane.b32.xlu0 %v928, 118
  %v964 = vpop.permute.xlu0 %963
  %965 = vrot.lane.b32.xlu0 %v935, 118
  %v966 = vpop.permute.xlu0 %965
  %v967 = vsel %vm227, %v962, %v964
  %v968 = vsel %vm227, %v964, %v966
  %972 = vrot.lane.b32.xlu0 %v932, 117
  %v973 = vpop.permute.xlu0 %972
  %974 = vrot.lane.b32.xlu0 %v928, 117
  %v975 = vpop.permute.xlu0 %974
  %976 = vrot.lane.b32.xlu0 %v935, 117
  %v977 = vpop.permute.xlu0 %976
  %v978 = vsel %vm236, %v973, %v975
  %v979 = vsel %vm236, %v975, %v977
  %983 = vrot.lane.b32.xlu0 %v932, 116
  %v984 = vpop.permute.xlu0 %983
  %985 = vrot.lane.b32.xlu0 %v928, 116
  %v986 = vpop.permute.xlu0 %985
  %987 = vrot.lane.b32.xlu0 %v935, 116
  %v988 = vpop.permute.xlu0 %987
  %v989 = vsel %vm245, %v984, %v986
  %v990 = vsel %vm245, %v986, %v988
  %994 = vrot.lane.b32.xlu0 %v932, 108
  %v995 = vpop.permute.xlu0 %994
  %996 = vrot.lane.b32.xlu0 %v928, 108
  %v997 = vpop.permute.xlu0 %996
  %998 = vrot.lane.b32.xlu0 %v935, 108
  %v999 = vpop.permute.xlu0 %998
  %v1000 = vsel %vm254, %v995, %v997
  %v1001 = vsel %vm254, %v997, %v999
  %1005 = vrot.lane.b32.xlu0 %v932, 107
  %v1006 = vpop.permute.xlu0 %1005
  %1007 = vrot.lane.b32.xlu0 %v928, 107
  %v1008 = vpop.permute.xlu0 %1007
  %1009 = vrot.lane.b32.xlu0 %v935, 107
  %v1010 = vpop.permute.xlu0 %1009
  %v1011 = vsel %vm263, %v1006, %v1008
  %v1012 = vsel %vm263, %v1008, %v1010
  %1016 = vrot.lane.b32.xlu0 %v932, 106
  %v1017 = vpop.permute.xlu0 %1016
  %1018 = vrot.lane.b32.xlu0 %v928, 106
  %v1019 = vpop.permute.xlu0 %1018
  %1020 = vrot.lane.b32.xlu0 %v935, 106
  %v1021 = vpop.permute.xlu0 %1020
  %v1022 = vsel %vm272, %v1017, %v1019
  %v1023 = vsel %vm272, %v1019, %v1021
  %v1027 = vld [vmem:[%s1 + $0x18] sm:$0xff]
  %v1028 = vld [vmem:[%s1 + $0x6c] sm:$0xff]
  %v1029 = vld [vmem:[%s1 + $0xc0] sm:$0xff]
  %v1030 = vld [vmem:[%s1 + $0x114] sm:$0xff]
  %v1031 = vld [vmem:[%s2] sm:$0xff]
  %v1032 = vld [vmem:[%s2 + $0x8] sm:$0xff]
  %v1033 = vld [vmem:[%s2 + $0x10] sm:$0xff]
  %v1034 = vld [vmem:[%s2 + $0x18] sm:$0xff]
  %1036 = vset.pattern.permute.xlu0 4
  %1037 = vperm.xlu0 %1036, %v1031
  %v1038 = vpop.permute.xlu0 %1037
  %1041 = vset.pattern.permute.xlu0 4
  %1042 = vperm.xlu0 %1041, %v1032
  %v1043 = vpop.permute.xlu0 %1042
  %1046 = vset.pattern.permute.xlu0 4
  %1047 = vperm.xlu0 %1046, %v1033
  %v1048 = vpop.permute.xlu0 %1047
  %1051 = vset.pattern.permute.xlu0 4
  %1052 = vperm.xlu0 %1051, %v1034
  %v1053 = vpop.permute.xlu0 %1052
  %v1059 = vunpack.c.l.b16 %v1027
  %v1060 = vunpack.c.h.b16 %v1027
  %v1061 = vunpack.c.l.b16 %v1028
  %v1062 = vunpack.c.h.b16 %v1028
  %v1063 = vunpack.c.l.b16 %v1029
  %v1064 = vunpack.c.h.b16 %v1029
  %v1065 = vunpack.c.l.b16 %v1030
  %v1066 = vunpack.c.h.b16 %v1030
  %v1067 = vpack.c.b16 %v1061, %v1059
  %v1068 = vpack.c.b16 %v1062, %v1060
  %v1069 = vpack.c.b16 %v1065, %v1063
  %v1070 = vpack.c.b16 %v1066, %v1064
  %v1074 = vsel %vm581, %v1068, 0
  %v1077 = vsel %vm581, %v1070, 0
  %1079 = vmatprep.subr.bf16.mxu0 %v928
  %1080 = vmatpush1.bf16.msra.mxu0 %v932
  %1081 = vmatprep.subr.bf16.mxu0 %v946
  %1082 = vmatpush1.bf16.msra.mxu0 %v945
  %1083 = vmatprep.subr.bf16.mxu0 %v957
  %1084 = vmatpush1.bf16.msra.mxu0 %v956
  %1085 = vmatprep.subr.bf16.mxu0 %v968
  %1086 = vmatpush1.bf16.msra.mxu0 %v967
  %1087 = vmatprep.subr.bf16.mxu0 %v979
  %1088 = vmatpush1.bf16.msra.mxu0 %v978
  %1089 = vmatprep.subr.bf16.mxu0 %v990
  %1090 = vmatpush1.bf16.msra.mxu0 %v989
  %1091 = vmatprep.subr.bf16.mxu0 %v1001
  %1092 = vmatpush1.bf16.msra.mxu0 %v1000
  %1093 = vmatprep.subr.bf16.mxu0 %v1012
  %1094 = vmatpush1.bf16.msra.mxu0 %v1011
  %1095 = vmatprep.subr.bf16.mxu0 %v1023
  %1096 = vmatpush1.bf16.msra.mxu0 %v1022
  %1097 = vmatprep.subr.bf16.mxu0 0
  %1098 = vmatpush1.bf16.msra.mxu0 0
  %1099 = vmatprep.subr.bf16.mxu0 0
  %1100 = vmatpush1.bf16.msra.mxu0 0
  %1101 = vmatprep.subr.bf16.mxu0 0
  %1102 = vmatpush1.bf16.msra.mxu0 0
  %1103 = vmatprep.subr.bf16.mxu0 0
  %1104 = vmatpush1.bf16.msra.mxu0 0
  %1105 = vmatprep.subr.bf16.mxu0 0
  %1106 = vmatpush1.bf16.msra.mxu0 0
  %1107 = vmatprep.subr.bf16.mxu0 0
  %1108 = vmatpush1.bf16.msra.mxu0 0
  %1109 = vmatprep.subr.bf16.mxu0 0
  %1110 = vmatpush1.bf16.msra.mxu0 0
  %1111 = vmatprep.mubr.bf16.mxu0 %v1074
  %1112 = vmatmul.mubr.bf16.gmra.mrb[0].mxu0 %v1067
  %v1113 = vpop.f32.mrb[0].mxu0
  %v1114 = vadd.f32 %v1038, %v1113
  %v1115 = vpop.f32.mrb[0].mxu0
  %v1116 = vadd.f32 %v1038, %v1115
  %v1117 = vpop.f32.mrb[0].mxu0
  %v1118 = vadd.f32 %v1043, %v1117
  %v1119 = vpop.f32.mrb[0].mxu0
  %v1120 = vadd.f32 %v1043, %v1119
  %1121 = vmatprep.mubr.bf16.mxu0 %v1077
  %1122 = vmatmul.mubr.bf16.gmra.mrb[0].mxu0 %v1069
  %v1123 = vpop.f32.mrb[0].mxu0
  %v1124 = vadd.f32 %v1048, %v1123
  %v1125 = vpop.f32.mrb[0].mxu0
  %v1126 = vadd.f32 %v1048, %v1125
  %v1127 = vpop.f32.mrb[0].mxu0
  %v1128 = vadd.f32 %v1053, %v1127
  %v1129 = vpop.f32.mrb[0].mxu0
  %v1130 = vadd.f32 %v1053, %v1129
  %1131 = vdwg.mxu0
  %1132 = vmatprep.subr.bf16.mxu0 0
  %1133 = vmatpush1.bf16.msra.mxu0 %v935
  %1134 = vmatprep.subr.bf16.mxu0 0
  %1135 = vmatpush1.bf16.msra.mxu0 %v944
  %1136 = vmatprep.subr.bf16.mxu0 0
  %1137 = vmatpush1.bf16.msra.mxu0 %v955
  %1138 = vmatprep.subr.bf16.mxu0 0
  %1139 = vmatpush1.bf16.msra.mxu0 %v966
  %1140 = vmatprep.subr.bf16.mxu0 0
  %1141 = vmatpush1.bf16.msra.mxu0 %v977
  %1142 = vmatprep.subr.bf16.mxu0 0
  %1143 = vmatpush1.bf16.msra.mxu0 %v988
  %1144 = vmatprep.subr.bf16.mxu0 0
  %1145 = vmatpush1.bf16.msra.mxu0 %v999
  %1146 = vmatprep.subr.bf16.mxu0 0
  %1147 = vmatpush1.bf16.msra.mxu0 %v1010
  %1148 = vmatprep.subr.bf16.mxu0 0
  %1149 = vmatpush1.bf16.msra.mxu0 %v1021
  %1150 = vmatprep.subr.bf16.mxu0 0
  %1151 = vmatpush1.bf16.msra.mxu0 0
  %1152 = vmatprep.subr.bf16.mxu0 0
  %1153 = vmatpush1.bf16.msra.mxu0 0
  %1154 = vmatprep.subr.bf16.mxu0 0
  %1155 = vmatpush1.bf16.msra.mxu0 0
  %1156 = vmatprep.subr.bf16.mxu0 0
  %1157 = vmatpush1.bf16.msra.mxu0 0
  %1158 = vmatprep.subr.bf16.mxu0 0
  %1159 = vmatpush1.bf16.msra.mxu0 0
  %1160 = vmatprep.subr.bf16.mxu0 0
  %1161 = vmatpush1.bf16.msra.mxu0 0
  %1162 = vmatprep.subr.bf16.mxu0 0
  %1163 = vmatpush1.bf16.msra.mxu0 0
  %1164 = vmatprep.mubr.bf16.mxu0 %v1074
  %1165 = vmatmul.mubr.bf16.gmra.mrb[0].mxu0 %v1067
  %v1166 = vpop.f32.mrb[0].mxu0
  %v1167 = vadd.f32 %v1038, %v1166
  %v1168 = vpop.f32.mrb[0].mxu0
  %v1169 = vpop.f32.mrb[0].mxu0
  %v1170 = vadd.f32 %v1043, %v1169
  %v1171 = vpop.f32.mrb[0].mxu0
  %1172 = vmatprep.mubr.bf16.mxu0 %v1077
  %1173 = vmatmul.mubr.bf16.gmra.mrb[0].mxu0 %v1069
  %v1174 = vpop.f32.mrb[0].mxu0
  %v1175 = vadd.f32 %v1048, %v1174
  %v1176 = vpop.f32.mrb[0].mxu0
  %v1177 = vpop.f32.mrb[0].mxu0
  %v1178 = vadd.f32 %v1053, %v1177
  %v1179 = vpop.f32.mrb[0].mxu0
  %1180 = vdwg.mxu0
  %v1181 = vmax.f32 %v1114, 0.0
  %v1182 = vmax.f32 %v1116, 0.0
  %v1183 = vmax.f32 %v1167, 0.0
  %v1184 = vmax.f32 %v1118, 0.0
  %v1185 = vmax.f32 %v1120, 0.0
  %v1186 = vmax.f32 %v1170, 0.0
  %v1187 = vmax.f32 %v1124, 0.0
  %v1188 = vmax.f32 %v1126, 0.0
  %v1189 = vmax.f32 %v1175, 0.0
  %v1190 = vmax.f32 %v1128, 0.0
  %v1191 = vmax.f32 %v1130, 0.0
  %v1192 = vmax.f32 %v1178, 0.0
  %v1193 = vld [vmem:[%s4] sm:$0xf]
  %v1194 = vld [vmem:[%s4 + $0x8] sm:$0xf]
  %v1195 = vld [vmem:[%s4 + $0x10] sm:$0xf]
  %v1196 = vld [vmem:[%s4 + $0x18] sm:$0xf]
  %v1197 = vld [vmem:[%s4 + $0x20] sm:$0xf]
  %v1198 = vld [vmem:[%s4 + $0x28] sm:$0xf]
  %v1199 = vld [vmem:[%s4 + $0x30] sm:$0xf]
  %v1200 = vld [vmem:[%s4 + $0x38] sm:$0xf]
  %v1201 = vld [vmem:[%s4 + $0x40] sm:$0xf]
  %v1202 = vld [vmem:[%s4 + $0x48] sm:$0xf]
  %v1203 = vld [vmem:[%s4 + $0x50] sm:$0xf]
  %v1204 = vld [vmem:[%s4 + $0x58] sm:$0xf]
  %v1205 = vld [vmem:[%s4 + $0x60] sm:$0xf]
  %v1206 = vld [vmem:[%s4 + $0x68] sm:$0xf]
  %v1207 = vld [vmem:[%s4 + $0x70] sm:$0xf]
  %v1208 = vld [vmem:[%s4 + $0x78] sm:$0xf]
  %v1209 = vld [vmem:[%s4 + $0x80] sm:$0xf]
  %v1210 = vld [vmem:[%s4 + $0x88] sm:$0xf]
  %v1211 = vld [vmem:[%s4 + $0x90] sm:$0xf]
  %v1212 = vld [vmem:[%s4 + $0x98] sm:$0xf]
  %v1213 = vld [vmem:[%s4 + $0xa0] sm:$0xf]
  %v1214 = vld [vmem:[%s4 + $0xa8] sm:$0xf]
  %v1215 = vld [vmem:[%s4 + $0xb0] sm:$0xf]
  %v1216 = vld [vmem:[%s4 + $0xb8] sm:$0xf]
  %v1217 = vld [vmem:[%s4 + $0xc0] sm:$0xf]
  %v1218 = vld [vmem:[%s4 + $0xc8] sm:$0xf]
  %v1219 = vld [vmem:[%s4 + $0xd0] sm:$0xf]
  %v1220 = vld [vmem:[%s4 + $0xd8] sm:$0xf]
  %v1221 = vld [vmem:[%s4 + $0xe0] sm:$0xf]
  %v1222 = vld [vmem:[%s4 + $0xe8] sm:$0xf]
  %v1223 = vld [vmem:[%s4 + $0xf0] sm:$0xf]
  %v1224 = vld [vmem:[%s4 + $0xf8] sm:$0xf]
  %v1225 = vld [vmem:[%s4 + $0x100] sm:$0xf]
  %v1226 = vld [vmem:[%s4 + $0x108] sm:$0xf]
  %v1227 = vld [vmem:[%s4 + $0x110] sm:$0xf]
  %v1228 = vld [vmem:[%s4 + $0x118] sm:$0xf]
  %v1229 = vld [vmem:[%s4 + $0x120] sm:$0xf]
  %v1230 = vld [vmem:[%s4 + $0x128] sm:$0xf]
  %v1231 = vld [vmem:[%s4 + $0x130] sm:$0xf]
  %v1232 = vld [vmem:[%s4 + $0x138] sm:$0xf]
  %v1233 = vld [vmem:[%s4 + $0x140] sm:$0xf]
  %v1234 = vld [vmem:[%s4 + $0x148] sm:$0xf]
  %v1235 = vld [vmem:[%s4 + $0x150] sm:$0xf]
  %v1236 = vld [vmem:[%s4 + $0x158] sm:$0xf]
  %v1237 = vld [vmem:[%s4 + $0x160] sm:$0xf]
  %v1238 = vpack.c.bf16 %v1184, %v1181
  %v1239 = vpack.c.bf16 %v1185, %v1182
  %v1240 = vpack.c.bf16 %v1186, %v1183
  %v1241 = vpack.c.bf16 %v1190, %v1187
  %v1242 = vpack.c.bf16 %v1191, %v1188
  %v1243 = vpack.c.bf16 %v1192, %v1189
  %v1289 = vunpack.c.l.b16 %v1193
  %v1290 = vunpack.c.l.b16 %v1194
  %v1291 = vunpack.c.l.b16 %v1195
  %v1292 = vunpack.c.l.b16 %v1196
  %v1293 = vunpack.c.l.b16 %v1197
  %v1294 = vunpack.c.l.b16 %v1198
  %v1295 = vunpack.c.l.b16 %v1199
  %v1296 = vunpack.c.l.b16 %v1200
  %v1297 = vunpack.c.l.b16 %v1201
  %v1298 = vunpack.c.l.b16 %v1202
  %v1299 = vunpack.c.l.b16 %v1203
  %v1300 = vunpack.c.l.b16 %v1204
  %v1301 = vunpack.c.l.b16 %v1205
  %v1302 = vunpack.c.l.b16 %v1206
  %v1303 = vunpack.c.l.b16 %v1207
  %v1304 = vunpack.c.l.b16 %v1208
  %v1305 = vunpack.c.l.b16 %v1209
  %v1306 = vunpack.c.l.b16 %v1210
  %v1307 = vunpack.c.l.b16 %v1211
  %v1308 = vunpack.c.l.b16 %v1212
  %v1309 = vunpack.c.l.b16 %v1213
  %v1310 = vunpack.c.l.b16 %v1214
  %v1311 = vunpack.c.l.b16 %v1215
  %v1312 = vunpack.c.l.b16 %v1216
  %v1313 = vunpack.c.l.b16 %v1217
  %v1314 = vunpack.c.l.b16 %v1218
  %v1315 = vunpack.c.l.b16 %v1219
  %v1316 = vunpack.c.l.b16 %v1220
  %v1317 = vunpack.c.l.b16 %v1221
  %v1318 = vunpack.c.l.b16 %v1222
  %v1319 = vunpack.c.l.b16 %v1223
  %v1320 = vunpack.c.l.b16 %v1224
  %v1321 = vunpack.c.l.b16 %v1225
  %v1322 = vunpack.c.l.b16 %v1226
  %v1323 = vunpack.c.l.b16 %v1227
  %v1324 = vunpack.c.l.b16 %v1228
  %v1325 = vunpack.c.l.b16 %v1229
  %v1326 = vunpack.c.l.b16 %v1230
  %v1327 = vunpack.c.l.b16 %v1231
  %v1328 = vunpack.c.l.b16 %v1232
  %v1329 = vunpack.c.l.b16 %v1233
  %v1330 = vunpack.c.l.b16 %v1234
  %v1331 = vunpack.c.l.b16 %v1235
  %v1332 = vunpack.c.l.b16 %v1236
  %v1333 = vunpack.c.l.b16 %v1237
  %v1334 = vpack.c.b16 %v1290, %v1289
  %v1335 = vpack.c.b16 %v1292, %v1291
  %v1336 = vpack.c.b16 %v1294, %v1293
  %v1337 = vpack.c.b16 %v1296, %v1295
  %v1338 = vpack.c.b16 %v1298, %v1297
  %v1339 = vpack.c.b16 %v1300, %v1299
  %v1340 = vpack.c.b16 %v1302, %v1301
  %v1341 = vpack.c.b16 %v1304, %v1303
  %v1342 = vpack.c.b16 %v1306, %v1305
  %v1343 = vpack.c.b16 %v1308, %v1307
  %v1344 = vpack.c.b16 %v1310, %v1309
  %v1345 = vpack.c.b16 %v1312, %v1311
  %v1346 = vpack.c.b16 %v1314, %v1313
  %v1347 = vpack.c.b16 %v1316, %v1315
  %v1348 = vpack.c.b16 %v1318, %v1317
  %v1349 = vpack.c.b16 %v1320, %v1319
  %v1350 = vpack.c.b16 %v1322, %v1321
  %v1351 = vpack.c.b16 %v1324, %v1323
  %v1352 = vpack.c.b16 %v1326, %v1325
  %v1353 = vpack.c.b16 %v1328, %v1327
  %v1354 = vpack.c.b16 %v1330, %v1329
  %v1355 = vpack.c.b16 %v1332, %v1331
  %v1356 = vpack.c.b16 %v1333, %v1333
  %vm1379 = vcmask 850944
  %v1381 = vsel %vm1379, %v1240, 0
  %v1384 = vsel %vm1379, %v1243, 0
  %v1387 = vsel %vm282, %v1356, 0
  %1389 = vmatprep.subr.bf16.mxu0 0
  %1390 = vmatpush1.bf16.msra.mxu0 %v1334
  %1391 = vmatprep.subr.bf16.mxu0 0
  %1392 = vmatpush1.bf16.msra.mxu0 %v1335
  %1393 = vmatprep.subr.bf16.mxu0 0
  %1394 = vmatpush1.bf16.msra.mxu0 %v1336
  %1395 = vmatprep.subr.bf16.mxu0 0
  %1396 = vmatpush1.bf16.msra.mxu0 %v1337
  %1397 = vmatprep.subr.bf16.mxu0 0
  %1398 = vmatpush1.bf16.msra.mxu0 %v1338
  %1399 = vmatprep.subr.bf16.mxu0 0
  %1400 = vmatpush1.bf16.msra.mxu0 %v1339
  %1401 = vmatprep.subr.bf16.mxu0 0
  %1402 = vmatpush1.bf16.msra.mxu0 %v1340
  %1403 = vmatprep.subr.bf16.mxu0 0
  %1404 = vmatpush1.bf16.msra.mxu0 %v1341
  %1405 = vmatprep.subr.bf16.mxu0 0
  %1406 = vmatpush1.bf16.msra.mxu0 %v1342
  %1407 = vmatprep.subr.bf16.mxu0 0
  %1408 = vmatpush1.bf16.msra.mxu0 %v1343
  %1409 = vmatprep.subr.bf16.mxu0 0
  %1410 = vmatpush1.bf16.msra.mxu0 %v1344
  %1411 = vmatprep.subr.bf16.mxu0 0
  %1412 = vmatpush1.bf16.msra.mxu0 %v1345
  %1413 = vmatprep.subr.bf16.mxu0 0
  %1414 = vmatpush1.bf16.msra.mxu0 %v1346
  %1415 = vmatprep.subr.bf16.mxu0 0
  %1416 = vmatpush1.bf16.msra.mxu0 %v1347
  %1417 = vmatprep.subr.bf16.mxu0 0
  %1418 = vmatpush1.bf16.msra.mxu0 %v1348
  %1419 = vmatprep.subr.bf16.mxu0 0
  %1420 = vmatpush1.bf16.msra.mxu0 %v1349
  %1421 = vmatprep.mubr.bf16.mxu0 %v1239
  %1422 = vmatmul.mubr.bf16.gmra.mrb[0].mxu0 %v1238
  %v1423 = vpop.f32.mrb[0].mxu0
  %v1424 = vadd.f32 0.0, %v1423
  %v1425 = vpop.f32.mrb[0].mxu0
  %v1426 = vpop.f32.mrb[0].mxu0
  %v1427 = vadd.f32 0.0, %v1426
  %v1428 = vpop.f32.mrb[0].mxu0
  %1429 = vmatprep.mubr.bf16.mxu0 %v1242
  %1430 = vmatmul.mubr.bf16.gmra.mrb[0].mxu0 %v1241
  %v1431 = vpop.f32.mrb[0].mxu0
  %v1432 = vadd.f32 0.0, %v1431
  %v1433 = vpop.f32.mrb[0].mxu0
  %v1434 = vpop.f32.mrb[0].mxu0
  %v1435 = vadd.f32 0.0, %v1434
  %v1436 = vpop.f32.mrb[0].mxu0
  %1437 = vdwg.mxu0
  %1438 = vmatprep.subr.bf16.mxu0 0
  %1439 = vmatpush1.bf16.msra.mxu0 %v1350
  %1440 = vmatprep.subr.bf16.mxu0 0
  %1441 = vmatpush1.bf16.msra.mxu0 %v1351
  %1442 = vmatprep.subr.bf16.mxu0 0
  %1443 = vmatpush1.bf16.msra.mxu0 %v1352
  %1444 = vmatprep.subr.bf16.mxu0 0
  %1445 = vmatpush1.bf16.msra.mxu0 %v1353
  %1446 = vmatprep.subr.bf16.mxu0 0
  %1447 = vmatpush1.bf16.msra.mxu0 %v1354
  %1448 = vmatprep.subr.bf16.mxu0 0
  %1449 = vmatpush1.bf16.msra.mxu0 %v1355
  %1450 = vmatprep.subr.bf16.mxu0 0
  %1451 = vmatpush1.bf16.msra.mxu0 %v1387
  %1452 = vmatprep.subr.bf16.mxu0 0
  %1453 = vmatpush1.bf16.msra.mxu0 0
  %1454 = vmatprep.subr.bf16.mxu0 0
  %1455 = vmatpush1.bf16.msra.mxu0 0
  %1456 = vmatprep.subr.bf16.mxu0 0
  %1457 = vmatpush1.bf16.msra.mxu0 0
  %1458 = vmatprep.subr.bf16.mxu0 0
  %1459 = vmatpush1.bf16.msra.mxu0 0
  %1460 = vmatprep.subr.bf16.mxu0 0
  %1461 = vmatpush1.bf16.msra.mxu0 0
  %1462 = vmatprep.subr.bf16.mxu0 0
  %1463 = vmatpush1.bf16.msra.mxu0 0
  %1464 = vmatprep.subr.bf16.mxu0 0
  %1465 = vmatpush1.bf16.msra.mxu0 0
  %1466 = vmatprep.subr.bf16.mxu0 0
  %1467 = vmatpush1.bf16.msra.mxu0 0
  %1468 = vmatprep.subr.bf16.mxu0 0
  %1469 = vmatpush1.bf16.msra.mxu0 0
  %1470 = vmatprep.mubr.bf16.mxu0 0
  %1471 = vmatmul.mubr.bf16.gmra.mrb[0].mxu0 %v1381
  %v1472 = vpop.f32.mrb[0].mxu0
  %v1473 = vadd.f32 %v1424, %v1472
  %v1474 = vpop.f32.mrb[0].mxu0
  %v1475 = vpop.f32.mrb[0].mxu0
  %v1476 = vadd.f32 %v1427, %v1475
  %v1477 = vpop.f32.mrb[0].mxu0
  %1478 = vmatprep.mubr.bf16.mxu0 0
  %1479 = vmatmul.mubr.bf16.gmra.mrb[0].mxu0 %v1384
  %v1480 = vpop.f32.mrb[0].mxu0
  %v1481 = vadd.f32 %v1432, %v1480
  %v1482 = vpop.f32.mrb[0].mxu0
  %v1483 = vpop.f32.mrb[0].mxu0
  %v1484 = vadd.f32 %v1435, %v1483
  %v1485 = vpop.f32.mrb[0].mxu0
  %1486 = vdwg.mxu0
  %v1487 = vpack.c.bf16 %v1476, %v1473
  %v1488 = vpack.c.bf16 %v1484, %v1481
  %1491 = vrot.lane.b32.xlu0 %v1487, 7
  %v1492 = vpop.permute.xlu0 %1491
  %1493 = vrot.lane.b32.xlu0 %v1488, 7
  %v1494 = vpop.permute.xlu0 %1493
  %vm1495 = vcmask 56320
  %v1497 = vsel %vm1495, 0, %v1492
  %v1499 = vsel %vm1495, 0, %v1494
  %vm1500 = vcmask 1039360
  %v1501 = vsel %vm1500, %v1497, 0
  %v1503 = vsel %vm1500, %v1499, 0
  %1507 = vrot.lane.b32.xlu0 %v1501, 127
  %v1508 = vpop.permute.xlu0 %1507
  %1509 = vrot.lane.b32.xlu0 %v1503, 127
  %v1510 = vpop.permute.xlu0 %1509
  %1513 = vrot.lane.b32.xlu0 %v1501, 126
  %v1514 = vpop.permute.xlu0 %1513
  %1515 = vrot.lane.b32.xlu0 %v1503, 126
  %v1516 = vpop.permute.xlu0 %1515
  %1519 = vrot.lane.b32.xlu0 %v1501, 122
  %v1520 = vpop.permute.xlu0 %1519
  %1521 = vrot.lane.b32.xlu0 %v1503, 122
  %v1522 = vpop.permute.xlu0 %1521
  %1525 = vrot.lane.b32.xlu0 %v1501, 121
  %v1526 = vpop.permute.xlu0 %1525
  %1527 = vrot.lane.b32.xlu0 %v1503, 121
  %v1528 = vpop.permute.xlu0 %1527
  %1531 = vrot.lane.b32.xlu0 %v1501, 120
  %v1532 = vpop.permute.xlu0 %1531
  %1533 = vrot.lane.b32.xlu0 %v1503, 120
  %v1534 = vpop.permute.xlu0 %1533
  %1538 = vrot.lane.b32.xlu0 %v1501, 116
  %v1539 = vpop.permute.xlu0 %1538
  %1540 = vrot.lane.b32.xlu0 0, 116
  %v1541 = vpop.permute.xlu0 %1540
  %1542 = vrot.lane.b32.xlu0 %v1503, 116
  %v1543 = vpop.permute.xlu0 %1542
  %v1544 = vsel %vm245, %v1539, %v1541
  %v1545 = vsel %vm245, %v1543, %v1541
  %1548 = vrot.lane.b32.xlu0 %v1501, 115
  %v1549 = vpop.permute.xlu0 %1548
  %1550 = vrot.lane.b32.xlu0 0, 115
  %v1551 = vpop.permute.xlu0 %1550
  %1552 = vrot.lane.b32.xlu0 %v1503, 115
  %v1553 = vpop.permute.xlu0 %1552
  %vm1554 = vcmask 941056
  %v1555 = vsel %vm1554, %v1549, %v1551
  %v1556 = vsel %vm1554, %v1553, %v1551
  %1559 = vrot.lane.b32.xlu0 %v1501, 114
  %v1560 = vpop.permute.xlu0 %1559
  %1561 = vrot.lane.b32.xlu0 0, 114
  %v1562 = vpop.permute.xlu0 %1561
  %1563 = vrot.lane.b32.xlu0 %v1503, 114
  %v1564 = vpop.permute.xlu0 %1563
  %vm1565 = vcmask 932864
  %v1566 = vsel %vm1565, %v1560, %v1562
  %v1567 = vsel %vm1565, %v1564, %v1562
  %v1570 = vld [vmem:[%s1 + $0x20] sm:$0xff]
  %v1571 = vld [vmem:[%s1 + $0x28] sm:$0xf]
  %v1572 = vld [vmem:[%s1 + $0x74] sm:$0xff]
  %v1573 = vld [vmem:[%s1 + $0x7c] sm:$0xf]
  %v1574 = vld [vmem:[%s1 + $0xc8] sm:$0xff]
  %v1575 = vld [vmem:[%s1 + $0xd0] sm:$0xf]
  %v1576 = vld [vmem:[%s1 + $0x11c] sm:$0xff]
  %v1577 = vld [vmem:[%s1 + $0x124] sm:$0xf]
  %1578 = vset.pattern.permute.xlu0 5
  %1579 = vperm.xlu0 %1578, %v1031
  %v1580 = vpop.permute.xlu0 %1579
  %1582 = vset.pattern.permute.xlu0 5
  %1583 = vperm.xlu0 %1582, %v1032
  %v1584 = vpop.permute.xlu0 %1583
  %1586 = vset.pattern.permute.xlu0 5
  %1587 = vperm.xlu0 %1586, %v1033
  %v1588 = vpop.permute.xlu0 %1587
  %1590 = vset.pattern.permute.xlu0 5
  %1591 = vperm.xlu0 %1590, %v1034
  %v1592 = vpop.permute.xlu0 %1591
  %v1602 = vunpack.c.l.b16 %v1570
  %v1603 = vunpack.c.h.b16 %v1570
  %v1604 = vunpack.c.l.b16 %v1571
  %v1605 = vunpack.c.l.b16 %v1572
  %v1606 = vunpack.c.h.b16 %v1572
  %v1607 = vunpack.c.l.b16 %v1573
  %v1608 = vunpack.c.l.b16 %v1574
  %v1609 = vunpack.c.h.b16 %v1574
  %v1610 = vunpack.c.l.b16 %v1575
  %v1611 = vunpack.c.l.b16 %v1576
  %v1612 = vunpack.c.h.b16 %v1576
  %v1613 = vunpack.c.l.b16 %v1577
  %v1614 = vpack.c.b16 %v1605, %v1602
  %v1615 = vpack.c.b16 %v1606, %v1603
  %v1616 = vpack.c.b16 %v1607, %v1604
  %v1617 = vpack.c.b16 %v1611, %v1608
  %v1618 = vpack.c.b16 %v1612, %v1609
  %v1619 = vpack.c.b16 %v1613, %v1610
  %vm1624 = vcmask 261120
  %v1626 = vsel %vm1624, %v1616, 0
  %v1629 = vsel %vm1624, %v1619, 0
  %1631 = vmatprep.subr.bf16.mxu0 0
  %1632 = vmatpush1.bf16.msra.mxu0 %v1501
  %1633 = vmatprep.subr.bf16.mxu0 0
  %1634 = vmatpush1.bf16.msra.mxu0 %v1503
  %1635 = vmatprep.subr.bf16.mxu0 0
  %1636 = vmatpush1.bf16.msra.mxu0 %v1508
  %1637 = vmatprep.subr.bf16.mxu0 0
  %1638 = vmatpush1.bf16.msra.mxu0 %v1510
  %1639 = vmatprep.subr.bf16.mxu0 0
  %1640 = vmatpush1.bf16.msra.mxu0 %v1514
  %1641 = vmatprep.subr.bf16.mxu0 0
  %1642 = vmatpush1.bf16.msra.mxu0 %v1516
  %1643 = vmatprep.subr.bf16.mxu0 0
  %1644 = vmatpush1.bf16.msra.mxu0 %v1520
  %1645 = vmatprep.subr.bf16.mxu0 0
  %1646 = vmatpush1.bf16.msra.mxu0 %v1522
  %1647 = vmatprep.subr.bf16.mxu0 0
  %1648 = vmatpush1.bf16.msra.mxu0 %v1526
  %1649 = vmatprep.subr.bf16.mxu0 0
  %1650 = vmatpush1.bf16.msra.mxu0 %v1528
  %1651 = vmatprep.subr.bf16.mxu0 0
  %1652 = vmatpush1.bf16.msra.mxu0 %v1532
  %1653 = vmatprep.subr.bf16.mxu0 0
  %1654 = vmatpush1.bf16.msra.mxu0 %v1534
  %1655 = vmatprep.subr.bf16.mxu0 0
  %1656 = vmatpush1.bf16.msra.mxu0 %v1544
  %1657 = vmatprep.subr.bf16.mxu0 0
  %1658 = vmatpush1.bf16.msra.mxu0 %v1545
  %1659 = vmatprep.subr.bf16.mxu0 0
  %1660 = vmatpush1.bf16.msra.mxu0 %v1555
  %1661 = vmatprep.subr.bf16.mxu0 0
  %1662 = vmatpush1.bf16.msra.mxu0 %v1556
  %1663 = vmatprep.mubr.bf16.mxu0 %v1615
  %1664 = vmatmul.mubr.bf16.gmra.mrb[0].mxu0 %v1614
  %v1665 = vpop.f32.mrb[0].mxu0
  %v1666 = vadd.f32 %v1580, %v1665
  %v1667 = vpop.f32.mrb[0].mxu0
  %v1668 = vpop.f32.mrb[0].mxu0
  %v1669 = vadd.f32 %v1584, %v1668
  %v1670 = vpop.f32.mrb[0].mxu0
  %1671 = vmatprep.mubr.bf16.mxu0 %v1618
  %1672 = vmatmul.mubr.bf16.gmra.mrb[0].mxu0 %v1617
  %v1673 = vpop.f32.mrb[0].mxu0
  %v1674 = vadd.f32 %v1588, %v1673
  %v1675 = vpop.f32.mrb[0].mxu0
  %v1676 = vpop.f32.mrb[0].mxu0
  %v1677 = vadd.f32 %v1592, %v1676
  %v1678 = vpop.f32.mrb[0].mxu0
  %1679 = vdwg.mxu0
  %1680 = vmatprep.subr.bf16.mxu0 0
  %1681 = vmatpush1.bf16.msra.mxu0 %v1566
  %1682 = vmatprep.subr.bf16.mxu0 0
  %1683 = vmatpush1.bf16.msra.mxu0 %v1567
  %1684 = vmatprep.subr.bf16.mxu0 0
  %1685 = vmatpush1.bf16.msra.mxu0 0
  %1686 = vmatprep.subr.bf16.mxu0 0
  %1687 = vmatpush1.bf16.msra.mxu0 0
  %1688 = vmatprep.subr.bf16.mxu0 0
  %1689 = vmatpush1.bf16.msra.mxu0 0
  %1690 = vmatprep.subr.bf16.mxu0 0
  %1691 = vmatpush1.bf16.msra.mxu0 0
  %1692 = vmatprep.subr.bf16.mxu0 0
  %1693 = vmatpush1.bf16.msra.mxu0 0
  %1694 = vmatprep.subr.bf16.mxu0 0
  %1695 = vmatpush1.bf16.msra.mxu0 0
  %1696 = vmatprep.subr.bf16.mxu0 0
  %1697 = vmatpush1.bf16.msra.mxu0 0
  %1698 = vmatprep.subr.bf16.mxu0 0
  %1699 = vmatpush1.bf16.msra.mxu0 0
  %1700 = vmatprep.subr.bf16.mxu0 0
  %1701 = vmatpush1.bf16.msra.mxu0 0
  %1702 = vmatprep.subr.bf16.mxu0 0
  %1703 = vmatpush1.bf16.msra.mxu0 0
  %1704 = vmatprep.subr.bf16.mxu0 0
  %1705 = vmatpush1.bf16.msra.mxu0 0
  %1706 = vmatprep.subr.bf16.mxu0 0
  %1707 = vmatpush1.bf16.msra.mxu0 0
  %1708 = vmatprep.subr.bf16.mxu0 0
  %1709 = vmatpush1.bf16.msra.mxu0 0
  %1710 = vmatprep.subr.bf16.mxu0 0
  %1711 = vmatpush1.bf16.msra.mxu0 0
  %1712 = vmatprep.mubr.bf16.mxu0 0
  %1713 = vmatmul.mubr.bf16.gmra.mrb[0].mxu0 %v1626
  %v1714 = vpop.f32.mrb[0].mxu0
  %v1715 = vadd.f32 %v1666, %v1714
  %v1716 = vpop.f32.mrb[0].mxu0
  %v1717 = vpop.f32.mrb[0].mxu0
  %v1718 = vadd.f32 %v1669, %v1717
  %v1719 = vpop.f32.mrb[0].mxu0
  %1720 = vmatprep.mubr.bf16.mxu0 0
  %1721 = vmatmul.mubr.bf16.gmra.mrb[0].mxu0 %v1629
  %v1722 = vpop.f32.mrb[0].mxu0
  %v1723 = vadd.f32 %v1674, %v1722
  %v1724 = vpop.f32.mrb[0].mxu0
  %v1725 = vpop.f32.mrb[0].mxu0
  %v1726 = vadd.f32 %v1677, %v1725
  %v1727 = vpop.f32.mrb[0].mxu0
  %1728 = vdwg.mxu0
  %v1729 = vld [vmem:[%s1 + $0x2c] sm:$0xf]
  %v1730 = vld [vmem:[%s1 + $0x80] sm:$0xf]
  %v1731 = vld [vmem:[%s1 + $0xd4] sm:$0xf]
  %v1732 = vld [vmem:[%s1 + $0x128] sm:$0xf]
  %v1737 = vunpack.c.l.b16 %v1729
  %v1738 = vunpack.c.l.b16 %v1730
  %v1739 = vunpack.c.l.b16 %v1731
  %v1740 = vunpack.c.l.b16 %v1732
  %v1741 = vpack.c.b16 %v1738, %v1737
  %v1742 = vpack.c.b16 %v1740, %v1739
  %v1744 = vsel %vm581, %v1741, 0
  %v1747 = vsel %vm581, %v1742, 0
  %1749 = vmatprep.subr.bf16.mxu0 %v917
  %1750 = vmatpush1.bf16.msra.mxu0 %v916
  %1751 = vmatprep.subr.bf16.mxu0 0
  %1752 = vmatpush1.bf16.msra.mxu0 0
  %1753 = vmatprep.subr.bf16.mxu0 0
  %1754 = vmatpush1.bf16.msra.mxu0 0
  %1755 = vmatprep.subr.bf16.mxu0 0
  %1756 = vmatpush1.bf16.msra.mxu0 0
  %1757 = vmatprep.subr.bf16.mxu0 0
  %1758 = vmatpush1.bf16.msra.mxu0 0
  %1759 = vmatprep.subr.bf16.mxu0 0
  %1760 = vmatpush1.bf16.msra.mxu0 0
  %1761 = vmatprep.subr.bf16.mxu0 0
  %1762 = vmatpush1.bf16.msra.mxu0 0
  %1763 = vmatprep.subr.bf16.mxu0 0
  %1764 = vmatpush1.bf16.msra.mxu0 0
  %1765 = vmatprep.subr.bf16.mxu0 0
  %1766 = vmatpush1.bf16.msra.mxu0 0
  %1767 = vmatprep.subr.bf16.mxu0 0
  %1768 = vmatpush1.bf16.msra.mxu0 0
  %1769 = vmatprep.subr.bf16.mxu0 0
  %1770 = vmatpush1.bf16.msra.mxu0 0
  %1771 = vmatprep.subr.bf16.mxu0 0
  %1772 = vmatpush1.bf16.msra.mxu0 0
  %1773 = vmatprep.subr.bf16.mxu0 0
  %1774 = vmatpush1.bf16.msra.mxu0 0
  %1775 = vmatprep.subr.bf16.mxu0 0
  %1776 = vmatpush1.bf16.msra.mxu0 0
  %1777 = vmatprep.subr.bf16.mxu0 0
  %1778 = vmatpush1.bf16.msra.mxu0 0
  %1779 = vmatprep.subr.bf16.mxu0 0
  %1780 = vmatpush1.bf16.msra.mxu0 0
  %1781 = vmatprep.mubr.bf16.mxu0 0
  %1782 = vmatmul.mubr.bf16.gmra.mrb[0].mxu0 %v1744
  %v1783 = vpop.f32.mrb[0].mxu0
  %v1784 = vadd.f32 0.0, %v1783
  %v1785 = vpop.f32.mrb[0].mxu0
  %v1786 = vadd.f32 0.0, %v1785
  %v1787 = vpop.f32.mrb[0].mxu0
  %v1788 = vadd.f32 0.0, %v1787
  %v1789 = vpop.f32.mrb[0].mxu0
  %v1790 = vadd.f32 0.0, %v1789
  %1791 = vmatprep.mubr.bf16.mxu0 0
  %1792 = vmatmul.mubr.bf16.gmra.mrb[0].mxu0 %v1747
  %v1793 = vpop.f32.mrb[0].mxu0
  %v1794 = vadd.f32 0.0, %v1793
  %v1795 = vpop.f32.mrb[0].mxu0
  %v1796 = vadd.f32 0.0, %v1795
  %v1797 = vpop.f32.mrb[0].mxu0
  %v1798 = vadd.f32 0.0, %v1797
  %v1799 = vpop.f32.mrb[0].mxu0
  %v1800 = vadd.f32 0.0, %v1799
  %1801 = vdwg.mxu0
  %1802 = vmatprep.subr.bf16.mxu0 0
  %1803 = vmatpush1.bf16.msra.mxu0 %v918
  %1804 = vmatprep.subr.bf16.mxu0 0
  %1805 = vmatpush1.bf16.msra.mxu0 0
  %1806 = vmatprep.subr.bf16.mxu0 0
  %1807 = vmatpush1.bf16.msra.mxu0 0
  %1808 = vmatprep.subr.bf16.mxu0 0
  %1809 = vmatpush1.bf16.msra.mxu0 0
  %1810 = vmatprep.subr.bf16.mxu0 0
  %1811 = vmatpush1.bf16.msra.mxu0 0
  %1812 = vmatprep.subr.bf16.mxu0 0
  %1813 = vmatpush1.bf16.msra.mxu0 0
  %1814 = vmatprep.subr.bf16.mxu0 0
  %1815 = vmatpush1.bf16.msra.mxu0 0
  %1816 = vmatprep.subr.bf16.mxu0 0
  %1817 = vmatpush1.bf16.msra.mxu0 0
  %1818 = vmatprep.subr.bf16.mxu0 0
  %1819 = vmatpush1.bf16.msra.mxu0 0
  %1820 = vmatprep.subr.bf16.mxu0 0
  %1821 = vmatpush1.bf16.msra.mxu0 0
  %1822 = vmatprep.subr.bf16.mxu0 0
  %1823 = vmatpush1.bf16.msra.mxu0 0
  %1824 = vmatprep.subr.bf16.mxu0 0
  %1825 = vmatpush1.bf16.msra.mxu0 0
  %1826 = vmatprep.subr.bf16.mxu0 0
  %1827 = vmatpush1.bf16.msra.mxu0 0
  %1828 = vmatprep.subr.bf16.mxu0 0
  %1829 = vmatpush1.bf16.msra.mxu0 0
  %1830 = vmatprep.subr.bf16.mxu0 0
  %1831 = vmatpush1.bf16.msra.mxu0 0
  %1832 = vmatprep.subr.bf16.mxu0 0
  %1833 = vmatpush1.bf16.msra.mxu0 0
  %1834 = vmatprep.mubr.bf16.mxu0 0
  %1835 = vmatmul.mubr.bf16.gmra.mrb[0].mxu0 %v1744
  %v1836 = vpop.f32.mrb[0].mxu0
  %v1837 = vadd.f32 0.0, %v1836
  %v1838 = vpop.f32.mrb[0].mxu0
  %v1839 = vpop.f32.mrb[0].mxu0
  %v1840 = vadd.f32 0.0, %v1839
  %v1841 = vpop.f32.mrb[0].mxu0
  %1842 = vmatprep.mubr.bf16.mxu0 0
  %1843 = vmatmul.mubr.bf16.gmra.mrb[0].mxu0 %v1747
  %v1844 = vpop.f32.mrb[0].mxu0
  %v1845 = vadd.f32 0.0, %v1844
  %v1846 = vpop.f32.mrb[0].mxu0
  %v1847 = vpop.f32.mrb[0].mxu0
  %v1848 = vadd.f32 0.0, %v1847
  %v1849 = vpop.f32.mrb[0].mxu0
  %1850 = vdwg.mxu0
  %v1851 = vpack.c.bf16 %v1788, %v1784
  %v1852 = vpack.c.bf16 %v1790, %v1786
  %v1853 = vpack.c.bf16 %v1840, %v1837
  %v1854 = vpack.c.bf16 %v1798, %v1794
  %v1855 = vpack.c.bf16 %v1800, %v1796
  %v1856 = vpack.c.bf16 %v1848, %v1845
  %1857 = vset.pattern.permute.xlu0 6
  %1858 = vperm.xlu0 %1857, %v1031
  %v1859 = vpop.permute.xlu0 %1858
  %1861 = vset.pattern.permute.xlu0 6
  %1862 = vperm.xlu0 %1861, %v1032
  %v1863 = vpop.permute.xlu0 %1862
  %1865 = vset.pattern.permute.xlu0 6
  %1866 = vperm.xlu0 %1865, %v1033
  %v1867 = vpop.permute.xlu0 %1866
  %1869 = vset.pattern.permute.xlu0 6
  %1870 = vperm.xlu0 %1869, %v1034
  %v1871 = vpop.permute.xlu0 %1870
  %v1874 = vsel %vm1379, %v1853, 0
  %v1877 = vsel %vm1379, %v1856, 0
  %1879 = vmatprep.subr.bf16.mxu0 0
  %1880 = vmatpush1.bf16.msra.mxu0 %v1334
  %1881 = vmatprep.subr.bf16.mxu0 0
  %1882 = vmatpush1.bf16.msra.mxu0 %v1335
  %1883 = vmatprep.subr.bf16.mxu0 0
  %1884 = vmatpush1.bf16.msra.mxu0 %v1336
  %1885 = vmatprep.subr.bf16.mxu0 0
  %1886 = vmatpush1.bf16.msra.mxu0 %v1337
  %1887 = vmatprep.subr.bf16.mxu0 0
  %1888 = vmatpush1.bf16.msra.mxu0 %v1338
  %1889 = vmatprep.subr.bf16.mxu0 0
  %1890 = vmatpush1.bf16.msra.mxu0 %v1339
  %1891 = vmatprep.subr.bf16.mxu0 0
  %1892 = vmatpush1.bf16.msra.mxu0 %v1340
  %1893 = vmatprep.subr.bf16.mxu0 0
  %1894 = vmatpush1.bf16.msra.mxu0 %v1341
  %1895 = vmatprep.subr.bf16.mxu0 0
  %1896 = vmatpush1.bf16.msra.mxu0 %v1342
  %1897 = vmatprep.subr.bf16.mxu0 0
  %1898 = vmatpush1.bf16.msra.mxu0 %v1343
  %1899 = vmatprep.subr.bf16.mxu0 0
  %1900 = vmatpush1.bf16.msra.mxu0 %v1344
  %1901 = vmatprep.subr.bf16.mxu0 0
  %1902 = vmatpush1.bf16.msra.mxu0 %v1345
  %1903 = vmatprep.subr.bf16.mxu0 0
  %1904 = vmatpush1.bf16.msra.mxu0 %v1346
  %1905 = vmatprep.subr.bf16.mxu0 0
  %1906 = vmatpush1.bf16.msra.mxu0 %v1347
  %1907 = vmatprep.subr.bf16.mxu0 0
  %1908 = vmatpush1.bf16.msra.mxu0 %v1348
  %1909 = vmatprep.subr.bf16.mxu0 0
  %1910 = vmatpush1.bf16.msra.mxu0 %v1349
  %1911 = vmatprep.mubr.bf16.mxu0 %v1852
  %1912 = vmatmul.mubr.bf16.gmra.mrb[0].mxu0 %v1851
  %v1913 = vpop.f32.mrb[0].mxu0
  %v1914 = vadd.f32 %v1859, %v1913
  %v1915 = vpop.f32.mrb[0].mxu0
  %v1916 = vpop.f32.mrb[0].mxu0
  %v1917 = vadd.f32 %v1863, %v1916
  %v1918 = vpop.f32.mrb[0].mxu0
  %1919 = vmatprep.mubr.bf16.mxu0 %v1855
  %1920 = vmatmul.mubr.bf16.gmra.mrb[0].mxu0 %v1854
  %v1921 = vpop.f32.mrb[0].mxu0
  %v1922 = vadd.f32 %v1867, %v1921
  %v1923 = vpop.f32.mrb[0].mxu0
  %v1924 = vpop.f32.mrb[0].mxu0
  %v1925 = vadd.f32 %v1871, %v1924
  %v1926 = vpop.f32.mrb[0].mxu0
  %1927 = vdwg.mxu0
  %1928 = vmatprep.subr.bf16.mxu0 0
  %1929 = vmatpush1.bf16.msra.mxu0 %v1350
  %1930 = vmatprep.subr.bf16.mxu0 0
  %1931 = vmatpush1.bf16.msra.mxu0 %v1351
  %1932 = vmatprep.subr.bf16.mxu0 0
  %1933 = vmatpush1.bf16.msra.mxu0 %v1352
  %1934 = vmatprep.subr.bf16.mxu0 0
  %1935 = vmatpush1.bf16.msra.mxu0 %v1353
  %1936 = vmatprep.subr.bf16.mxu0 0
  %1937 = vmatpush1.bf16.msra.mxu0 %v1354
  %1938 = vmatprep.subr.bf16.mxu0 0
  %1939 = vmatpush1.bf16.msra.mxu0 %v1355
  %1940 = vmatprep.subr.bf16.mxu0 0
  %1941 = vmatpush1.bf16.msra.mxu0 %v1387
  %1942 = vmatprep.subr.bf16.mxu0 0
  %1943 = vmatpush1.bf16.msra.mxu0 0
  %1944 = vmatprep.subr.bf16.mxu0 0
  %1945 = vmatpush1.bf16.msra.mxu0 0
  %1946 = vmatprep.subr.bf16.mxu0 0
  %1947 = vmatpush1.bf16.msra.mxu0 0
  %1948 = vmatprep.subr.bf16.mxu0 0
  %1949 = vmatpush1.bf16.msra.mxu0 0
  %1950 = vmatprep.subr.bf16.mxu0 0
  %1951 = vmatpush1.bf16.msra.mxu0 0
  %1952 = vmatprep.subr.bf16.mxu0 0
  %1953 = vmatpush1.bf16.msra.mxu0 0
  %1954 = vmatprep.subr.bf16.mxu0 0
  %1955 = vmatpush1.bf16.msra.mxu0 0
  %1956 = vmatprep.subr.bf16.mxu0 0
  %1957 = vmatpush1.bf16.msra.mxu0 0
  %1958 = vmatprep.subr.bf16.mxu0 0
  %1959 = vmatpush1.bf16.msra.mxu0 0
  %1960 = vmatprep.mubr.bf16.mxu0 0
  %1961 = vmatmul.mubr.bf16.gmra.mrb[0].mxu0 %v1874
  %v1962 = vpop.f32.mrb[0].mxu0
  %v1963 = vadd.f32 %v1914, %v1962
  %v1964 = vpop.f32.mrb[0].mxu0
  %v1965 = vpop.f32.mrb[0].mxu0
  %v1966 = vadd.f32 %v1917, %v1965
  %v1967 = vpop.f32.mrb[0].mxu0
  %1968 = vmatprep.mubr.bf16.mxu0 0
  %1969 = vmatmul.mubr.bf16.gmra.mrb[0].mxu0 %v1877
  %v1970 = vpop.f32.mrb[0].mxu0
  %v1971 = vadd.f32 %v1922, %v1970
  %v1972 = vpop.f32.mrb[0].mxu0
  %v1973 = vpop.f32.mrb[0].mxu0
  %v1974 = vadd.f32 %v1925, %v1973
  %v1975 = vpop.f32.mrb[0].mxu0
  %1976 = vdwg.mxu0
  %v1977 = vadd.f32 %v1715, %v1963
  %v1978 = vadd.f32 %v1718, %v1966
  %v1979 = vadd.f32 %v1723, %v1971
  %v1980 = vadd.f32 %v1726, %v1974
  %v1981 = vmax.f32 %v1977, 0.0
  %v1982 = vmax.f32 %v1978, 0.0
  %v1983 = vmax.f32 %v1979, 0.0
  %v1984 = vmax.f32 %v1980, 0.0
  %v1985 = vld [vmem:[%s3 + $0x1] sm:$0x1]
  %v1986 = vlaneseq
  %v1987 = vshrl.u32 %v1986, 7
  %v1988 = vsub.s32 0, %v1987
  %v1989 = vrot.slane %v1985, %v1988
  %v1990 = vmul.f32 %v1981, %v1989
  %v1991 = vmul.f32 %v1982, %v1989
  %v1992 = vmul.f32 %v1983, %v1989
  %v1993 = vmul.f32 %v1984, %v1989
  %v1994 = vpack.c.bf16 %v1991, %v1990
  %v1995 = vpack.c.bf16 %v1993, %v1992
  %1998 = vrot.lane.b32.xlu0 %v1994, 7
  %v1999 = vpop.permute.xlu0 %1998
  %2000 = vrot.lane.b32.xlu0 %v1995, 7
  %v2001 = vpop.permute.xlu0 %2000
  %v2003 = vsel %vm1495, 0, %v1999
  %v2005 = vsel %vm1495, 0, %v2001
  %v2006 = vsel %vm1500, %v2003, 0
  %v2008 = vsel %vm1500, %v2005, 0
  %2012 = vrot.lane.b32.xlu0 %v2006, 127
  %v2013 = vpop.permute.xlu0 %2012
  %2014 = vrot.lane.b32.xlu0 %v2008, 127
  %v2015 = vpop.permute.xlu0 %2014
  %2018 = vrot.lane.b32.xlu0 %v2006, 126
  %v2019 = vpop.permute.xlu0 %2018
  %2020 = vrot.lane.b32.xlu0 %v2008, 126
  %v2021 = vpop.permute.xlu0 %2020
  %2024 = vrot.lane.b32.xlu0 %v2006, 122
  %v2025 = vpop.permute.xlu0 %2024
  %2026 = vrot.lane.b32.xlu0 %v2008, 122
  %v2027 = vpop.permute.xlu0 %2026
  %2030 = vrot.lane.b32.xlu0 %v2006, 121
  %v2031 = vpop.permute.xlu0 %2030
  %2032 = vrot.lane.b32.xlu0 %v2008, 121
  %v2033 = vpop.permute.xlu0 %2032
  %2036 = vrot.lane.b32.xlu0 %v2006, 120
  %v2037 = vpop.permute.xlu0 %2036
  %2038 = vrot.lane.b32.xlu0 %v2008, 120
  %v2039 = vpop.permute.xlu0 %2038
  %2042 = vrot.lane.b32.xlu0 %v2006, 116
  %v2043 = vpop.permute.xlu0 %2042
  %2044 = vrot.lane.b32.xlu0 %v2008, 116
  %v2045 = vpop.permute.xlu0 %2044
  %v2046 = vsel %vm245, %v2043, %v1541
  %v2047 = vsel %vm245, %v2045, %v1541
  %2050 = vrot.lane.b32.xlu0 %v2006, 115
  %v2051 = vpop.permute.xlu0 %2050
  %2052 = vrot.lane.b32.xlu0 %v2008, 115
  %v2053 = vpop.permute.xlu0 %2052
  %v2054 = vsel %vm1554, %v2051, %v1551
  %v2055 = vsel %vm1554, %v2053, %v1551
  %2058 = vrot.lane.b32.xlu0 %v2006, 114
  %v2059 = vpop.permute.xlu0 %2058
  %2060 = vrot.lane.b32.xlu0 %v2008, 114
  %v2061 = vpop.permute.xlu0 %2060
  %v2062 = vsel %vm1565, %v2059, %v1562
  %v2063 = vsel %vm1565, %v2061, %v1562
  %v2066 = vld [vmem:[%s1 + $0x30] sm:$0xff]
  %v2067 = vld [vmem:[%s1 + $0x38] sm:$0xf]
  %v2068 = vld [vmem:[%s1 + $0x84] sm:$0xff]
  %v2069 = vld [vmem:[%s1 + $0x8c] sm:$0xf]
  %v2070 = vld [vmem:[%s1 + $0xd8] sm:$0xff]
  %v2071 = vld [vmem:[%s1 + $0xe0] sm:$0xf]
  %v2072 = vld [vmem:[%s1 + $0x12c] sm:$0xff]
  %v2073 = vld [vmem:[%s1 + $0x134] sm:$0xf]
  %v2074 = vld [vmem:[%s1 + $0x180] sm:$0xff]
  %v2075 = vld [vmem:[%s1 + $0x188] sm:$0xf]
  %v2076 = vld [vmem:[%s1 + $0x1d4] sm:$0xff]
  %v2077 = vld [vmem:[%s1 + $0x1dc] sm:$0xf]
  %v2078 = vld [vmem:[%s1 + $0x228] sm:$0xff]
  %v2079 = vld [vmem:[%s1 + $0x230] sm:$0xf]
  %v2080 = vld [vmem:[%s1 + $0x27c] sm:$0xff]
  %v2081 = vld [vmem:[%s1 + $0x284] sm:$0xf]
  %v2082 = vld [vmem:[%s2] sm:$0xff]
  %v2083 = vld [vmem:[%s2 + $0x8] sm:$0xff]
  %v2084 = vld [vmem:[%s2 + $0x10] sm:$0xff]
  %v2085 = vld [vmem:[%s2 + $0x18] sm:$0xff]
  %v2086 = vld [vmem:[%s2 + $0x20] sm:$0xff]
  %v2087 = vld [vmem:[%s2 + $0x28] sm:$0xff]
  %v2088 = vld [vmem:[%s2 + $0x30] sm:$0xff]
  %v2089 = vld [vmem:[%s2 + $0x38] sm:$0xff]
  %2091 = vset.pattern.permute.xlu0 7
  %2092 = vperm.xlu0 %2091, %v2082
  %v2093 = vpop.permute.xlu0 %2092
  %2096 = vset.pattern.permute.xlu0 7
  %2097 = vperm.xlu0 %2096, %v2083
  %v2098 = vpop.permute.xlu0 %2097
  %2101 = vset.pattern.permute.xlu0 7
  %2102 = vperm.xlu0 %2101, %v2084
  %v2103 = vpop.permute.xlu0 %2102
  %2106 = vset.pattern.permute.xlu0 7
  %2107 = vperm.xlu0 %2106, %v2085
  %v2108 = vpop.permute.xlu0 %2107
  %2111 = vset.pattern.permute.xlu0 7
  %2112 = vperm.xlu0 %2111, %v2086
  %v2113 = vpop.permute.xlu0 %2112
  %2116 = vset.pattern.permute.xlu0 7
  %2117 = vperm.xlu0 %2116, %v2087
  %v2118 = vpop.permute.xlu0 %2117
  %2121 = vset.pattern.permute.xlu0 7
  %2122 = vperm.xlu0 %2121, %v2088
  %v2123 = vpop.permute.xlu0 %2122
  %2126 = vset.pattern.permute.xlu0 7
  %2127 = vperm.xlu0 %2126, %v2089
  %v2128 = vpop.permute.xlu0 %2127
  %v2146 = vunpack.c.l.b16 %v2066
  %v2147 = vunpack.c.h.b16 %v2066
  %v2148 = vunpack.c.l.b16 %v2067
  %v2149 = vunpack.c.l.b16 %v2068
  %v2150 = vunpack.c.h.b16 %v2068
  %v2151 = vunpack.c.l.b16 %v2069
  %v2152 = vunpack.c.l.b16 %v2070
  %v2153 = vunpack.c.h.b16 %v2070
  %v2154 = vunpack.c.l.b16 %v2071
  %v2155 = vunpack.c.l.b16 %v2072
  %v2156 = vunpack.c.h.b16 %v2072
  %v2157 = vunpack.c.l.b16 %v2073
  %v2158 = vunpack.c.l.b16 %v2074
  %v2159 = vunpack.c.h.b16 %v2074
  %v2160 = vunpack.c.l.b16 %v2075
  %v2161 = vunpack.c.l.b16 %v2076
  %v2162 = vunpack.c.h.b16 %v2076
  %v2163 = vunpack.c.l.b16 %v2077
  %v2164 = vunpack.c.l.b16 %v2078
  %v2165 = vunpack.c.h.b16 %v2078
  %v2166 = vunpack.c.l.b16 %v2079
  %v2167 = vunpack.c.l.b16 %v2080
  %v2168 = vunpack.c.h.b16 %v2080
  %v2169 = vunpack.c.l.b16 %v2081
  %v2170 = vpack.c.b16 %v2149, %v2146
  %v2171 = vpack.c.b16 %v2150, %v2147
  %v2172 = vpack.c.b16 %v2151, %v2148
  %v2173 = vpack.c.b16 %v2155, %v2152
  %v2174 = vpack.c.b16 %v2156, %v2153
  %v2175 = vpack.c.b16 %v2157, %v2154
  %v2176 = vpack.c.b16 %v2161, %v2158
  %v2177 = vpack.c.b16 %v2162, %v2159
  %v2178 = vpack.c.b16 %v2163, %v2160
  %v2179 = vpack.c.b16 %v2167, %v2164
  %v2180 = vpack.c.b16 %v2168, %v2165
  %v2181 = vpack.c.b16 %v2169, %v2166
  %v2191 = vsel %vm1624, %v2172, 0
  %v2194 = vsel %vm1624, %v2175, 0
  %v2197 = vsel %vm1624, %v2178, 0
  %v2200 = vsel %vm1624, %v2181, 0
  %2202 = vmatprep.subr.bf16.mxu0 0
  %2203 = vmatpush1.bf16.msra.mxu0 %v2006
  %2204 = vmatprep.subr.bf16.mxu0 0
  %2205 = vmatpush1.bf16.msra.mxu0 %v2008
  %2206 = vmatprep.subr.bf16.mxu0 0
  %2207 = vmatpush1.bf16.msra.mxu0 %v2013
  %2208 = vmatprep.subr.bf16.mxu0 0
  %2209 = vmatpush1.bf16.msra.mxu0 %v2015
  %2210 = vmatprep.subr.bf16.mxu0 0
  %2211 = vmatpush1.bf16.msra.mxu0 %v2019
  %2212 = vmatprep.subr.bf16.mxu0 0
  %2213 = vmatpush1.bf16.msra.mxu0 %v2021
  %2214 = vmatprep.subr.bf16.mxu0 0
  %2215 = vmatpush1.bf16.msra.mxu0 %v2025
  %2216 = vmatprep.subr.bf16.mxu0 0
  %2217 = vmatpush1.bf16.msra.mxu0 %v2027
  %2218 = vmatprep.subr.bf16.mxu0 0
  %2219 = vmatpush1.bf16.msra.mxu0 %v2031
  %2220 = vmatprep.subr.bf16.mxu0 0
  %2221 = vmatpush1.bf16.msra.mxu0 %v2033
  %2222 = vmatprep.subr.bf16.mxu0 0
  %2223 = vmatpush1.bf16.msra.mxu0 %v2037
  %2224 = vmatprep.subr.bf16.mxu0 0
  %2225 = vmatpush1.bf16.msra.mxu0 %v2039
  %2226 = vmatprep.subr.bf16.mxu0 0
  %2227 = vmatpush1.bf16.msra.mxu0 %v2046
  %2228 = vmatprep.subr.bf16.mxu0 0
  %2229 = vmatpush1.bf16.msra.mxu0 %v2047
  %2230 = vmatprep.subr.bf16.mxu0 0
  %2231 = vmatpush1.bf16.msra.mxu0 %v2054
  %2232 = vmatprep.subr.bf16.mxu0 0
  %2233 = vmatpush1.bf16.msra.mxu0 %v2055
  %2234 = vmatprep.mubr.bf16.mxu0 %v2171
  %2235 = vmatmul.mubr.bf16.gmra.mrb[0].mxu0 %v2170
  %v2236 = vpop.f32.mrb[0].mxu0
  %v2237 = vadd.f32 %v2093, %v2236
  %v2238 = vpop.f32.mrb[0].mxu0
  %v2239 = vpop.f32.mrb[0].mxu0
  %v2240 = vadd.f32 %v2098, %v2239
  %v2241 = vpop.f32.mrb[0].mxu0
  %2242 = vmatprep.mubr.bf16.mxu0 %v2174
  %2243 = vmatmul.mubr.bf16.gmra.mrb[0].mxu0 %v2173
  %v2244 = vpop.f32.mrb[0].mxu0
  %v2245 = vadd.f32 %v2103, %v2244
  %v2246 = vpop.f32.mrb[0].mxu0
  %v2247 = vpop.f32.mrb[0].mxu0
  %v2248 = vadd.f32 %v2108, %v2247
  %v2249 = vpop.f32.mrb[0].mxu0
  %2250 = vmatprep.mubr.bf16.mxu0 %v2177
  %2251 = vmatmul.mubr.bf16.gmra.mrb[0].mxu0 %v2176
  %v2252 = vpop.f32.mrb[0].mxu0
  %v2253 = vadd.f32 %v2113, %v2252
  %v2254 = vpop.f32.mrb[0].mxu0
  %v2255 = vpop.f32.mrb[0].mxu0
  %v2256 = vadd.f32 %v2118, %v2255
  %v2257 = vpop.f32.mrb[0].mxu0
  %2258 = vmatprep.mubr.bf16.mxu0 %v2180
  %2259 = vmatmul.mubr.bf16.gmra.mrb[0].mxu0 %v2179
  %v2260 = vpop.f32.mrb[0].mxu0
  %v2261 = vadd.f32 %v2123, %v2260
  %v2262 = vpop.f32.mrb[0].mxu0
  %v2263 = vpop.f32.mrb[0].mxu0
  %v2264 = vadd.f32 %v2128, %v2263
  %v2265 = vpop.f32.mrb[0].mxu0
  %2266 = vdwg.mxu0
  %2267 = vmatprep.subr.bf16.mxu0 0
  %2268 = vmatpush1.bf16.msra.mxu0 %v2062
  %2269 = vmatprep.subr.bf16.mxu0 0
  %2270 = vmatpush1.bf16.msra.mxu0 %v2063
  %2271 = vmatprep.subr.bf16.mxu0 0
  %2272 = vmatpush1.bf16.msra.mxu0 0
  %2273 = vmatprep.subr.bf16.mxu0 0
  %2274 = vmatpush1.bf16.msra.mxu0 0
  %2275 = vmatprep.subr.bf16.mxu0 0
  %2276 = vmatpush1.bf16.msra.mxu0 0
  %2277 = vmatprep.subr.bf16.mxu0 0
  %2278 = vmatpush1.bf16.msra.mxu0 0
  %2279 = vmatprep.subr.bf16.mxu0 0
  %2280 = vmatpush1.bf16.msra.mxu0 0
  %2281 = vmatprep.subr.bf16.mxu0 0
  %2282 = vmatpush1.bf16.msra.mxu0 0
  %2283 = vmatprep.subr.bf16.mxu0 0
  %2284 = vmatpush1.bf16.msra.mxu0 0
  %2285 = vmatprep.subr.bf16.mxu0 0
  %2286 = vmatpush1.bf16.msra.mxu0 0
  %2287 = vmatprep.subr.bf16.mxu0 0
  %2288 = vmatpush1.bf16.msra.mxu0 0
  %2289 = vmatprep.subr.bf16.mxu0 0
  %2290 = vmatpush1.bf16.msra.mxu0 0
  %2291 = vmatprep.subr.bf16.mxu0 0
  %2292 = vmatpush1.bf16.msra.mxu0 0
  %2293 = vmatprep.subr.bf16.mxu0 0
  %2294 = vmatpush1.bf16.msra.mxu0 0
  %2295 = vmatprep.subr.bf16.mxu0 0
  %2296 = vmatpush1.bf16.msra.mxu0 0
  %2297 = vmatprep.subr.bf16.mxu0 0
  %2298 = vmatpush1.bf16.msra.mxu0 0
  %2299 = vmatprep.mubr.bf16.mxu0 0
  %2300 = vmatmul.mubr.bf16.gmra.mrb[0].mxu0 %v2191
  %v2301 = vpop.f32.mrb[0].mxu0
  %v2302 = vadd.f32 %v2237, %v2301
  %v2303 = vpop.f32.mrb[0].mxu0
  %v2304 = vpop.f32.mrb[0].mxu0
  %v2305 = vadd.f32 %v2240, %v2304
  %v2306 = vpop.f32.mrb[0].mxu0
  %2307 = vmatprep.mubr.bf16.mxu0 0
  %2308 = vmatmul.mubr.bf16.gmra.mrb[0].mxu0 %v2194
  %v2309 = vpop.f32.mrb[0].mxu0
  %v2310 = vadd.f32 %v2245, %v2309
  %v2311 = vpop.f32.mrb[0].mxu0
  %v2312 = vpop.f32.mrb[0].mxu0
  %v2313 = vadd.f32 %v2248, %v2312
  %v2314 = vpop.f32.mrb[0].mxu0
  %2315 = vmatprep.mubr.bf16.mxu0 0
  %2316 = vmatmul.mubr.bf16.gmra.mrb[0].mxu0 %v2197
  %v2317 = vpop.f32.mrb[0].mxu0
  %v2318 = vadd.f32 %v2253, %v2317
  %v2319 = vpop.f32.mrb[0].mxu0
  %v2320 = vpop.f32.mrb[0].mxu0
  %v2321 = vadd.f32 %v2256, %v2320
  %v2322 = vpop.f32.mrb[0].mxu0
  %2323 = vmatprep.mubr.bf16.mxu0 0
  %2324 = vmatmul.mubr.bf16.gmra.mrb[0].mxu0 %v2200
  %v2325 = vpop.f32.mrb[0].mxu0
  %v2326 = vadd.f32 %v2261, %v2325
  %v2327 = vpop.f32.mrb[0].mxu0
  %v2328 = vpop.f32.mrb[0].mxu0
  %v2329 = vadd.f32 %v2264, %v2328
  %v2330 = vpop.f32.mrb[0].mxu0
  %2331 = vdwg.mxu0
  %v2332 = vmax.f32 %v2302, 0.0
  %v2333 = vmax.f32 %v2305, 0.0
  %v2334 = vmax.f32 %v2310, 0.0
  %v2335 = vmax.f32 %v2313, 0.0
  %v2336 = vmax.f32 %v2318, 0.0
  %v2337 = vmax.f32 %v2321, 0.0
  %v2338 = vmax.f32 %v2326, 0.0
  %v2339 = vmax.f32 %v2329, 0.0
  %v2340 = vld [vmem:[%s4] sm:$0xff]
  %v2341 = vld [vmem:[%s4 + $0x8] sm:$0xff]
  %v2342 = vld [vmem:[%s4 + $0x10] sm:$0xff]
  %v2343 = vld [vmem:[%s4 + $0x18] sm:$0xff]
  %v2344 = vld [vmem:[%s4 + $0x20] sm:$0xff]
  %v2345 = vld [vmem:[%s4 + $0x28] sm:$0xff]
  %v2346 = vld [vmem:[%s4 + $0x30] sm:$0xff]
  %v2347 = vld [vmem:[%s4 + $0x38] sm:$0xff]
  %v2348 = vld [vmem:[%s4 + $0x40] sm:$0xff]
  %v2349 = vld [vmem:[%s4 + $0x48] sm:$0xff]
  %v2350 = vld [vmem:[%s4 + $0x50] sm:$0xff]
  %v2351 = vld [vmem:[%s4 + $0x58] sm:$0xff]
  %v2352 = vld [vmem:[%s4 + $0x60] sm:$0xff]
  %v2353 = vld [vmem:[%s4 + $0x68] sm:$0xff]
  %v2354 = vld [vmem:[%s4 + $0x70] sm:$0xff]
  %v2355 = vpack.c.bf16 %v2333, %v2332
  %v2356 = vpack.c.bf16 %v2335, %v2334
  %v2357 = vpack.c.bf16 %v2337, %v2336
  %v2358 = vpack.c.bf16 %v2339, %v2338
  %v2374 = vunpack.c.l.b16 %v2340
  %v2375 = vunpack.c.h.b16 %v2340
  %v2376 = vunpack.c.l.b16 %v2341
  %v2377 = vunpack.c.h.b16 %v2341
  %v2378 = vunpack.c.l.b16 %v2342
  %v2379 = vunpack.c.h.b16 %v2342
  %v2380 = vunpack.c.l.b16 %v2343
  %v2381 = vunpack.c.h.b16 %v2343
  %v2382 = vunpack.c.l.b16 %v2344
  %v2383 = vunpack.c.h.b16 %v2344
  %v2384 = vunpack.c.l.b16 %v2345
  %v2385 = vunpack.c.h.b16 %v2345
  %v2386 = vunpack.c.l.b16 %v2346
  %v2387 = vunpack.c.h.b16 %v2346
  %v2388 = vunpack.c.l.b16 %v2347
  %v2389 = vunpack.c.h.b16 %v2347
  %v2390 = vunpack.c.l.b16 %v2348
  %v2391 = vunpack.c.h.b16 %v2348
  %v2392 = vunpack.c.l.b16 %v2349
  %v2393 = vunpack.c.h.b16 %v2349
  %v2394 = vunpack.c.l.b16 %v2350
  %v2395 = vunpack.c.h.b16 %v2350
  %v2396 = vunpack.c.l.b16 %v2351
  %v2397 = vunpack.c.h.b16 %v2351
  %v2398 = vunpack.c.l.b16 %v2352
  %v2399 = vunpack.c.h.b16 %v2352
  %v2400 = vunpack.c.l.b16 %v2353
  %v2401 = vunpack.c.h.b16 %v2353
  %v2402 = vunpack.c.l.b16 %v2354
  %v2403 = vunpack.c.h.b16 %v2354
  %v2404 = vpack.c.b16 %v2376, %v2374
  %v2405 = vpack.c.b16 %v2377, %v2375
  %v2406 = vpack.c.b16 %v2380, %v2378
  %v2407 = vpack.c.b16 %v2381, %v2379
  %v2408 = vpack.c.b16 %v2384, %v2382
  %v2409 = vpack.c.b16 %v2385, %v2383
  %v2410 = vpack.c.b16 %v2388, %v2386
  %v2411 = vpack.c.b16 %v2389, %v2387
  %v2412 = vpack.c.b16 %v2392, %v2390
  %v2413 = vpack.c.b16 %v2393, %v2391
  %v2414 = vpack.c.b16 %v2396, %v2394
  %v2415 = vpack.c.b16 %v2397, %v2395
  %v2416 = vpack.c.b16 %v2400, %v2398
  %v2417 = vpack.c.b16 %v2401, %v2399
  %v2418 = vpack.c.b16 %v2402, %v2402
  %v2419 = vpack.c.b16 %v2403, %v2403
  %2420 = vrot.lane.b32.xlu0 %v2404, 8
  %v2421 = vpop.permute.xlu0 %2420
  %2422 = vrot.lane.b32.xlu0 %v2405, 8
  %v2423 = vpop.permute.xlu0 %2422
  %2424 = vrot.lane.b32.xlu0 %v2406, 8
  %v2425 = vpop.permute.xlu0 %2424
  %2426 = vrot.lane.b32.xlu0 %v2407, 8
  %v2427 = vpop.permute.xlu0 %2426
  %2428 = vrot.lane.b32.xlu0 %v2408, 8
  %v2429 = vpop.permute.xlu0 %2428
  %2430 = vrot.lane.b32.xlu0 %v2409, 8
  %v2431 = vpop.permute.xlu0 %2430
  %2432 = vrot.lane.b32.xlu0 %v2410, 8
  %v2433 = vpop.permute.xlu0 %2432
  %2434 = vrot.lane.b32.xlu0 %v2411, 8
  %v2435 = vpop.permute.xlu0 %2434
  %2436 = vrot.lane.b32.xlu0 %v2412, 8
  %v2437 = vpop.permute.xlu0 %2436
  %2438 = vrot.lane.b32.xlu0 %v2413, 8
  %v2439 = vpop.permute.xlu0 %2438
  %2440 = vrot.lane.b32.xlu0 %v2414, 8
  %v2441 = vpop.permute.xlu0 %2440
  %2442 = vrot.lane.b32.xlu0 %v2415, 8
  %v2443 = vpop.permute.xlu0 %2442
  %2444 = vrot.lane.b32.xlu0 %v2416, 8
  %v2445 = vpop.permute.xlu0 %2444
  %2446 = vrot.lane.b32.xlu0 %v2417, 8
  %v2447 = vpop.permute.xlu0 %2446
  %2448 = vrot.lane.b32.xlu0 %v2418, 8
  %v2449 = vpop.permute.xlu0 %2448
  %2450 = vrot.lane.b32.xlu0 %v2419, 8
  %v2451 = vpop.permute.xlu0 %2450
  %vm2452 = vcmask 64512
  %v2453 = vsel %vm2452, %v2421, %v2423
  %v2454 = vsel %vm2452, %v2425, %v2427
  %v2455 = vsel %vm2452, %v2429, %v2431
  %v2456 = vsel %vm2452, %v2433, %v2435
  %v2457 = vsel %vm2452, %v2437, %v2439
  %v2458 = vsel %vm2452, %v2441, %v2443
  %v2459 = vsel %vm2452, %v2445, %v2447
  %v2460 = vsel %vm2452, %v2449, %v2451
  %vm2468 = vcmask 982016
  %v2470 = vsel %vm2468, %v2355, 0
  %v2473 = vsel %vm2468, %v2356, 0
  %v2476 = vsel %vm2468, %v2357, 0
  %v2479 = vsel %vm2468, %v2358, 0
  %v2482 = vsel %vm282, %v2460, 0
  %2484 = vmatprep.subr.bf16.mxu0 0
  %2485 = vmatpush1.bf16.msra.mxu0 %v2453
  %2486 = vmatprep.subr.bf16.mxu0 0
  %2487 = vmatpush1.bf16.msra.mxu0 %v2454
  %2488 = vmatprep.subr.bf16.mxu0 0
  %2489 = vmatpush1.bf16.msra.mxu0 %v2455
  %2490 = vmatprep.subr.bf16.mxu0 0
  %2491 = vmatpush1.bf16.msra.mxu0 %v2456
  %2492 = vmatprep.subr.bf16.mxu0 0
  %2493 = vmatpush1.bf16.msra.mxu0 %v2457
  %2494 = vmatprep.subr.bf16.mxu0 0
  %2495 = vmatpush1.bf16.msra.mxu0 %v2458
  %2496 = vmatprep.subr.bf16.mxu0 0
  %2497 = vmatpush1.bf16.msra.mxu0 %v2459
  %2498 = vmatprep.subr.bf16.mxu0 0
  %2499 = vmatpush1.bf16.msra.mxu0 %v2482
  %2500 = vmatprep.subr.bf16.mxu0 0
  %2501 = vmatpush1.bf16.msra.mxu0 0
  %2502 = vmatprep.subr.bf16.mxu0 0
  %2503 = vmatpush1.bf16.msra.mxu0 0
  %2504 = vmatprep.subr.bf16.mxu0 0
  %2505 = vmatpush1.bf16.msra.mxu0 0
  %2506 = vmatprep.subr.bf16.mxu0 0
  %2507 = vmatpush1.bf16.msra.mxu0 0
  %2508 = vmatprep.subr.bf16.mxu0 0
  %2509 = vmatpush1.bf16.msra.mxu0 0
  %2510 = vmatprep.subr.bf16.mxu0 0
  %2511 = vmatpush1.bf16.msra.mxu0 0
  %2512 = vmatprep.subr.bf16.mxu0 0
  %2513 = vmatpush1.bf16.msra.mxu0 0
  %2514 = vmatprep.subr.bf16.mxu0 0
  %2515 = vmatpush1.bf16.msra.mxu0 0
  %2516 = vmatprep.mubr.bf16.mxu0 0
  %2517 = vmatmul.mubr.bf16.gmra.mrb[0].mxu0 %v2470
  %v2518 = vpop.f32.mrb[0].mxu0
  %v2519 = vadd.f32 0.0, %v2518
  %v2520 = vpop.f32.mrb[0].mxu0
  %v2521 = vpop.f32.mrb[0].mxu0
  %v2522 = vadd.f32 0.0, %v2521
  %v2523 = vpop.f32.mrb[0].mxu0
  %2524 = vmatprep.mubr.bf16.mxu0 0
  %2525 = vmatmul.mubr.bf16.gmra.mrb[0].mxu0 %v2473
  %v2526 = vpop.f32.mrb[0].mxu0
  %v2527 = vadd.f32 0.0, %v2526
  %v2528 = vpop.f32.mrb[0].mxu0
  %v2529 = vpop.f32.mrb[0].mxu0
  %v2530 = vadd.f32 0.0, %v2529
  %v2531 = vpop.f32.mrb[0].mxu0
  %2532 = vmatprep.mubr.bf16.mxu0 0
  %2533 = vmatmul.mubr.bf16.gmra.mrb[0].mxu0 %v2476
  %v2534 = vpop.f32.mrb[0].mxu0
  %v2535 = vadd.f32 0.0, %v2534
  %v2536 = vpop.f32.mrb[0].mxu0
  %v2537 = vpop.f32.mrb[0].mxu0
  %v2538 = vadd.f32 0.0, %v2537
  %v2539 = vpop.f32.mrb[0].mxu0
  %2540 = vmatprep.mubr.bf16.mxu0 0
  %2541 = vmatmul.mubr.bf16.gmra.mrb[0].mxu0 %v2479
  %v2542 = vpop.f32.mrb[0].mxu0
  %v2543 = vadd.f32 0.0, %v2542
  %v2544 = vpop.f32.mrb[0].mxu0
  %v2545 = vpop.f32.mrb[0].mxu0
  %v2546 = vadd.f32 0.0, %v2545
  %v2547 = vpop.f32.mrb[0].mxu0
  %2548 = vdwg.mxu0
  %v2549 = vpack.c.bf16 %v2522, %v2519
  %v2550 = vpack.c.bf16 %v2530, %v2527
  %v2551 = vpack.c.bf16 %v2538, %v2535
  %v2552 = vpack.c.bf16 %v2546, %v2543
  %2557 = vrot.lane.b32.xlu0 %v2549, 5
  %v2558 = vpop.permute.xlu0 %2557
  %2559 = vrot.lane.b32.xlu0 %v2550, 5
  %v2560 = vpop.permute.xlu0 %2559
  %2561 = vrot.lane.b32.xlu0 %v2551, 5
  %v2562 = vpop.permute.xlu0 %2561
  %2563 = vrot.lane.b32.xlu0 %v2552, 5
  %v2564 = vpop.permute.xlu0 %2563
  %vm2565 = vcmask 39936
  %v2567 = vsel %vm2565, 0, %v2558
  %v2569 = vsel %vm2565, 0, %v2560
  %v2571 = vsel %vm2565, 0, %v2562
  %v2573 = vsel %vm2565, 0, %v2564
  %vm2574 = vcmask 433152
  %v2575 = vsel %vm2574, %v2567, 0
  %v2577 = vsel %vm2574, %v2569, 0
  %v2579 = vsel %vm2574, %v2571, 0
  %v2581 = vsel %vm2574, %v2573, 0
  %2587 = vrot.lane.b32.xlu0 %v2575, 127
  %v2588 = vpop.permute.xlu0 %2587
  %2589 = vrot.lane.b32.xlu0 %v2577, 127
  %v2590 = vpop.permute.xlu0 %2589
  %2591 = vrot.lane.b32.xlu0 %v2579, 127
  %v2592 = vpop.permute.xlu0 %2591
  %2593 = vrot.lane.b32.xlu0 %v2581, 127
  %v2594 = vpop.permute.xlu0 %2593
  %2599 = vrot.lane.b32.xlu0 %v2575, 126
  %v2600 = vpop.permute.xlu0 %2599
  %2601 = vrot.lane.b32.xlu0 %v2577, 126
  %v2602 = vpop.permute.xlu0 %2601
  %2603 = vrot.lane.b32.xlu0 %v2579, 126
  %v2604 = vpop.permute.xlu0 %2603
  %2605 = vrot.lane.b32.xlu0 %v2581, 126
  %v2606 = vpop.permute.xlu0 %2605
  %2611 = vrot.lane.b32.xlu0 %v2575, 124
  %v2612 = vpop.permute.xlu0 %2611
  %2613 = vrot.lane.b32.xlu0 %v2577, 124
  %v2614 = vpop.permute.xlu0 %2613
  %2615 = vrot.lane.b32.xlu0 %v2579, 124
  %v2616 = vpop.permute.xlu0 %2615
  %2617 = vrot.lane.b32.xlu0 %v2581, 124
  %v2618 = vpop.permute.xlu0 %2617
  %2623 = vrot.lane.b32.xlu0 %v2575, 123
  %v2624 = vpop.permute.xlu0 %2623
  %2625 = vrot.lane.b32.xlu0 %v2577, 123
  %v2626 = vpop.permute.xlu0 %2625
  %2627 = vrot.lane.b32.xlu0 %v2579, 123
  %v2628 = vpop.permute.xlu0 %2627
  %2629 = vrot.lane.b32.xlu0 %v2581, 123
  %v2630 = vpop.permute.xlu0 %2629
  %2635 = vrot.lane.b32.xlu0 %v2575, 122
  %v2636 = vpop.permute.xlu0 %2635
  %2637 = vrot.lane.b32.xlu0 %v2577, 122
  %v2638 = vpop.permute.xlu0 %2637
  %2639 = vrot.lane.b32.xlu0 %v2579, 122
  %v2640 = vpop.permute.xlu0 %2639
  %2641 = vrot.lane.b32.xlu0 %v2581, 122
  %v2642 = vpop.permute.xlu0 %2641
  %2647 = vrot.lane.b32.xlu0 %v2575, 120
  %v2648 = vpop.permute.xlu0 %2647
  %2649 = vrot.lane.b32.xlu0 %v2577, 120
  %v2650 = vpop.permute.xlu0 %2649
  %2651 = vrot.lane.b32.xlu0 %v2579, 120
  %v2652 = vpop.permute.xlu0 %2651
  %2653 = vrot.lane.b32.xlu0 %v2581, 120
  %v2654 = vpop.permute.xlu0 %2653
  %2659 = vrot.lane.b32.xlu0 %v2575, 119
  %v2660 = vpop.permute.xlu0 %2659
  %2661 = vrot.lane.b32.xlu0 %v2577, 119
  %v2662 = vpop.permute.xlu0 %2661
  %2663 = vrot.lane.b32.xlu0 %v2579, 119
  %v2664 = vpop.permute.xlu0 %2663
  %2665 = vrot.lane.b32.xlu0 %v2581, 119
  %v2666 = vpop.permute.xlu0 %2665
  %2671 = vrot.lane.b32.xlu0 %v2575, 118
  %v2672 = vpop.permute.xlu0 %2671
  %2673 = vrot.lane.b32.xlu0 %v2577, 118
  %v2674 = vpop.permute.xlu0 %2673
  %2675 = vrot.lane.b32.xlu0 %v2579, 118
  %v2676 = vpop.permute.xlu0 %2675
  %2677 = vrot.lane.b32.xlu0 %v2581, 118
  %v2678 = vpop.permute.xlu0 %2677
  %v2683 = vld [vmem:[%s1 + $0x3c] sm:$0xff]
  %v2684 = vld [vmem:[%s1 + $0x44] sm:$0xff]
  %v2685 = vld [vmem:[%s1 + $0x4c] sm:$0xf]
  %v2686 = vld [vmem:[%s1 + $0x90] sm:$0xff]
  %v2687 = vld [vmem:[%s1 + $0x98] sm:$0xff]
  %v2688 = vld [vmem:[%s1 + $0xa0] sm:$0xf]
  %v2689 = vld [vmem:[%s1 + $0xe4] sm:$0xff]
  %v2690 = vld [vmem:[%s1 + $0xec] sm:$0xff]
  %v2691 = vld [vmem:[%s1 + $0xf4] sm:$0xf]
  %v2692 = vld [vmem:[%s1 + $0x138] sm:$0xff]
  %v2693 = vld [vmem:[%s1 + $0x140] sm:$0xff]
  %v2694 = vld [vmem:[%s1 + $0x148] sm:$0xf]
  %v2695 = vld [vmem:[%s1 + $0x18c] sm:$0xff]
  %v2696 = vld [vmem:[%s1 + $0x194] sm:$0xff]
  %v2697 = vld [vmem:[%s1 + $0x19c] sm:$0xf]
  %v2698 = vld [vmem:[%s1 + $0x1e0] sm:$0xff]
  %v2699 = vld [vmem:[%s1 + $0x1e8] sm:$0xff]
  %v2700 = vld [vmem:[%s1 + $0x1f0] sm:$0xf]
  %v2701 = vld [vmem:[%s1 + $0x234] sm:$0xff]
  %v2702 = vld [vmem:[%s1 + $0x23c] sm:$0xff]
  %v2703 = vld [vmem:[%s1 + $0x244] sm:$0xf]
  %v2704 = vld [vmem:[%s1 + $0x288] sm:$0xff]
  %v2705 = vld [vmem:[%s1 + $0x290] sm:$0xff]
  %v2706 = vld [vmem:[%s1 + $0x298] sm:$0xf]
  %2707 = vset.pattern.permute.xlu0 8
  %2708 = vperm.xlu0 %2707, %v2082
  %v2709 = vpop.permute.xlu0 %2708
  %2711 = vset.pattern.permute.xlu0 8
  %2712 = vperm.xlu0 %2711, %v2083
  %v2713 = vpop.permute.xlu0 %2712
  %2715 = vset.pattern.permute.xlu0 8
  %2716 = vperm.xlu0 %2715, %v2084
  %v2717 = vpop.permute.xlu0 %2716
  %2719 = vset.pattern.permute.xlu0 8
  %2720 = vperm.xlu0 %2719, %v2085
  %v2721 = vpop.permute.xlu0 %2720
  %2723 = vset.pattern.permute.xlu0 8
  %2724 = vperm.xlu0 %2723, %v2086
  %v2725 = vpop.permute.xlu0 %2724
  %2727 = vset.pattern.permute.xlu0 8
  %2728 = vperm.xlu0 %2727, %v2087
  %v2729 = vpop.permute.xlu0 %2728
  %2731 = vset.pattern.permute.xlu0 8
  %2732 = vperm.xlu0 %2731, %v2088
  %v2733 = vpop.permute.xlu0 %2732
  %2735 = vset.pattern.permute.xlu0 8
  %2736 = vperm.xlu0 %2735, %v2089
  %v2737 = vpop.permute.xlu0 %2736
  %v2763 = vunpack.c.l.b16 %v2683
  %v2764 = vunpack.c.h.b16 %v2683
  %v2765 = vunpack.c.l.b16 %v2684
  %v2766 = vunpack.c.h.b16 %v2684
  %v2767 = vunpack.c.l.b16 %v2685
  %v2768 = vunpack.c.l.b16 %v2686
  %v2769 = vunpack.c.h.b16 %v2686
  %v2770 = vunpack.c.l.b16 %v2687
  %v2771 = vunpack.c.h.b16 %v2687
  %v2772 = vunpack.c.l.b16 %v2688
  %v2773 = vunpack.c.l.b16 %v2689
  %v2774 = vunpack.c.h.b16 %v2689
  %v2775 = vunpack.c.l.b16 %v2690
  %v2776 = vunpack.c.h.b16 %v2690
  %v2777 = vunpack.c.l.b16 %v2691
  %v2778 = vunpack.c.l.b16 %v2692
  %v2779 = vunpack.c.h.b16 %v2692
  %v2780 = vunpack.c.l.b16 %v2693
  %v2781 = vunpack.c.h.b16 %v2693
  %v2782 = vunpack.c.l.b16 %v2694
  %v2783 = vunpack.c.l.b16 %v2695
  %v2784 = vunpack.c.h.b16 %v2695
  %v2785 = vunpack.c.l.b16 %v2696
  %v2786 = vunpack.c.h.b16 %v2696
  %v2787 = vunpack.c.l.b16 %v2697
  %v2788 = vunpack.c.l.b16 %v2698
  %v2789 = vunpack.c.h.b16 %v2698
  %v2790 = vunpack.c.l.b16 %v2699
  %v2791 = vunpack.c.h.b16 %v2699
  %v2792 = vunpack.c.l.b16 %v2700
  %v2793 = vunpack.c.l.b16 %v2701
  %v2794 = vunpack.c.h.b16 %v2701
  %v2795 = vunpack.c.l.b16 %v2702
  %v2796 = vunpack.c.h.b16 %v2702
  %v2797 = vunpack.c.l.b16 %v2703
  %v2798 = vunpack.c.l.b16 %v2704
  %v2799 = vunpack.c.h.b16 %v2704
  %v2800 = vunpack.c.l.b16 %v2705
  %v2801 = vunpack.c.h.b16 %v2705
  %v2802 = vunpack.c.l.b16 %v2706
  %v2803 = vpack.c.b16 %v2768, %v2763
  %v2804 = vpack.c.b16 %v2769, %v2764
  %v2805 = vpack.c.b16 %v2770, %v2765
  %v2806 = vpack.c.b16 %v2771, %v2766
  %v2807 = vpack.c.b16 %v2772, %v2767
  %v2808 = vpack.c.b16 %v2778, %v2773
  %v2809 = vpack.c.b16 %v2779, %v2774
  %v2810 = vpack.c.b16 %v2780, %v2775
  %v2811 = vpack.c.b16 %v2781, %v2776
  %v2812 = vpack.c.b16 %v2782, %v2777
  %v2813 = vpack.c.b16 %v2788, %v2783
  %v2814 = vpack.c.b16 %v2789, %v2784
  %v2815 = vpack.c.b16 %v2790, %v2785
  %v2816 = vpack.c.b16 %v2791, %v2786
  %v2817 = vpack.c.b16 %v2792, %v2787
  %v2818 = vpack.c.b16 %v2798, %v2793
  %v2819 = vpack.c.b16 %v2799, %v2794
  %v2820 = vpack.c.b16 %v2800, %v2795
  %v2821 = vpack.c.b16 %v2801, %v2796
  %v2822 = vpack.c.b16 %v2802, %v2797
  %vm2839 = vcmask 523264
  %v2841 = vsel %vm2839, %v2807, 0
  %v2844 = vsel %vm2839, %v2812, 0
  %v2847 = vsel %vm2839, %v2817, 0
  %v2850 = vsel %vm2839, %v2822, 0
  %2852 = vmatprep.subr.bf16.mxu0 0
  %2853 = vmatpush1.bf16.msra.mxu0 %v2575
  %2854 = vmatprep.subr.bf16.mxu0 0
  %2855 = vmatpush1.bf16.msra.mxu0 %v2577
  %2856 = vmatprep.subr.bf16.mxu0 0
  %2857 = vmatpush1.bf16.msra.mxu0 %v2579
  %2858 = vmatprep.subr.bf16.mxu0 0
  %2859 = vmatpush1.bf16.msra.mxu0 %v2581
  %2860 = vmatprep.subr.bf16.mxu0 0
  %2861 = vmatpush1.bf16.msra.mxu0 %v2588
  %2862 = vmatprep.subr.bf16.mxu0 0
  %2863 = vmatpush1.bf16.msra.mxu0 %v2590
  %2864 = vmatprep.subr.bf16.mxu0 0
  %2865 = vmatpush1.bf16.msra.mxu0 %v2592
  %2866 = vmatprep.subr.bf16.mxu0 0
  %2867 = vmatpush1.bf16.msra.mxu0 %v2594
  %2868 = vmatprep.subr.bf16.mxu0 0
  %2869 = vmatpush1.bf16.msra.mxu0 %v2600
  %2870 = vmatprep.subr.bf16.mxu0 0
  %2871 = vmatpush1.bf16.msra.mxu0 %v2602
  %2872 = vmatprep.subr.bf16.mxu0 0
  %2873 = vmatpush1.bf16.msra.mxu0 %v2604
  %2874 = vmatprep.subr.bf16.mxu0 0
  %2875 = vmatpush1.bf16.msra.mxu0 %v2606
  %2876 = vmatprep.subr.bf16.mxu0 0
  %2877 = vmatpush1.bf16.msra.mxu0 %v2612
  %2878 = vmatprep.subr.bf16.mxu0 0
  %2879 = vmatpush1.bf16.msra.mxu0 %v2614
  %2880 = vmatprep.subr.bf16.mxu0 0
  %2881 = vmatpush1.bf16.msra.mxu0 %v2616
  %2882 = vmatprep.subr.bf16.mxu0 0
  %2883 = vmatpush1.bf16.msra.mxu0 %v2618
  %2884 = vmatprep.mubr.bf16.mxu0 %v2804
  %2885 = vmatmul.mubr.bf16.gmra.mrb[0].mxu0 %v2803
  %v2886 = vpop.f32.mrb[0].mxu0
  %v2887 = vadd.f32 %v2709, %v2886
  %v2888 = vpop.f32.mrb[0].mxu0
  %v2889 = vpop.f32.mrb[0].mxu0
  %v2890 = vadd.f32 %v2713, %v2889
  %v2891 = vpop.f32.mrb[0].mxu0
  %2892 = vmatprep.mubr.bf16.mxu0 %v2809
  %2893 = vmatmul.mubr.bf16.gmra.mrb[0].mxu0 %v2808
  %v2894 = vpop.f32.mrb[0].mxu0
  %v2895 = vadd.f32 %v2717, %v2894
  %v2896 = vpop.f32.mrb[0].mxu0
  %v2897 = vpop.f32.mrb[0].mxu0
  %v2898 = vadd.f32 %v2721, %v2897
  %v2899 = vpop.f32.mrb[0].mxu0
  %2900 = vmatprep.mubr.bf16.mxu0 %v2814
  %2901 = vmatmul.mubr.bf16.gmra.mrb[0].mxu0 %v2813
  %v2902 = vpop.f32.mrb[0].mxu0
  %v2903 = vadd.f32 %v2725, %v2902
  %v2904 = vpop.f32.mrb[0].mxu0
  %v2905 = vpop.f32.mrb[0].mxu0
  %v2906 = vadd.f32 %v2729, %v2905
  %v2907 = vpop.f32.mrb[0].mxu0
  %2908 = vmatprep.mubr.bf16.mxu0 %v2819
  %2909 = vmatmul.mubr.bf16.gmra.mrb[0].mxu0 %v2818
  %v2910 = vpop.f32.mrb[0].mxu0
  %v2911 = vadd.f32 %v2733, %v2910
  %v2912 = vpop.f32.mrb[0].mxu0
  %v2913 = vpop.f32.mrb[0].mxu0
  %v2914 = vadd.f32 %v2737, %v2913
  %v2915 = vpop.f32.mrb[0].mxu0
  %2916 = vdwg.mxu0
  %2917 = vmatprep.subr.bf16.mxu0 0
  %2918 = vmatpush1.bf16.msra.mxu0 %v2624
  %2919 = vmatprep.subr.bf16.mxu0 0
  %2920 = vmatpush1.bf16.msra.mxu0 %v2626
  %2921 = vmatprep.subr.bf16.mxu0 0
  %2922 = vmatpush1.bf16.msra.mxu0 %v2628
  %2923 = vmatprep.subr.bf16.mxu0 0
  %2924 = vmatpush1.bf16.msra.mxu0 %v2630
  %2925 = vmatprep.subr.bf16.mxu0 0
  %2926 = vmatpush1.bf16.msra.mxu0 %v2636
  %2927 = vmatprep.subr.bf16.mxu0 0
  %2928 = vmatpush1.bf16.msra.mxu0 %v2638
  %2929 = vmatprep.subr.bf16.mxu0 0
  %2930 = vmatpush1.bf16.msra.mxu0 %v2640
  %2931 = vmatprep.subr.bf16.mxu0 0
  %2932 = vmatpush1.bf16.msra.mxu0 %v2642
  %2933 = vmatprep.subr.bf16.mxu0 0
  %2934 = vmatpush1.bf16.msra.mxu0 %v2648
  %2935 = vmatprep.subr.bf16.mxu0 0
  %2936 = vmatpush1.bf16.msra.mxu0 %v2650
  %2937 = vmatprep.subr.bf16.mxu0 0
  %2938 = vmatpush1.bf16.msra.mxu0 %v2652
  %2939 = vmatprep.subr.bf16.mxu0 0
  %2940 = vmatpush1.bf16.msra.mxu0 %v2654
  %2941 = vmatprep.subr.bf16.mxu0 0
  %2942 = vmatpush1.bf16.msra.mxu0 %v2660
  %2943 = vmatprep.subr.bf16.mxu0 0
  %2944 = vmatpush1.bf16.msra.mxu0 %v2662
  %2945 = vmatprep.subr.bf16.mxu0 0
  %2946 = vmatpush1.bf16.msra.mxu0 %v2664
  %2947 = vmatprep.subr.bf16.mxu0 0
  %2948 = vmatpush1.bf16.msra.mxu0 %v2666
  %2949 = vmatprep.mubr.bf16.mxu0 %v2806
  %2950 = vmatmul.mubr.bf16.gmra.mrb[0].mxu0 %v2805
  %v2951 = vpop.f32.mrb[0].mxu0
  %v2952 = vadd.f32 %v2887, %v2951
  %v2953 = vpop.f32.mrb[0].mxu0
  %v2954 = vpop.f32.mrb[0].mxu0
  %v2955 = vadd.f32 %v2890, %v2954
  %v2956 = vpop.f32.mrb[0].mxu0
  %2957 = vmatprep.mubr.bf16.mxu0 %v2811
  %2958 = vmatmul.mubr.bf16.gmra.mrb[0].mxu0 %v2810
  %v2959 = vpop.f32.mrb[0].mxu0
  %v2960 = vadd.f32 %v2895, %v2959
  %v2961 = vpop.f32.mrb[0].mxu0
  %v2962 = vpop.f32.mrb[0].mxu0
  %v2963 = vadd.f32 %v2898, %v2962
  %v2964 = vpop.f32.mrb[0].mxu0
  %2965 = vmatprep.mubr.bf16.mxu0 %v2816
  %2966 = vmatmul.mubr.bf16.gmra.mrb[0].mxu0 %v2815
  %v2967 = vpop.f32.mrb[0].mxu0
  %v2968 = vadd.f32 %v2903, %v2967
  %v2969 = vpop.f32.mrb[0].mxu0
  %v2970 = vpop.f32.mrb[0].mxu0
  %v2971 = vadd.f32 %v2906, %v2970
  %v2972 = vpop.f32.mrb[0].mxu0
  %2973 = vmatprep.mubr.bf16.mxu0 %v2821
  %2974 = vmatmul.mubr.bf16.gmra.mrb[0].mxu0 %v2820
  %v2975 = vpop.f32.mrb[0].mxu0
  %v2976 = vadd.f32 %v2911, %v2975
  %v2977 = vpop.f32.mrb[0].mxu0
  %v2978 = vpop.f32.mrb[0].mxu0
  %v2979 = vadd.f32 %v2914, %v2978
  %v2980 = vpop.f32.mrb[0].mxu0
  %2981 = vdwg.mxu0
  %2982 = vmatprep.subr.bf16.mxu0 0
  %2983 = vmatpush1.bf16.msra.mxu0 %v2672
  %2984 = vmatprep.subr.bf16.mxu0 0
  %2985 = vmatpush1.bf16.msra.mxu0 %v2674
  %2986 = vmatprep.subr.bf16.mxu0 0
  %2987 = vmatpush1.bf16.msra.mxu0 %v2676
  %2988 = vmatprep.subr.bf16.mxu0 0
  %2989 = vmatpush1.bf16.msra.mxu0 %v2678
  %2990 = vmatprep.subr.bf16.mxu0 0
  %2991 = vmatpush1.bf16.msra.mxu0 0
  %2992 = vmatprep.subr.bf16.mxu0 0
  %2993 = vmatpush1.bf16.msra.mxu0 0
  %2994 = vmatprep.subr.bf16.mxu0 0
  %2995 = vmatpush1.bf16.msra.mxu0 0
  %2996 = vmatprep.subr.bf16.mxu0 0
  %2997 = vmatpush1.bf16.msra.mxu0 0
  %2998 = vmatprep.subr.bf16.mxu0 0
  %2999 = vmatpush1.bf16.msra.mxu0 0
  %3000 = vmatprep.subr.bf16.mxu0 0
  %3001 = vmatpush1.bf16.msra.mxu0 0
  %3002 = vmatprep.subr.bf16.mxu0 0
  %3003 = vmatpush1.bf16.msra.mxu0 0
  %3004 = vmatprep.subr.bf16.mxu0 0
  %3005 = vmatpush1.bf16.msra.mxu0 0
  %3006 = vmatprep.subr.bf16.mxu0 0
  %3007 = vmatpush1.bf16.msra.mxu0 0
  %3008 = vmatprep.subr.bf16.mxu0 0
  %3009 = vmatpush1.bf16.msra.mxu0 0
  %3010 = vmatprep.subr.bf16.mxu0 0
  %3011 = vmatpush1.bf16.msra.mxu0 0
  %3012 = vmatprep.subr.bf16.mxu0 0
  %3013 = vmatpush1.bf16.msra.mxu0 0
  %3014 = vmatprep.mubr.bf16.mxu0 0
  %3015 = vmatmul.mubr.bf16.gmra.mrb[0].mxu0 %v2841
  %v3016 = vpop.f32.mrb[0].mxu0
  %v3017 = vadd.f32 %v2952, %v3016
  %v3018 = vpop.f32.mrb[0].mxu0
  %v3019 = vpop.f32.mrb[0].mxu0
  %v3020 = vadd.f32 %v2955, %v3019
  %v3021 = vpop.f32.mrb[0].mxu0
  %3022 = vmatprep.mubr.bf16.mxu0 0
  %3023 = vmatmul.mubr.bf16.gmra.mrb[0].mxu0 %v2844
  %v3024 = vpop.f32.mrb[0].mxu0
  %v3025 = vadd.f32 %v2960, %v3024
  %v3026 = vpop.f32.mrb[0].mxu0
  %v3027 = vpop.f32.mrb[0].mxu0
  %v3028 = vadd.f32 %v2963, %v3027
  %v3029 = vpop.f32.mrb[0].mxu0
  %3030 = vmatprep.mubr.bf16.mxu0 0
  %3031 = vmatmul.mubr.bf16.gmra.mrb[0].mxu0 %v2847
  %v3032 = vpop.f32.mrb[0].mxu0
  %v3033 = vadd.f32 %v2968, %v3032
  %v3034 = vpop.f32.mrb[0].mxu0
  %v3035 = vpop.f32.mrb[0].mxu0
  %v3036 = vadd.f32 %v2971, %v3035
  %v3037 = vpop.f32.mrb[0].mxu0
  %3038 = vmatprep.mubr.bf16.mxu0 0
  %3039 = vmatmul.mubr.bf16.gmra.mrb[0].mxu0 %v2850
  %v3040 = vpop.f32.mrb[0].mxu0
  %v3041 = vadd.f32 %v2976, %v3040
  %v3042 = vpop.f32.mrb[0].mxu0
  %v3043 = vpop.f32.mrb[0].mxu0
  %v3044 = vadd.f32 %v2979, %v3043
  %v3045 = vpop.f32.mrb[0].mxu0
  %3046 = vdwg.mxu0
  %v3047 = vld [vmem:[%s1 + $0x50] sm:$0xf]
  %v3048 = vld [vmem:[%s1 + $0xa4] sm:$0xf]
  %v3049 = vld [vmem:[%s1 + $0xf8] sm:$0xf]
  %v3050 = vld [vmem:[%s1 + $0x14c] sm:$0xf]
  %v3051 = vld [vmem:[%s1 + $0x1a0] sm:$0xf]
  %v3052 = vld [vmem:[%s1 + $0x1f4] sm:$0xf]
  %v3053 = vld [vmem:[%s1 + $0x248] sm:$0xf]
  %v3054 = vld [vmem:[%s1 + $0x29c] sm:$0xf]
  %v3063 = vunpack.c.l.b16 %v3047
  %v3064 = vunpack.c.l.b16 %v3048
  %v3065 = vunpack.c.l.b16 %v3049
  %v3066 = vunpack.c.l.b16 %v3050
  %v3067 = vunpack.c.l.b16 %v3051
  %v3068 = vunpack.c.l.b16 %v3052
  %v3069 = vunpack.c.l.b16 %v3053
  %v3070 = vunpack.c.l.b16 %v3054
  %v3071 = vpack.c.b16 %v3064, %v3063
  %v3072 = vpack.c.b16 %v3066, %v3065
  %v3073 = vpack.c.b16 %v3068, %v3067
  %v3074 = vpack.c.b16 %v3070, %v3069
  %v3076 = vsel %vm1624, %v3071, 0
  %v3079 = vsel %vm1624, %v3072, 0
  %v3082 = vsel %vm1624, %v3073, 0
  %v3085 = vsel %vm1624, %v3074, 0
  %3087 = vmatprep.subr.bf16.mxu0 0
  %3088 = vmatpush1.bf16.msra.mxu0 %v1994
  %3089 = vmatprep.subr.bf16.mxu0 0
  %3090 = vmatpush1.bf16.msra.mxu0 %v1995
  %3091 = vmatprep.subr.bf16.mxu0 0
  %3092 = vmatpush1.bf16.msra.mxu0 0
  %3093 = vmatprep.subr.bf16.mxu0 0
  %3094 = vmatpush1.bf16.msra.mxu0 0
  %3095 = vmatprep.subr.bf16.mxu0 0
  %3096 = vmatpush1.bf16.msra.mxu0 0
  %3097 = vmatprep.subr.bf16.mxu0 0
  %3098 = vmatpush1.bf16.msra.mxu0 0
  %3099 = vmatprep.subr.bf16.mxu0 0
  %3100 = vmatpush1.bf16.msra.mxu0 0
  %3101 = vmatprep.subr.bf16.mxu0 0
  %3102 = vmatpush1.bf16.msra.mxu0 0
  %3103 = vmatprep.subr.bf16.mxu0 0
  %3104 = vmatpush1.bf16.msra.mxu0 0
  %3105 = vmatprep.subr.bf16.mxu0 0
  %3106 = vmatpush1.bf16.msra.mxu0 0
  %3107 = vmatprep.subr.bf16.mxu0 0
  %3108 = vmatpush1.bf16.msra.mxu0 0
  %3109 = vmatprep.subr.bf16.mxu0 0
  %3110 = vmatpush1.bf16.msra.mxu0 0
  %3111 = vmatprep.subr.bf16.mxu0 0
  %3112 = vmatpush1.bf16.msra.mxu0 0
  %3113 = vmatprep.subr.bf16.mxu0 0
  %3114 = vmatpush1.bf16.msra.mxu0 0
  %3115 = vmatprep.subr.bf16.mxu0 0
  %3116 = vmatpush1.bf16.msra.mxu0 0
  %3117 = vmatprep.subr.bf16.mxu0 0
  %3118 = vmatpush1.bf16.msra.mxu0 0
  %3119 = vmatprep.mubr.bf16.mxu0 0
  %3120 = vmatmul.mubr.bf16.gmra.mrb[0].mxu0 %v3076
  %v3121 = vpop.f32.mrb[0].mxu0
  %v3122 = vadd.f32 0.0, %v3121
  %v3123 = vpop.f32.mrb[0].mxu0
  %v3124 = vpop.f32.mrb[0].mxu0
  %v3125 = vadd.f32 0.0, %v3124
  %v3126 = vpop.f32.mrb[0].mxu0
  %3127 = vmatprep.mubr.bf16.mxu0 0
  %3128 = vmatmul.mubr.bf16.gmra.mrb[0].mxu0 %v3079
  %v3129 = vpop.f32.mrb[0].mxu0
  %v3130 = vadd.f32 0.0, %v3129
  %v3131 = vpop.f32.mrb[0].mxu0
  %v3132 = vpop.f32.mrb[0].mxu0
  %v3133 = vadd.f32 0.0, %v3132
  %v3134 = vpop.f32.mrb[0].mxu0
  %3135 = vmatprep.mubr.bf16.mxu0 0
  %3136 = vmatmul.mubr.bf16.gmra.mrb[0].mxu0 %v3082
  %v3137 = vpop.f32.mrb[0].mxu0
  %v3138 = vadd.f32 0.0, %v3137
  %v3139 = vpop.f32.mrb[0].mxu0
  %v3140 = vpop.f32.mrb[0].mxu0
  %v3141 = vadd.f32 0.0, %v3140
  %v3142 = vpop.f32.mrb[0].mxu0
  %3143 = vmatprep.mubr.bf16.mxu0 0
  %3144 = vmatmul.mubr.bf16.gmra.mrb[0].mxu0 %v3085
  %v3145 = vpop.f32.mrb[0].mxu0
  %v3146 = vadd.f32 0.0, %v3145
  %v3147 = vpop.f32.mrb[0].mxu0
  %v3148 = vpop.f32.mrb[0].mxu0
  %v3149 = vadd.f32 0.0, %v3148
  %v3150 = vpop.f32.mrb[0].mxu0
  %3151 = vdwg.mxu0
  %v3152 = vpack.c.bf16 %v3125, %v3122
  %v3153 = vpack.c.bf16 %v3133, %v3130
  %v3154 = vpack.c.bf16 %v3141, %v3138
  %v3155 = vpack.c.bf16 %v3149, %v3146
  %3156 = vset.pattern.permute.xlu0 9
  %3157 = vperm.xlu0 %3156, %v2082
  %v3158 = vpop.permute.xlu0 %3157
  %3160 = vset.pattern.permute.xlu0 9
  %3161 = vperm.xlu0 %3160, %v2083
  %v3162 = vpop.permute.xlu0 %3161
  %3164 = vset.pattern.permute.xlu0 9
  %3165 = vperm.xlu0 %3164, %v2084
  %v3166 = vpop.permute.xlu0 %3165
  %3168 = vset.pattern.permute.xlu0 9
  %3169 = vperm.xlu0 %3168, %v2085
  %v3170 = vpop.permute.xlu0 %3169
  %3172 = vset.pattern.permute.xlu0 9
  %3173 = vperm.xlu0 %3172, %v2086
  %v3174 = vpop.permute.xlu0 %3173
  %3176 = vset.pattern.permute.xlu0 9
  %3177 = vperm.xlu0 %3176, %v2087
  %v3178 = vpop.permute.xlu0 %3177
  %3180 = vset.pattern.permute.xlu0 9
  %3181 = vperm.xlu0 %3180, %v2088
  %v3182 = vpop.permute.xlu0 %3181
  %3184 = vset.pattern.permute.xlu0 9
  %3185 = vperm.xlu0 %3184, %v2089
  %v3186 = vpop.permute.xlu0 %3185
  %v3189 = vsel %vm2468, %v3152, 0
  %v3192 = vsel %vm2468, %v3153, 0
  %v3195 = vsel %vm2468, %v3154, 0
  %v3198 = vsel %vm2468, %v3155, 0
  %3200 = vmatprep.subr.bf16.mxu0 0
  %3201 = vmatpush1.bf16.msra.mxu0 %v2453
  %3202 = vmatprep.subr.bf16.mxu0 0
  %3203 = vmatpush1.bf16.msra.mxu0 %v2454
  %3204 = vmatprep.subr.bf16.mxu0 0
  %3205 = vmatpush1.bf16.msra.mxu0 %v2455
  %3206 = vmatprep.subr.bf16.mxu0 0
  %3207 = vmatpush1.bf16.msra.mxu0 %v2456
  %3208 = vmatprep.subr.bf16.mxu0 0
  %3209 = vmatpush1.bf16.msra.mxu0 %v2457
  %3210 = vmatprep.subr.bf16.mxu0 0
  %3211 = vmatpush1.bf16.msra.mxu0 %v2458
  %3212 = vmatprep.subr.bf16.mxu0 0
  %3213 = vmatpush1.bf16.msra.mxu0 %v2459
  %3214 = vmatprep.subr.bf16.mxu0 0
  %3215 = vmatpush1.bf16.msra.mxu0 %v2482
  %3216 = vmatprep.subr.bf16.mxu0 0
  %3217 = vmatpush1.bf16.msra.mxu0 0
  %3218 = vmatprep.subr.bf16.mxu0 0
  %3219 = vmatpush1.bf16.msra.mxu0 0
  %3220 = vmatprep.subr.bf16.mxu0 0
  %3221 = vmatpush1.bf16.msra.mxu0 0
  %3222 = vmatprep.subr.bf16.mxu0 0
  %3223 = vmatpush1.bf16.msra.mxu0 0
  %3224 = vmatprep.subr.bf16.mxu0 0
  %3225 = vmatpush1.bf16.msra.mxu0 0
  %3226 = vmatprep.subr.bf16.mxu0 0
  %3227 = vmatpush1.bf16.msra.mxu0 0
  %3228 = vmatprep.subr.bf16.mxu0 0
  %3229 = vmatpush1.bf16.msra.mxu0 0
  %3230 = vmatprep.subr.bf16.mxu0 0
  %3231 = vmatpush1.bf16.msra.mxu0 0
  %3232 = vmatprep.mubr.bf16.mxu0 0
  %3233 = vmatmul.mubr.bf16.gmra.mrb[0].mxu0 %v3189
  %v3234 = vpop.f32.mrb[0].mxu0
  %v3235 = vadd.f32 %v3158, %v3234
  %v3236 = vpop.f32.mrb[0].mxu0
  %v3237 = vpop.f32.mrb[0].mxu0
  %v3238 = vadd.f32 %v3162, %v3237
  %v3239 = vpop.f32.mrb[0].mxu0
  %3240 = vmatprep.mubr.bf16.mxu0 0
  %3241 = vmatmul.mubr.bf16.gmra.mrb[0].mxu0 %v3192
  %v3242 = vpop.f32.mrb[0].mxu0
  %v3243 = vadd.f32 %v3166, %v3242
  %v3244 = vpop.f32.mrb[0].mxu0
  %v3245 = vpop.f32.mrb[0].mxu0
  %v3246 = vadd.f32 %v3170, %v3245
  %v3247 = vpop.f32.mrb[0].mxu0
  %3248 = vmatprep.mubr.bf16.mxu0 0
  %3249 = vmatmul.mubr.bf16.gmra.mrb[0].mxu0 %v3195
  %v3250 = vpop.f32.mrb[0].mxu0
  %v3251 = vadd.f32 %v3174, %v3250
  %v3252 = vpop.f32.mrb[0].mxu0
  %v3253 = vpop.f32.mrb[0].mxu0
  %v3254 = vadd.f32 %v3178, %v3253
  %v3255 = vpop.f32.mrb[0].mxu0
  %3256 = vmatprep.mubr.bf16.mxu0 0
  %3257 = vmatmul.mubr.bf16.gmra.mrb[0].mxu0 %v3198
  %v3258 = vpop.f32.mrb[0].mxu0
  %v3259 = vadd.f32 %v3182, %v3258
  %v3260 = vpop.f32.mrb[0].mxu0
  %v3261 = vpop.f32.mrb[0].mxu0
  %v3262 = vadd.f32 %v3186, %v3261
  %v3263 = vpop.f32.mrb[0].mxu0
  %3264 = vdwg.mxu0
  %v3265 = vadd.f32 %v3017, %v3235
  %v3266 = vadd.f32 %v3020, %v3238
  %v3267 = vadd.f32 %v3025, %v3243
  %v3268 = vadd.f32 %v3028, %v3246
  %v3269 = vadd.f32 %v3033, %v3251
  %v3270 = vadd.f32 %v3036, %v3254
  %v3271 = vadd.f32 %v3041, %v3259
  %v3272 = vadd.f32 %v3044, %v3262
  %v3273 = vmax.f32 %v3265, 0.0
  %v3274 = vmax.f32 %v3266, 0.0
  %v3275 = vmax.f32 %v3267, 0.0
  %v3276 = vmax.f32 %v3268, 0.0
  %v3277 = vmax.f32 %v3269, 0.0
  %v3278 = vmax.f32 %v3270, 0.0
  %v3279 = vmax.f32 %v3271, 0.0
  %v3280 = vmax.f32 %v3272, 0.0
  %v3281 = vld [vmem:[%s3 + $0x2] sm:$0x1]
  %v3282 = vlaneseq
  %v3283 = vshrl.u32 %v3282, 7
  %v3284 = vsub.s32 0, %v3283
  %v3285 = vrot.slane %v3281, %v3284
  %v3286 = vmul.f32 %v3273, %v3285
  %v3287 = vmul.f32 %v3274, %v3285
  %v3288 = vmul.f32 %v3275, %v3285
  %v3289 = vmul.f32 %v3276, %v3285
  %v3290 = vmul.f32 %v3277, %v3285
  %v3291 = vmul.f32 %v3278, %v3285
  %v3292 = vmul.f32 %v3279, %v3285
  %v3293 = vmul.f32 %v3280, %v3285
  %v3294 = vpack.c.bf16 %v3287, %v3286
  %v3295 = vpack.c.bf16 %v3289, %v3288
  %v3296 = vpack.c.bf16 %v3291, %v3290
  %v3297 = vpack.c.bf16 %v3293, %v3292
  %v3298 = vld [vmem:[%s5] sm:$0xf]
  %v3299 = vld [vmem:[%s5 + $0x4] sm:$0xf]
  %v3300 = vld [vmem:[%s5 + $0x8] sm:$0xf]
  %v3301 = vld [vmem:[%s5 + $0xc] sm:$0xf]
  %v3302 = vld [vmem:[%s5 + $0x10] sm:$0xf]
  %v3303 = vld [vmem:[%s5 + $0x14] sm:$0xf]
  %v3310 = vunpack.c.l.b16 %v3298
  %v3311 = vunpack.c.l.b16 %v3299
  %v3312 = vunpack.c.l.b16 %v3300
  %v3313 = vunpack.c.l.b16 %v3301
  %v3314 = vunpack.c.l.b16 %v3302
  %v3315 = vunpack.c.l.b16 %v3303
  %v3316 = vpack.c.b16 %v3311, %v3310
  %v3317 = vpack.c.b16 %v3313, %v3312
  %v3318 = vpack.c.b16 %v3315, %v3314
  %vm3322 = vcmask 392192
  %v3324 = vsel %vm3322, %v3294, 0
  %v3327 = vsel %vm3322, %v3295, 0
  %v3330 = vsel %vm3322, %v3296, 0
  %v3333 = vsel %vm3322, %v3297, 0
  %3335 = vmatprep.subr.bf16.mxu0 0
  %3336 = vmatpush1.bf16.msra.mxu0 %v3316
  %3337 = vmatprep.subr.bf16.mxu0 0
  %3338 = vmatpush1.bf16.msra.mxu0 %v3317
  %3339 = vmatprep.subr.bf16.mxu0 0
  %3340 = vmatpush1.bf16.msra.mxu0 %v3318
  %3341 = vmatprep.subr.bf16.mxu0 0
  %3342 = vmatpush1.bf16.msra.mxu0 0
  %3343 = vmatprep.subr.bf16.mxu0 0
  %3344 = vmatpush1.bf16.msra.mxu0 0
  %3345 = vmatprep.subr.bf16.mxu0 0
  %3346 = vmatpush1.bf16.msra.mxu0 0
  %3347 = vmatprep.subr.bf16.mxu0 0
  %3348 = vmatpush1.bf16.msra.mxu0 0
  %3349 = vmatprep.subr.bf16.mxu0 0
  %3350 = vmatpush1.bf16.msra.mxu0 0
  %3351 = vmatprep.subr.bf16.mxu0 0
  %3352 = vmatpush1.bf16.msra.mxu0 0
  %3353 = vmatprep.subr.bf16.mxu0 0
  %3354 = vmatpush1.bf16.msra.mxu0 0
  %3355 = vmatprep.subr.bf16.mxu0 0
  %3356 = vmatpush1.bf16.msra.mxu0 0
  %3357 = vmatprep.subr.bf16.mxu0 0
  %3358 = vmatpush1.bf16.msra.mxu0 0
  %3359 = vmatprep.subr.bf16.mxu0 0
  %3360 = vmatpush1.bf16.msra.mxu0 0
  %3361 = vmatprep.subr.bf16.mxu0 0
  %3362 = vmatpush1.bf16.msra.mxu0 0
  %3363 = vmatprep.subr.bf16.mxu0 0
  %3364 = vmatpush1.bf16.msra.mxu0 0
  %3365 = vmatprep.subr.bf16.mxu0 0
  %3366 = vmatpush1.bf16.msra.mxu0 0
  %3367 = vmatprep.mubr.bf16.mxu0 0
  %3368 = vmatmul.mubr.bf16.gmra.mrb[0].mxu0 %v3324
  %v3369 = vpop.f32.mrb[0].mxu0
  %v3370 = vadd.f32 0.0, %v3369
  %v3371 = vpop.f32.mrb[0].mxu0
  %v3372 = vpop.f32.mrb[0].mxu0
  %v3373 = vadd.f32 0.0, %v3372
  %v3374 = vpop.f32.mrb[0].mxu0
  %3375 = vmatprep.mubr.bf16.mxu0 0
  %3376 = vmatmul.mubr.bf16.gmra.mrb[0].mxu0 %v3327
  %v3377 = vpop.f32.mrb[0].mxu0
  %v3378 = vadd.f32 0.0, %v3377
  %v3379 = vpop.f32.mrb[0].mxu0
  %v3380 = vpop.f32.mrb[0].mxu0
  %v3381 = vadd.f32 0.0, %v3380
  %v3382 = vpop.f32.mrb[0].mxu0
  %3383 = vmatprep.mubr.bf16.mxu0 0
  %3384 = vmatmul.mubr.bf16.gmra.mrb[0].mxu0 %v3330
  %v3385 = vpop.f32.mrb[0].mxu0
  %v3386 = vadd.f32 0.0, %v3385
  %v3387 = vpop.f32.mrb[0].mxu0
  %v3388 = vpop.f32.mrb[0].mxu0
  %v3389 = vadd.f32 0.0, %v3388
  %v3390 = vpop.f32.mrb[0].mxu0
  %3391 = vmatprep.mubr.bf16.mxu0 0
  %3392 = vmatmul.mubr.bf16.gmra.mrb[0].mxu0 %v3333
  %v3393 = vpop.f32.mrb[0].mxu0
  %v3394 = vadd.f32 0.0, %v3393
  %v3395 = vpop.f32.mrb[0].mxu0
  %v3396 = vpop.f32.mrb[0].mxu0
  %v3397 = vadd.f32 0.0, %v3396
  %v3398 = vpop.f32.mrb[0].mxu0
  %3399 = vdwg.mxu0
  %v3400 = vld [vmem:[%s6] sm:$0xf]
  %v3401 = vld [vmem:[%s6 + $0x4] sm:$0x1]
  %v3402 = vpack.c.bf16 %v3373, %v3370
  %v3403 = vpack.c.bf16 %v3381, %v3378
  %v3404 = vpack.c.bf16 %v3389, %v3386
  %v3405 = vpack.c.bf16 %v3397, %v3394
  %s3406 = scalar_lea.vmem %s5, 24
  %v3407 = vld [vmem:[%s3406] sm:$0xf]
  %v3408 = vld [vmem:[%s3406 + $0x4] sm:$0xf]
  %v3409 = vld [vmem:[%s3406 + $0x8] sm:$0xf]
  %v3410 = vld [vmem:[%s3406 + $0xc] sm:$0xf]
  %v3411 = vld [vmem:[%s3406 + $0x10] sm:$0xf]
  %v3412 = vld [vmem:[%s3406 + $0x14] sm:$0xf]
  %v3419 = vunpack.c.l.b16 %v3407
  %v3420 = vunpack.c.l.b16 %v3408
  %v3421 = vunpack.c.l.b16 %v3409
  %v3422 = vunpack.c.l.b16 %v3410
  %v3423 = vunpack.c.l.b16 %v3411
  %v3424 = vunpack.c.l.b16 %v3412
  %v3425 = vpack.c.b16 %v3420, %v3419
  %v3426 = vpack.c.b16 %v3422, %v3421
  %v3427 = vpack.c.b16 %v3424, %v3423
  %3431 = vmatprep.subr.bf16.mxu0 0
  %3432 = vmatpush1.bf16.msra.mxu0 %v3425
  %3433 = vmatprep.subr.bf16.mxu0 0
  %3434 = vmatpush1.bf16.msra.mxu0 %v3426
  %3435 = vmatprep.subr.bf16.mxu0 0
  %3436 = vmatpush1.bf16.msra.mxu0 %v3427
  %3437 = vmatprep.subr.bf16.mxu0 0
  %3438 = vmatpush1.bf16.msra.mxu0 0
  %3439 = vmatprep.subr.bf16.mxu0 0
  %3440 = vmatpush1.bf16.msra.mxu0 0
  %3441 = vmatprep.subr.bf16.mxu0 0
  %3442 = vmatpush1.bf16.msra.mxu0 0
  %3443 = vmatprep.subr.bf16.mxu0 0
  %3444 = vmatpush1.bf16.msra.mxu0 0
  %3445 = vmatprep.subr.bf16.mxu0 0
  %3446 = vmatpush1.bf16.msra.mxu0 0
  %3447 = vmatprep.subr.bf16.mxu0 0
  %3448 = vmatpush1.bf16.msra.mxu0 0
  %3449 = vmatprep.subr.bf16.mxu0 0
  %3450 = vmatpush1.bf16.msra.mxu0 0
  %3451 = vmatprep.subr.bf16.mxu0 0
  %3452 = vmatpush1.bf16.msra.mxu0 0
  %3453 = vmatprep.subr.bf16.mxu0 0
  %3454 = vmatpush1.bf16.msra.mxu0 0
  %3455 = vmatprep.subr.bf16.mxu0 0
  %3456 = vmatpush1.bf16.msra.mxu0 0
  %3457 = vmatprep.subr.bf16.mxu0 0
  %3458 = vmatpush1.bf16.msra.mxu0 0
  %3459 = vmatprep.subr.bf16.mxu0 0
  %3460 = vmatpush1.bf16.msra.mxu0 0
  %3461 = vmatprep.subr.bf16.mxu0 0
  %3462 = vmatpush1.bf16.msra.mxu0 0
  %3463 = vmatprep.mubr.bf16.mxu0 0
  %3464 = vmatmul.mubr.bf16.gmra.mrb[0].mxu0 %v3324
  %v3465 = vpop.f32.mrb[0].mxu0
  %v3466 = vadd.f32 0.0, %v3465
  %v3467 = vpop.f32.mrb[0].mxu0
  %v3468 = vpop.f32.mrb[0].mxu0
  %v3469 = vadd.f32 0.0, %v3468
  %v3470 = vpop.f32.mrb[0].mxu0
  %3471 = vmatprep.mubr.bf16.mxu0 0
  %3472 = vmatmul.mubr.bf16.gmra.mrb[0].mxu0 %v3327
  %v3473 = vpop.f32.mrb[0].mxu0
  %v3474 = vadd.f32 0.0, %v3473
  %v3475 = vpop.f32.mrb[0].mxu0
  %v3476 = vpop.f32.mrb[0].mxu0
  %v3477 = vadd.f32 0.0, %v3476
  %v3478 = vpop.f32.mrb[0].mxu0
  %3479 = vmatprep.mubr.bf16.mxu0 0
  %3480 = vmatmul.mubr.bf16.gmra.mrb[0].mxu0 %v3330
  %v3481 = vpop.f32.mrb[0].mxu0
  %v3482 = vadd.f32 0.0, %v3481
  %v3483 = vpop.f32.mrb[0].mxu0
  %v3484 = vpop.f32.mrb[0].mxu0
  %v3485 = vadd.f32 0.0, %v3484
  %v3486 = vpop.f32.mrb[0].mxu0
  %3487 = vmatprep.mubr.bf16.mxu0 0
  %3488 = vmatmul.mubr.bf16.gmra.mrb[0].mxu0 %v3333
  %v3489 = vpop.f32.mrb[0].mxu0
  %v3490 = vadd.f32 0.0, %v3489
  %v3491 = vpop.f32.mrb[0].mxu0
  %v3492 = vpop.f32.mrb[0].mxu0
  %v3493 = vadd.f32 0.0, %v3492
  %v3494 = vpop.f32.mrb[0].mxu0
  %3495 = vdwg.mxu0
  %s3496 = scalar_lea.vmem %s6, 8
  %v3497 = vld [vmem:[%s3496] sm:$0xf]
  %v3498 = vld [vmem:[%s3496 + $0x4] sm:$0x1]
  %v3499 = vpack.c.bf16 %v3469, %v3466
  %v3500 = vpack.c.bf16 %v3477, %v3474
  %v3501 = vpack.c.bf16 %v3485, %v3482
  %v3502 = vpack.c.bf16 %v3493, %v3490
  %v3505 = vunpack.c.l.b16 %v3497
  %v3506 = vunpack.c.l.b16 %v3498
  %v3507 = vpack.c.b16 %v3506, %v3505
  %v3509 = vsel %vm2839, %v3507, 0
  %3511 = vmatprep.subr.bf16.mxu0 0
  %3512 = vmatpush1.bf16.msra.mxu0 %v3499
  %3513 = vmatprep.subr.bf16.mxu0 0
  %3514 = vmatpush1.bf16.msra.mxu0 %v3500
  %3515 = vmatprep.subr.bf16.mxu0 0
  %3516 = vmatpush1.bf16.msra.mxu0 %v3501
  %3517 = vmatprep.subr.bf16.mxu0 0
  %3518 = vmatpush1.bf16.msra.mxu0 %v3502
  %3519 = vmatprep.subr.bf16.mxu0 0
  %3520 = vmatpush1.bf16.msra.mxu0 0
  %3521 = vmatprep.subr.bf16.mxu0 0
  %3522 = vmatpush1.bf16.msra.mxu0 0
  %3523 = vmatprep.subr.bf16.mxu0 0
  %3524 = vmatpush1.bf16.msra.mxu0 0
  %3525 = vmatprep.subr.bf16.mxu0 0
  %3526 = vmatpush1.bf16.msra.mxu0 0
  %3527 = vmatprep.subr.bf16.mxu0 0
  %3528 = vmatpush1.bf16.msra.mxu0 0
  %3529 = vmatprep.subr.bf16.mxu0 0
  %3530 = vmatpush1.bf16.msra.mxu0 0
  %3531 = vmatprep.subr.bf16.mxu0 0
  %3532 = vmatpush1.bf16.msra.mxu0 0
  %3533 = vmatprep.subr.bf16.mxu0 0
  %3534 = vmatpush1.bf16.msra.mxu0 0
  %3535 = vmatprep.subr.bf16.mxu0 0
  %3536 = vmatpush1.bf16.msra.mxu0 0
  %3537 = vmatprep.subr.bf16.mxu0 0
  %3538 = vmatpush1.bf16.msra.mxu0 0
  %3539 = vmatprep.subr.bf16.mxu0 0
  %3540 = vmatpush1.bf16.msra.mxu0 0
  %3541 = vmatprep.subr.bf16.mxu0 0
  %3542 = vmatpush1.bf16.msra.mxu0 0
  %3543 = vmatprep.mubr.bf16.mxu0 0
  %3544 = vmatmul.mubr.bf16.gmra.mrb[0].mxu0 %v3509
  %v3545 = vpop.f32.mrb[0].mxu0
  %v3546 = vadd.f32 0.0, %v3545
  %v3547 = vpop.f32.mrb[0].mxu0
  %v3548 = vpop.f32.mrb[0].mxu0
  %v3549 = vadd.f32 0.0, %v3548
  %v3550 = vpop.f32.mrb[0].mxu0
  %3551 = vdwg.mxu0
  %v3554 = vunpack.c.l.b16 %v3400
  %v3555 = vunpack.c.l.b16 %v3401
  %v3556 = vpack.c.b16 %v3555, %v3554
  %v3558 = vsel %vm2839, %v3556, 0
  %3560 = vmatprep.subr.bf16.mxu0 0
  %3561 = vmatpush1.bf16.msra.mxu0 %v3402
  %3562 = vmatprep.subr.bf16.mxu0 0
  %3563 = vmatpush1.bf16.msra.mxu0 %v3403
  %3564 = vmatprep.subr.bf16.mxu0 0
  %3565 = vmatpush1.bf16.msra.mxu0 %v3404
  %3566 = vmatprep.subr.bf16.mxu0 0
  %3567 = vmatpush1.bf16.msra.mxu0 %v3405
  %3568 = vmatprep.subr.bf16.mxu0 0
  %3569 = vmatpush1.bf16.msra.mxu0 0
  %3570 = vmatprep.subr.bf16.mxu0 0
  %3571 = vmatpush1.bf16.msra.mxu0 0
  %3572 = vmatprep.subr.bf16.mxu0 0
  %3573 = vmatpush1.bf16.msra.mxu0 0
  %3574 = vmatprep.subr.bf16.mxu0 0
  %3575 = vmatpush1.bf16.msra.mxu0 0
  %3576 = vmatprep.subr.bf16.mxu0 0
  %3577 = vmatpush1.bf16.msra.mxu0 0
  %3578 = vmatprep.subr.bf16.mxu0 0
  %3579 = vmatpush1.bf16.msra.mxu0 0
  %3580 = vmatprep.subr.bf16.mxu0 0
  %3581 = vmatpush1.bf16.msra.mxu0 0
  %3582 = vmatprep.subr.bf16.mxu0 0
  %3583 = vmatpush1.bf16.msra.mxu0 0
  %3584 = vmatprep.subr.bf16.mxu0 0
  %3585 = vmatpush1.bf16.msra.mxu0 0
  %3586 = vmatprep.subr.bf16.mxu0 0
  %3587 = vmatpush1.bf16.msra.mxu0 0
  %3588 = vmatprep.subr.bf16.mxu0 0
  %3589 = vmatpush1.bf16.msra.mxu0 0
  %3590 = vmatprep.subr.bf16.mxu0 0
  %3591 = vmatpush1.bf16.msra.mxu0 0
  %3592 = vmatprep.mubr.bf16.mxu0 0
  %3593 = vmatmul.mubr.bf16.gmra.mrb[0].mxu0 %v3558
  %v3594 = vpop.f32.mrb[0].mxu0
  %v3595 = vadd.f32 %v3546, %v3594
  %v3596 = vpop.f32.mrb[0].mxu0
  %v3597 = vpop.f32.mrb[0].mxu0
  %v3598 = vadd.f32 %v3549, %v3597
  %v3599 = vpop.f32.mrb[0].mxu0
  %3600 = vdwg.mxu0
  %v3601 = vld [vmem:[%s2] sm:$0xff]
  %v3602 = vld [vmem:[%s2 + $0x8] sm:$0x3]
  %3604 = vset.pattern.permute.xlu0 10
  %3605 = vperm.xlu0 %3604, %v3601
  %v3606 = vpop.permute.xlu0 %3605
  %3609 = vset.pattern.permute.xlu0 10
  %3610 = vperm.xlu0 %3609, %v3602
  %v3611 = vpop.permute.xlu0 %3610
  %v3613 = vadd.f32 %v3595, %v3606
  %v3614 = vadd.f32 %v3598, %v3611
  %vm3615 = vcmask 15360
  %3616 = vst.msk [vmem:[%s7] sm:$0xff] %vm3615, %v3613
  %vm3617 = vcmask 9216
  %3618 = vst.msk [vmem:[%s7 + $0x8] sm:$0x3] %vm3617, %v3614
  // Predicated region
  $region30: #{forward.1} parent=0 // pred_check
    _
  $region31: #{forward.1} parent=0 // pred_check_branch
    %3620 = sbr.rel (0) target = $region33
  $region32: #{forward.1} parent=0 // pred_region
    _
  $region33: #{forward.1} parent=0 // pred_fallthru
    _
  // Predicated region
  $region34: #{forward.1} parent=0 // pred_check
    _
  $region35: #{forward.1} parent=0 // pred_check_branch
    %3622 = sbr.rel (0) target = $region37
  $region36: #{forward.1} parent=0 // pred_region
    _
  $region37: #{forward.1} parent=0 // pred_fallthru
    _

</llo_original>
